<compile_context>
chip_gen: v7x
topology: tpu7x:2x2x1
jax: 0.10.0
libtpu: 0.0.40
codegen_flags: <defaults>
</compile_context>

<pallas_src>
import jax
import jax.numpy as jnp
import numpy as np
from jax import lax
from jax.experimental import pallas as pl
from jax.experimental.pallas import tpu as pltpu


def _make_kernel(Cout, M, T, KK, shifts, im2col_dtype):
    TM = T * M

    def kernel(x_ref, wx_ref, wh_ref, b_ref, mask_ref, y_ref, u_ref, gx_ref):
        l = pl.program_id(0)

        # Layer input sequence: raw (channel-padded) input for layer 0, otherwise the
        # previous layer's output, still resident in the y_ref VMEM block.
        @pl.when(l == 0)
        def _():
            u_ref[...] = x_ref[...]

        @pl.when(l != 0)
        def _():
            u_ref[...] = y_ref[...]

        # Hoisted per-tap masks (loop-invariant; JAX does not CSE repeated loads).
        masks_x = [mask_ref[tt] for tt in range(KK)]        # (1, T*M) each
        masks_h = [m[:, :M] for m in masks_x]               # (1, M)   each

        def im2col(z, masks, n_lanes):
            # z: (Cout, n_lanes) in im2col_dtype -> (KK*Cout, n_lanes), tap-major rows.
            cols = []
            for tt in range(KK):
                s = shifts[tt]
                if s == 0:                                   # centre tap: mask == 1
                    cols.append(z)
                else:
                    zt = pltpu.roll(z, shift=(-s) % n_lanes, axis=1)   # XLU lane roll
                    cols.append(zt * masks[tt])              # sublane-broadcast mask
            return jnp.concatenate(cols, axis=0)

        # ---- input path: all T timesteps in ONE batched MXU matmul ----
        u = u_ref[...].astype(im2col_dtype)                  # (Cout, T*M)
        col_x = im2col(u, masks_x, TM)                       # (KK*Cout, T*M)
        gx_ref[...] = (
            jnp.dot(wx_ref[...], col_x.astype(jnp.bfloat16),
                    preferred_element_type=jnp.float32)
            + b_ref[...])                                    # bias folded in once

        # ---- serial recurrence: hidden path only (contraction KK*Cout) ----
        wh = wh_ref[...]                                     # (4*Cout, KK*Cout) bf16
        h = jnp.zeros((Cout, M), jnp.float32)
        c = jnp.zeros((Cout, M), jnp.float32)
        for t in range(T):                                   # static unroll (T small)
            col_h = im2col(h.astype(im2col_dtype), masks_h, M)     # (KK*Cout, M)
            gates = gx_ref[:, t * M:(t + 1) * M] + jnp.dot(
                wh, col_h.astype(jnp.bfloat16),
                preferred_element_type=jnp.float32)          # (4*Cout, M), f32

            i_g = jax.nn.sigmoid(gates[0 * Cout:1 * Cout])   # sublane-aligned slices
            f_g = jax.nn.sigmoid(gates[1 * Cout:2 * Cout])
            g_g = jnp.tanh(gates[2 * Cout:3 * Cout])         # activation = 'tanh'
            o_g = jax.nn.sigmoid(gates[3 * Cout:4 * Cout])

            c = f_g * c + i_g * g_g                          # f32 state
            h = o_g * jnp.tanh(c)
            y_ref[:, t * M:(t + 1) * M] = h                  # lane-aligned (128) store

    return kernel


def conv_lstm_forward(x, params, cell_info):
    """x: (N, T, Cin, H, W) or (N, Cin, H, W) (NCHW, like the PyTorch module)."""
    assert cell_info['stride'] == 1 and 2 * cell_info['padding'] == cell_info['kernel_size'] - 1
    # TODO(synk): stride != 1 / non-'same' padding not supported (the module's
    # recurrence is only shape-consistent for 'same' convs anyway).
    assert cell_info['activation'] == 'tanh'
    squeeze = (x.ndim == 4)
    if squeeze:
        x = x[:, None]
    N, T, Cin, H, W = x.shape
    Cout, K, P = cell_info['output_size'], cell_info['kernel_size'], cell_info['padding']
    assert Cin <= Cout           # layer-0 input channels zero-padded up to output_size
    L = len(params)
    M = N * H * W
    TM = T * M
    KK = K * K
    Kc = KK * Cout               # per-path im2col contraction depth

    # Early-bf16 im2col only pays once a tap slab fills a packed 16-row bf16 tile;
    # keep it off below that and on v5e (no native bf16 VALU) -- review items 4/5.
    early_bf16 = (Cout % 16 == 0)
    im2col_dtype = jnp.bfloat16 if early_bf16 else jnp.float32

    # ---- glue: layout plumbing only ----
    # input -> (Cout, T*M): channels on sublanes, lane index = t*M + n*H*W + i*W + j.
    x_col = jnp.transpose(x, (2, 1, 0, 3, 4)).reshape(Cin, TM).astype(jnp.float32)
    x_col = jnp.pad(x_col, ((0, Cout - Cin), (0, 0)))

    # Per-layer conv weights transposed to (4*Cout, KK*C) bf16 for the MXU; bias as
    # (4*Cout, 1), lane-broadcast in-kernel (no M-scaled bias resident any more).
    wx_l, wh_l, b_l = [], [], []
    for (w_in, w_h, b) in params:
        cin_l = w_in.shape[2]
        w_in_p = jnp.pad(w_in, ((0, 0), (0, 0), (0, Cout - cin_l), (0, 0)))
        wx_l.append(w_in_p.reshape(Kc, 4 * Cout).T)         # (4*Cout, Kc)
        wh_l.append(w_h.reshape(Kc, 4 * Cout).T)            # (4*Cout, Kc)
        b_l.append(jnp.reshape(b, (4 * Cout, 1)))
    wx = jnp.stack(wx_l).astype(jnp.bfloat16)                # (L, 4*Cout, Kc)
    wh = jnp.stack(wh_l).astype(jnp.bfloat16)                # (L, 4*Cout, Kc)
    bias = jnp.stack(b_l).astype(jnp.float32)                # (L, 4*Cout, 1)

    # Conv-tap validity masks over the flattened lane axis, tiled per timestep:
    # (KK, 1, T*M) -- channel-independent, sublane-broadcast in-kernel.
    ii = (jnp.arange(M) // W) % H
    jj = jnp.arange(M) % W
    masks = []
    for dy in range(K):
        for dx in range(K):
            valid = ((ii + dy - P >= 0) & (ii + dy - P < H) &
                     (jj + dx - P >= 0) & (jj + dx - P < W))
            masks.append(jnp.tile(valid, T))
    masks = jnp.stack(masks)[:, None, :].astype(im2col_dtype)   # (KK, 1, T*M)

    shifts = [(dy - P) * W + (dx - P) for dy in range(K) for dx in range(K)]
    kernel = _make_kernel(Cout, M, T, KK, shifts, im2col_dtype)

    y = pl.pallas_call(
        kernel,
        out_shape=jax.ShapeDtypeStruct((Cout, TM), jnp.float32),
        grid_spec=pltpu.PrefetchScalarGridSpec(
            num_scalar_prefetch=0,
            grid=(L,),                     # layer-major; time handled inside the block
            in_specs=[
                pl.BlockSpec((Cout, TM), lambda l: (0, 0)),               # layer-0 in
                pl.BlockSpec((None, 4 * Cout, Kc), lambda l: (l, 0, 0)),  # Wx[l]
                pl.BlockSpec((None, 4 * Cout, Kc), lambda l: (l, 0, 0)),  # Wh[l]
                pl.BlockSpec((None, 4 * Cout, 1), lambda l: (l, 0, 0)),   # bias[l]
                pl.BlockSpec((KK, 1, TM), lambda l: (0, 0, 0)),           # tap masks
            ],
            # Constant index_map: the output block stays resident in VMEM across the
            # layer axis and doubles as the next layer's input sequence (no HBM trip).
            out_specs=pl.BlockSpec((Cout, TM), lambda l: (0, 0)),
            scratch_shapes=[
                pltpu.VMEM((Cout, TM), jnp.float32),       # current layer input seq
                pltpu.VMEM((4 * Cout, TM), jnp.float32),   # precomputed x-path gates
            ],
        ),
        # Layer axis carries the resident output block -> sequential.
        # TODO(synk): chunk T (grid=(L, T//Tb)) with h/c carried in scratch once T*M no
        #   longer fits VMEM; at that point also single-buffer the grid-invariant
        #   x/mask inputs (pl.Buffered(1)) to respect v7x's 64 MiB VMEM.
        # TODO(synk): on v7x (2 TCs) add a leading "parallel" batch-block grid axis
        #   once N*H*W >= 2*128 lanes so each core runs an independent recurrence.
        # TODO(synk): write hidden-path taps into a persistent VMEM (Kc, M) scratch
        #   (review item 6) to overlap tap stores with the next roll; kept as
        #   jnp.concatenate here to avoid sub-tile bf16 stores on the serial path.
        compiler_params=pltpu.CompilerParams(dimension_semantics=("arbitrary",)),
    )(x_col, wx, wh, bias, masks)

    out = jnp.transpose(y.reshape(Cout, T, N, H, W), (2, 1, 0, 3, 4))  # (N,T,Cout,H,W)
    if squeeze:
        out = out[:, 0]
    return out


def init_params(key, num_layers, Cin, Cout, K):
    """Deterministic synthetic weights; conv weights stored HWIO (ky,kx,cin,cout).
    Layer l>0 consumes the previous layer's Cout channels (the only
    shape-consistent reading of the stacked recurrence)."""
    params = []
    for i in range(num_layers):
        cin_l = Cin if i == 0 else Cout
        key, k1, k2, k3, k4 = jax.random.split(key, 5)
        w_in = jax.random.normal(k1, (K, K, cin_l, 4 * Cout), jnp.float32) * 0.1
        w_h = jax.random.normal(k2, (K, K, Cout, 4 * Cout), jnp.float32) * 0.1
        b_in = jax.random.normal(k3, (4 * Cout,), jnp.float32) * 0.1
        b_h = jax.random.normal(k4, (4 * Cout,), jnp.float32) * 0.1
        params.append((w_in, w_h, (b_in + b_h).reshape(1, 4 * Cout)))
    return params


def ref_forward(x, params, Cout, K, P):
    """Pure-JAX (f32) reference matching the PyTorch ConvLSTMCell forward."""
    squeeze = (x.ndim == 4)
    if squeeze:
        x = x[:, None]
    N, T, Cin, H, W = x.shape
    y = jnp.transpose(x, (1, 0, 3, 4, 2))
    dn = ('NHWC', 'HWIO', 'NHWC')
    for (w_in, w_h, b) in params:
        h = jnp.zeros((N, H, W, Cout), jnp.float32)
        c = jnp.zeros((N, H, W, Cout), jnp.float32)
        ys = []
        for t in range(T):
            g = lax.conv_general_dilated(y[t], w_in, (1, 1), [(P, P), (P, P)],
                                         dimension_numbers=dn)
            g = g + lax.conv_general_dilated(h, w_h, (1, 1), [(P, P), (P, P)],
                                             dimension_numbers=dn)
            g = g + b.reshape(1, 1, 1, 4 * Cout)
            i_g, f_g, g_g, o_g = jnp.split(g, 4, axis=-1)
            c = jax.nn.sigmoid(f_g) * c + jax.nn.sigmoid(i_g) * jnp.tanh(g_g)
            h = jax.nn.sigmoid(o_g) * jnp.tanh(c)
            ys.append(h)
        y = jnp.stack(ys, axis=0)
    out = jnp.transpose(y, (1, 0, 4, 2, 3))
    if squeeze:
        out = out[:, 0]
    return out


if __name__ == "__main__":
    cell_info = dict(cell='ConvLSTMCell', input_size=4, output_size=8,
                     kernel_size=3, stride=1, padding=1, bias=True,
                     num_layers=2, activation='tanh')

    key = jax.random.PRNGKey(0)
    kx, kp = jax.random.split(key)
    # (N, T, Cin, H, W) -- N*H*W = 128 fills the lane axis; T*M = 1024 lanes feed the
    # batched input-path matmul and the lane-dense output block.
    x = jax.random.normal(kx, (2, 8, 4, 8, 8), jnp.float32)
    params = init_params(kp, cell_info['num_layers'], cell_info['input_size'],
                         cell_info['output_size'], cell_info['kernel_size'])

    out = conv_lstm_forward(x, params, cell_info)
    out = jax.block_until_ready(out)

    ref = ref_forward(x, params, cell_info['output_size'],
                      cell_info['kernel_size'], cell_info['padding'])
    # bf16 MXU operands (f32 accumulation/state), T=8 steps x 2 layers of compounding.
    np.testing.assert_allclose(np.asarray(out), np.asarray(ref),
                               rtol=3e-2, atol=3e-2)
    print("KERNEL_OK")
</pallas_src>

<mosaic_0001>
module attributes {stable_mosaic.version = 11 : i64} {
  func.func @kernel(%arg0: i32, %arg1: memref<8x1024xf32, #tpu.memory_space<vmem>>, %arg2: memref<1x32x72xbf16, #tpu.memory_space<vmem>>, %arg3: memref<1x32x72xbf16, #tpu.memory_space<vmem>>, %arg4: memref<1x32x1xf32, #tpu.memory_space<vmem>>, %arg5: memref<9x1x1024xf32, #tpu.memory_space<vmem>>, %arg6: memref<8x1024xf32, #tpu.memory_space<vmem>>, %arg7: memref<8x1024xf32, #tpu.memory_space<vmem>>, %arg8: memref<32x1024xf32, #tpu.memory_space<vmem>>) attributes {dimension_semantics = [#tpu.dimension_semantics<arbitrary>], iteration_bounds = array<i64: 2>, scalar_prefetch = 0 : i64, scratch_operands = 2 : i64, tpu.core_type = #tpu.core_type<tc>, window_params = [{pipeline_mode = #tpu.pipeline_mode<synchronous>, transform_indices = @transform_0, window_bounds = array<i64: 8, 1024>}, {transform_indices = @transform_1, window_bounds = array<i64: 1, 32, 72>}, {transform_indices = @transform_2, window_bounds = array<i64: 1, 32, 72>}, {transform_indices = @transform_3, window_bounds = array<i64: 1, 32, 1>}, {pipeline_mode = #tpu.pipeline_mode<synchronous>, transform_indices = @transform_4, window_bounds = array<i64: 9, 1, 1024>}, {pipeline_mode = #tpu.pipeline_mode<synchronous>, transform_indices = @transform_5, window_bounds = array<i64: 8, 1024>}]} {
    %c0_i32 = arith.constant 0 : i32
    %0 = arith.cmpi eq, %arg0, %c0_i32 : i32
    %1 = arith.extui %0 : i1 to i32
    %c0_i32_0 = arith.constant 0 : i32
    %2 = arith.cmpi ne, %1, %c0_i32_0 : i32
    scf.if %2 {
      %c0_151 = arith.constant 0 : index
      %c0_152 = arith.constant 0 : index
      %509 = vector.load %arg1[%c0_151, %c0_152] : memref<8x1024xf32, #tpu.memory_space<vmem>>, vector<8x1024xf32>
      %c0_153 = arith.constant 0 : index
      %c0_154 = arith.constant 0 : index
      %510 = vector.load %arg7[%c0_153, %c0_154] : memref<8x1024xf32, #tpu.memory_space<vmem>>, vector<8x1024xf32>
      tpu.vector_store %arg7[%c0_153, %c0_154], %509 {strides = array<i32>} : memref<8x1024xf32, #tpu.memory_space<vmem>>, vector<8x1024xf32>,
    } else {
    }
    %c0_i32_1 = arith.constant 0 : i32
    %3 = arith.cmpi ne, %arg0, %c0_i32_1 : i32
    %4 = arith.extui %3 : i1 to i32
    %c0_i32_2 = arith.constant 0 : i32
    %5 = arith.cmpi ne, %4, %c0_i32_2 : i32
    scf.if %5 {
      %c0_151 = arith.constant 0 : index
      %c0_152 = arith.constant 0 : index
      %509 = vector.load %arg6[%c0_151, %c0_152] : memref<8x1024xf32, #tpu.memory_space<vmem>>, vector<8x1024xf32>
      %c0_153 = arith.constant 0 : index
      %c0_154 = arith.constant 0 : index
      %510 = vector.load %arg7[%c0_153, %c0_154] : memref<8x1024xf32, #tpu.memory_space<vmem>>, vector<8x1024xf32>
      tpu.vector_store %arg7[%c0_153, %c0_154], %509 {strides = array<i32>} : memref<8x1024xf32, #tpu.memory_space<vmem>>, vector<8x1024xf32>,
    } else {
    }
    %c0 = arith.constant 0 : index
    %c0_3 = arith.constant 0 : index
    %c0_4 = arith.constant 0 : index
    %6 = vector.load %arg5[%c0, %c0_3, %c0_4] : memref<9x1x1024xf32, #tpu.memory_space<vmem>>, vector<1x1x1024xf32>
    %7 = vector.shape_cast %6 : vector<1x1x1024xf32> to vector<1x1024xf32>
    %c1 = arith.constant 1 : index
    %c0_5 = arith.constant 0 : index
    %c0_6 = arith.constant 0 : index
    %8 = vector.load %arg5[%c1, %c0_5, %c0_6] : memref<9x1x1024xf32, #tpu.memory_space<vmem>>, vector<1x1x1024xf32>
    %9 = vector.shape_cast %8 : vector<1x1x1024xf32> to vector<1x1024xf32>
    %c2 = arith.constant 2 : index
    %c0_7 = arith.constant 0 : index
    %c0_8 = arith.constant 0 : index
    %10 = vector.load %arg5[%c2, %c0_7, %c0_8] : memref<9x1x1024xf32, #tpu.memory_space<vmem>>, vector<1x1x1024xf32>
    %11 = vector.shape_cast %10 : vector<1x1x1024xf32> to vector<1x1024xf32>
    %c3 = arith.constant 3 : index
    %c0_9 = arith.constant 0 : index
    %c0_10 = arith.constant 0 : index
    %12 = vector.load %arg5[%c3, %c0_9, %c0_10] : memref<9x1x1024xf32, #tpu.memory_space<vmem>>, vector<1x1x1024xf32>
    %13 = vector.shape_cast %12 : vector<1x1x1024xf32> to vector<1x1024xf32>
    %c5 = arith.constant 5 : index
    %c0_11 = arith.constant 0 : index
    %c0_12 = arith.constant 0 : index
    %14 = vector.load %arg5[%c5, %c0_11, %c0_12] : memref<9x1x1024xf32, #tpu.memory_space<vmem>>, vector<1x1x1024xf32>
    %15 = vector.shape_cast %14 : vector<1x1x1024xf32> to vector<1x1024xf32>
    %c6 = arith.constant 6 : index
    %c0_13 = arith.constant 0 : index
    %c0_14 = arith.constant 0 : index
    %16 = vector.load %arg5[%c6, %c0_13, %c0_14] : memref<9x1x1024xf32, #tpu.memory_space<vmem>>, vector<1x1x1024xf32>
    %17 = vector.shape_cast %16 : vector<1x1x1024xf32> to vector<1x1024xf32>
    %c7 = arith.constant 7 : index
    %c0_15 = arith.constant 0 : index
    %c0_16 = arith.constant 0 : index
    %18 = vector.load %arg5[%c7, %c0_15, %c0_16] : memref<9x1x1024xf32, #tpu.memory_space<vmem>>, vector<1x1x1024xf32>
    %19 = vector.shape_cast %18 : vector<1x1x1024xf32> to vector<1x1024xf32>
    %c8 = arith.constant 8 : index
    %c0_17 = arith.constant 0 : index
    %c0_18 = arith.constant 0 : index
    %20 = vector.load %arg5[%c8, %c0_17, %c0_18] : memref<9x1x1024xf32, #tpu.memory_space<vmem>>, vector<1x1x1024xf32>
    %21 = vector.shape_cast %20 : vector<1x1x1024xf32> to vector<1x1024xf32>
    %22 = vector.extract_strided_slice %7 {offsets = [0, 0], sizes = [1, 128], strides = [1, 1]} : vector<1x1024xf32> to vector<1x128xf32>
    %23 = vector.extract_strided_slice %9 {offsets = [0, 0], sizes = [1, 128], strides = [1, 1]} : vector<1x1024xf32> to vector<1x128xf32>
    %24 = vector.extract_strided_slice %11 {offsets = [0, 0], sizes = [1, 128], strides = [1, 1]} : vector<1x1024xf32> to vector<1x128xf32>
    %25 = vector.extract_strided_slice %13 {offsets = [0, 0], sizes = [1, 128], strides = [1, 1]} : vector<1x1024xf32> to vector<1x128xf32>
    %26 = vector.extract_strided_slice %15 {offsets = [0, 0], sizes = [1, 128], strides = [1, 1]} : vector<1x1024xf32> to vector<1x128xf32>
    %27 = vector.extract_strided_slice %17 {offsets = [0, 0], sizes = [1, 128], strides = [1, 1]} : vector<1x1024xf32> to vector<1x128xf32>
    %28 = vector.extract_strided_slice %19 {offsets = [0, 0], sizes = [1, 128], strides = [1, 1]} : vector<1x1024xf32> to vector<1x128xf32>
    %29 = vector.extract_strided_slice %21 {offsets = [0, 0], sizes = [1, 128], strides = [1, 1]} : vector<1x1024xf32> to vector<1x128xf32>
    %c0_19 = arith.constant 0 : index
    %c0_20 = arith.constant 0 : index
    %30 = vector.load %arg7[%c0_19, %c0_20] : memref<8x1024xf32, #tpu.memory_space<vmem>>, vector<8x1024xf32>
    %c9_i32 = arith.constant 9 : i32
    %31 = tpu.dynamic_rotate %30 by %c9_i32 dim 1 : vector<8x1024xf32>, i32 -> vector<8x1024xf32>
    %32 = vector.broadcast %7 : vector<1x1024xf32> to vector<8x1024xf32>
    %33 = arith.mulf %31, %32 : vector<8x1024xf32>
    %c8_i32 = arith.constant 8 : i32
    %34 = tpu.dynamic_rotate %30 by %c8_i32 dim 1 : vector<8x1024xf32>, i32 -> vector<8x1024xf32>
    %35 = vector.broadcast %9 : vector<1x1024xf32> to vector<8x1024xf32>
    %36 = arith.mulf %34, %35 : vector<8x1024xf32>
    %c7_i32 = arith.constant 7 : i32
    %37 = tpu.dynamic_rotate %30 by %c7_i32 dim 1 : vector<8x1024xf32>, i32 -> vector<8x1024xf32>
    %38 = vector.broadcast %11 : vector<1x1024xf32> to vector<8x1024xf32>
    %39 = arith.mulf %37, %38 : vector<8x1024xf32>
    %c1_i32 = arith.constant 1 : i32
    %40 = tpu.dynamic_rotate %30 by %c1_i32 dim 1 : vector<8x1024xf32>, i32 -> vector<8x1024xf32>
    %41 = vector.broadcast %13 : vector<1x1024xf32> to vector<8x1024xf32>
    %42 = arith.mulf %40, %41 : vector<8x1024xf32>
    %c1023_i32 = arith.constant 1023 : i32
    %43 = tpu.dynamic_rotate %30 by %c1023_i32 dim 1 : vector<8x1024xf32>, i32 -> vector<8x1024xf32>
    %44 = vector.broadcast %15 : vector<1x1024xf32> to vector<8x1024xf32>
    %45 = arith.mulf %43, %44 : vector<8x1024xf32>
    %c1017_i32 = arith.constant 1017 : i32
    %46 = tpu.dynamic_rotate %30 by %c1017_i32 dim 1 : vector<8x1024xf32>, i32 -> vector<8x1024xf32>
    %47 = vector.broadcast %17 : vector<1x1024xf32> to vector<8x1024xf32>
    %48 = arith.mulf %46, %47 : vector<8x1024xf32>
    %c1016_i32 = arith.constant 1016 : i32
    %49 = tpu.dynamic_rotate %30 by %c1016_i32 dim 1 : vector<8x1024xf32>, i32 -> vector<8x1024xf32>
    %50 = vector.broadcast %19 : vector<1x1024xf32> to vector<8x1024xf32>
    %51 = arith.mulf %49, %50 : vector<8x1024xf32>
    %c1015_i32 = arith.constant 1015 : i32
    %52 = tpu.dynamic_rotate %30 by %c1015_i32 dim 1 : vector<8x1024xf32>, i32 -> vector<8x1024xf32>
    %53 = vector.broadcast %21 : vector<1x1024xf32> to vector<8x1024xf32>
    %54 = arith.mulf %52, %53 : vector<8x1024xf32>
    %55 = tpu.concatenate %33, %36, %39, %42, %30, %45, %48, %51, %54 in 0 : vector<8x1024xf32>, vector<8x1024xf32>, vector<8x1024xf32>, vector<8x1024xf32>, vector<8x1024xf32>, vector<8x1024xf32>, vector<8x1024xf32>, vector<8x1024xf32>, vector<8x1024xf32> -> vector<72x1024xf32>
    %c0_21 = arith.constant 0 : index
    %c0_22 = arith.constant 0 : index
    %c0_23 = arith.constant 0 : index
    %56 = vector.load %arg2[%c0_21, %c0_22, %c0_23] : memref<1x32x72xbf16, #tpu.memory_space<vmem>>, vector<1x32x72xbf16>
    %57 = vector.shape_cast %56 : vector<1x32x72xbf16> to vector<32x72xbf16>
    %58 = arith.truncf %55 : vector<72x1024xf32> to vector<72x1024xbf16>
    %cst = arith.constant dense<0.000000e+00> : vector<32x1024xf32>
    %59 = tpu.matmul %57, %58, %cst {dimension_numbers = #tpu.dot_dimension_numbers<[1], [0], [0], [1], [0, 0, 1, 1], [], []>} : vector<32x72xbf16>, vector<72x1024xbf16>, vector<32x1024xf32> -> vector<32x1024xf32>
    %c0_24 = arith.constant 0 : index
    %c0_25 = arith.constant 0 : index
    %c0_26 = arith.constant 0 : index
    %60 = vector.load %arg4[%c0_24, %c0_25, %c0_26] : memref<1x32x1xf32, #tpu.memory_space<vmem>>, vector<1x32x1xf32>
    %61 = vector.shape_cast %60 : vector<1x32x1xf32> to vector<32x1xf32>
    %62 = vector.broadcast %61 : vector<32x1xf32> to vector<32x1024xf32>
    %63 = arith.addf %59, %62 : vector<32x1024xf32>
    %c0_27 = arith.constant 0 : index
    %c0_28 = arith.constant 0 : index
    %64 = vector.load %arg8[%c0_27, %c0_28] : memref<32x1024xf32, #tpu.memory_space<vmem>>, vector<32x1024xf32>
    tpu.vector_store %arg8[%c0_27, %c0_28], %63 {strides = array<i32>} : memref<32x1024xf32, #tpu.memory_space<vmem>>, vector<32x1024xf32>,
    %c0_29 = arith.constant 0 : index
    %c0_30 = arith.constant 0 : index
    %c0_31 = arith.constant 0 : index
    %65 = vector.load %arg3[%c0_29, %c0_30, %c0_31] : memref<1x32x72xbf16, #tpu.memory_space<vmem>>, vector<1x32x72xbf16>
    %66 = vector.shape_cast %65 : vector<1x32x72xbf16> to vector<32x72xbf16>
    %cst_32 = arith.constant 0.000000e+00 : f32
    %67 = vector.broadcast %cst_32 : f32 to vector<8x128xf32>
    %cst_33 = arith.constant 0.000000e+00 : f32
    %68 = vector.broadcast %cst_33 : f32 to vector<8x128xf32>
    %c9_i32_34 = arith.constant 9 : i32
    %69 = tpu.dynamic_rotate %67 by %c9_i32_34 dim 1 : vector<8x128xf32>, i32 -> vector<8x128xf32>
    %70 = vector.broadcast %22 : vector<1x128xf32> to vector<8x128xf32>
    %71 = arith.mulf %69, %70 : vector<8x128xf32>
    %c8_i32_35 = arith.constant 8 : i32
    %72 = tpu.dynamic_rotate %67 by %c8_i32_35 dim 1 : vector<8x128xf32>, i32 -> vector<8x128xf32>
    %73 = vector.broadcast %23 : vector<1x128xf32> to vector<8x128xf32>
    %74 = arith.mulf %72, %73 : vector<8x128xf32>
    %c7_i32_36 = arith.constant 7 : i32
    %75 = tpu.dynamic_rotate %67 by %c7_i32_36 dim 1 : vector<8x128xf32>, i32 -> vector<8x128xf32>
    %76 = vector.broadcast %24 : vector<1x128xf32> to vector<8x128xf32>
    %77 = arith.mulf %75, %76 : vector<8x128xf32>
    %c1_i32_37 = arith.constant 1 : i32
    %78 = tpu.dynamic_rotate %67 by %c1_i32_37 dim 1 : vector<8x128xf32>, i32 -> vector<8x128xf32>
    %79 = vector.broadcast %25 : vector<1x128xf32> to vector<8x128xf32>
    %80 = arith.mulf %78, %79 : vector<8x128xf32>
    %c127_i32 = arith.constant 127 : i32
    %81 = tpu.dynamic_rotate %67 by %c127_i32 dim 1 : vector<8x128xf32>, i32 -> vector<8x128xf32>
    %82 = vector.broadcast %26 : vector<1x128xf32> to vector<8x128xf32>
    %83 = arith.mulf %81, %82 : vector<8x128xf32>
    %c121_i32 = arith.constant 121 : i32
    %84 = tpu.dynamic_rotate %67 by %c121_i32 dim 1 : vector<8x128xf32>, i32 -> vector<8x128xf32>
    %85 = vector.broadcast %27 : vector<1x128xf32> to vector<8x128xf32>
    %86 = arith.mulf %84, %85 : vector<8x128xf32>
    %c120_i32 = arith.constant 120 : i32
    %87 = tpu.dynamic_rotate %67 by %c120_i32 dim 1 : vector<8x128xf32>, i32 -> vector<8x128xf32>
    %88 = vector.broadcast %28 : vector<1x128xf32> to vector<8x128xf32>
    %89 = arith.mulf %87, %88 : vector<8x128xf32>
    %c119_i32 = arith.constant 119 : i32
    %90 = tpu.dynamic_rotate %67 by %c119_i32 dim 1 : vector<8x128xf32>, i32 -> vector<8x128xf32>
    %91 = vector.broadcast %29 : vector<1x128xf32> to vector<8x128xf32>
    %92 = arith.mulf %90, %91 : vector<8x128xf32>
    %93 = tpu.concatenate %71, %74, %77, %80, %67, %83, %86, %89, %92 in 0 : vector<8x128xf32>, vector<8x128xf32>, vector<8x128xf32>, vector<8x128xf32>, vector<8x128xf32>, vector<8x128xf32>, vector<8x128xf32>, vector<8x128xf32>, vector<8x128xf32> -> vector<72x128xf32>
    %c0_38 = arith.constant 0 : index
    %c0_39 = arith.constant 0 : index
    %94 = vector.load %arg8[%c0_38, %c0_39] : memref<32x1024xf32, #tpu.memory_space<vmem>>, vector<32x128xf32>
    %95 = arith.truncf %93 : vector<72x128xf32> to vector<72x128xbf16>
    %cst_40 = arith.constant dense<0.000000e+00> : vector<32x128xf32>
    %96 = tpu.matmul %66, %95, %cst_40 {dimension_numbers = #tpu.dot_dimension_numbers<[1], [0], [0], [1], [0, 0, 1, 1], [], []>} : vector<32x72xbf16>, vector<72x128xbf16>, vector<32x128xf32> -> vector<32x128xf32>
    %97 = arith.addf %94, %96 : vector<32x128xf32>
    %98 = vector.extract_strided_slice %97 {offsets = [0, 0], sizes = [8, 128], strides = [1, 1]} : vector<32x128xf32> to vector<8x128xf32>
    %99 = arith.negf %98 : vector<8x128xf32>
    %100 = math.exp %99 : vector<8x128xf32>
    %cst_41 = arith.constant 1.000000e+00 : f32
    %101 = vector.broadcast %cst_41 : f32 to vector<8x128xf32>
    %102 = arith.addf %101, %100 : vector<8x128xf32>
    %103 = arith.divf %101, %102 : vector<8x128xf32>
    %104 = vector.extract_strided_slice %97 {offsets = [8, 0], sizes = [8, 128], strides = [1, 1]} : vector<32x128xf32> to vector<8x128xf32>
    %105 = arith.negf %104 : vector<8x128xf32>
    %106 = math.exp %105 : vector<8x128xf32>
    %cst_42 = arith.constant 1.000000e+00 : f32
    %107 = vector.broadcast %cst_42 : f32 to vector<8x128xf32>
    %108 = arith.addf %107, %106 : vector<8x128xf32>
    %109 = arith.divf %107, %108 : vector<8x128xf32>
    %110 = vector.extract_strided_slice %97 {offsets = [16, 0], sizes = [8, 128], strides = [1, 1]} : vector<32x128xf32> to vector<8x128xf32>
    %111 = math.tanh %110 : vector<8x128xf32>
    %112 = vector.extract_strided_slice %97 {offsets = [24, 0], sizes = [8, 128], strides = [1, 1]} : vector<32x128xf32> to vector<8x128xf32>
    %113 = arith.negf %112 : vector<8x128xf32>
    %114 = math.exp %113 : vector<8x128xf32>
    %cst_43 = arith.constant 1.000000e+00 : f32
    %115 = vector.broadcast %cst_43 : f32 to vector<8x128xf32>
    %116 = arith.addf %115, %114 : vector<8x128xf32>
    %117 = arith.divf %115, %116 : vector<8x128xf32>
    %118 = arith.mulf %109, %68 : vector<8x128xf32>
    %119 = arith.mulf %103, %111 : vector<8x128xf32>
    %120 = arith.addf %118, %119 : vector<8x128xf32>
    %121 = math.tanh %120 : vector<8x128xf32>
    %122 = arith.mulf %117, %121 : vector<8x128xf32>
    %c0_44 = arith.constant 0 : index
    %c0_45 = arith.constant 0 : index
    %123 = vector.load %arg6[%c0_44, %c0_45] : memref<8x1024xf32, #tpu.memory_space<vmem>>, vector<8x128xf32>
    tpu.vector_store %arg6[%c0_44, %c0_45], %122 {strides = array<i32>} : memref<8x1024xf32, #tpu.memory_space<vmem>>, vector<8x128xf32>,
    %c9_i32_46 = arith.constant 9 : i32
    %124 = tpu.dynamic_rotate %122 by %c9_i32_46 dim 1 : vector<8x128xf32>, i32 -> vector<8x128xf32>
    %125 = vector.broadcast %22 : vector<1x128xf32> to vector<8x128xf32>
    %126 = arith.mulf %124, %125 : vector<8x128xf32>
    %c8_i32_47 = arith.constant 8 : i32
    %127 = tpu.dynamic_rotate %122 by %c8_i32_47 dim 1 : vector<8x128xf32>, i32 -> vector<8x128xf32>
    %128 = vector.broadcast %23 : vector<1x128xf32> to vector<8x128xf32>
    %129 = arith.mulf %127, %128 : vector<8x128xf32>
    %c7_i32_48 = arith.constant 7 : i32
    %130 = tpu.dynamic_rotate %122 by %c7_i32_48 dim 1 : vector<8x128xf32>, i32 -> vector<8x128xf32>
    %131 = vector.broadcast %24 : vector<1x128xf32> to vector<8x128xf32>
    %132 = arith.mulf %130, %131 : vector<8x128xf32>
    %c1_i32_49 = arith.constant 1 : i32
    %133 = tpu.dynamic_rotate %122 by %c1_i32_49 dim 1 : vector<8x128xf32>, i32 -> vector<8x128xf32>
    %134 = vector.broadcast %25 : vector<1x128xf32> to vector<8x128xf32>
    %135 = arith.mulf %133, %134 : vector<8x128xf32>
    %c127_i32_50 = arith.constant 127 : i32
    %136 = tpu.dynamic_rotate %122 by %c127_i32_50 dim 1 : vector<8x128xf32>, i32 -> vector<8x128xf32>
    %137 = vector.broadcast %26 : vector<1x128xf32> to vector<8x128xf32>
    %138 = arith.mulf %136, %137 : vector<8x128xf32>
    %c121_i32_51 = arith.constant 121 : i32
    %139 = tpu.dynamic_rotate %122 by %c121_i32_51 dim 1 : vector<8x128xf32>, i32 -> vector<8x128xf32>
    %140 = vector.broadcast %27 : vector<1x128xf32> to vector<8x128xf32>
    %141 = arith.mulf %139, %140 : vector<8x128xf32>
    %c120_i32_52 = arith.constant 120 : i32
    %142 = tpu.dynamic_rotate %122 by %c120_i32_52 dim 1 : vector<8x128xf32>, i32 -> vector<8x128xf32>
    %143 = vector.broadcast %28 : vector<1x128xf32> to vector<8x128xf32>
    %144 = arith.mulf %142, %143 : vector<8x128xf32>
    %c119_i32_53 = arith.constant 119 : i32
    %145 = tpu.dynamic_rotate %122 by %c119_i32_53 dim 1 : vector<8x128xf32>, i32 -> vector<8x128xf32>
    %146 = vector.broadcast %29 : vector<1x128xf32> to vector<8x128xf32>
    %147 = arith.mulf %145, %146 : vector<8x128xf32>
    %148 = tpu.concatenate %126, %129, %132, %135, %122, %138, %141, %144, %147 in 0 : vector<8x128xf32>, vector<8x128xf32>, vector<8x128xf32>, vector<8x128xf32>, vector<8x128xf32>, vector<8x128xf32>, vector<8x128xf32>, vector<8x128xf32>, vector<8x128xf32> -> vector<72x128xf32>
    %c0_54 = arith.constant 0 : index
    %c128 = arith.constant 128 : index
    %149 = vector.load %arg8[%c0_54, %c128] : memref<32x1024xf32, #tpu.memory_space<vmem>>, vector<32x128xf32>
    %150 = arith.truncf %148 : vector<72x128xf32> to vector<72x128xbf16>
    %cst_55 = arith.constant dense<0.000000e+00> : vector<32x128xf32>
    %151 = tpu.matmul %66, %150, %cst_55 {dimension_numbers = #tpu.dot_dimension_numbers<[1], [0], [0], [1], [0, 0, 1, 1], [], []>} : vector<32x72xbf16>, vector<72x128xbf16>, vector<32x128xf32> -> vector<32x128xf32>
    %152 = arith.addf %149, %151 : vector<32x128xf32>
    %153 = vector.extract_strided_slice %152 {offsets = [0, 0], sizes = [8, 128], strides = [1, 1]} : vector<32x128xf32> to vector<8x128xf32>
    %154 = arith.negf %153 : vector<8x128xf32>
    %155 = math.exp %154 : vector<8x128xf32>
    %cst_56 = arith.constant 1.000000e+00 : f32
    %156 = vector.broadcast %cst_56 : f32 to vector<8x128xf32>
    %157 = arith.addf %156, %155 : vector<8x128xf32>
    %158 = arith.divf %156, %157 : vector<8x128xf32>
    %159 = vector.extract_strided_slice %152 {offsets = [8, 0], sizes = [8, 128], strides = [1, 1]} : vector<32x128xf32> to vector<8x128xf32>
    %160 = arith.negf %159 : vector<8x128xf32>
    %161 = math.exp %160 : vector<8x128xf32>
    %cst_57 = arith.constant 1.000000e+00 : f32
    %162 = vector.broadcast %cst_57 : f32 to vector<8x128xf32>
    %163 = arith.addf %162, %161 : vector<8x128xf32>
    %164 = arith.divf %162, %163 : vector<8x128xf32>
    %165 = vector.extract_strided_slice %152 {offsets = [16, 0], sizes = [8, 128], strides = [1, 1]} : vector<32x128xf32> to vector<8x128xf32>
    %166 = math.tanh %165 : vector<8x128xf32>
    %167 = vector.extract_strided_slice %152 {offsets = [24, 0], sizes = [8, 128], strides = [1, 1]} : vector<32x128xf32> to vector<8x128xf32>
    %168 = arith.negf %167 : vector<8x128xf32>
    %169 = math.exp %168 : vector<8x128xf32>
    %cst_58 = arith.constant 1.000000e+00 : f32
    %170 = vector.broadcast %cst_58 : f32 to vector<8x128xf32>
    %171 = arith.addf %170, %169 : vector<8x128xf32>
    %172 = arith.divf %170, %171 : vector<8x128xf32>
    %173 = arith.mulf %164, %120 : vector<8x128xf32>
    %174 = arith.mulf %158, %166 : vector<8x128xf32>
    %175 = arith.addf %173, %174 : vector<8x128xf32>
    %176 = math.tanh %175 : vector<8x128xf32>
    %177 = arith.mulf %172, %176 : vector<8x128xf32>
    %c0_59 = arith.constant 0 : index
    %c128_60 = arith.constant 128 : index
    %178 = vector.load %arg6[%c0_59, %c128_60] : memref<8x1024xf32, #tpu.memory_space<vmem>>, vector<8x128xf32>
    tpu.vector_store %arg6[%c0_59, %c128_60], %177 {strides = array<i32>} : memref<8x1024xf32, #tpu.memory_space<vmem>>, vector<8x128xf32>,
    %c9_i32_61 = arith.constant 9 : i32
    %179 = tpu.dynamic_rotate %177 by %c9_i32_61 dim 1 : vector<8x128xf32>, i32 -> vector<8x128xf32>
    %180 = vector.broadcast %22 : vector<1x128xf32> to vector<8x128xf32>
    %181 = arith.mulf %179, %180 : vector<8x128xf32>
    %c8_i32_62 = arith.constant 8 : i32
    %182 = tpu.dynamic_rotate %177 by %c8_i32_62 dim 1 : vector<8x128xf32>, i32 -> vector<8x128xf32>
    %183 = vector.broadcast %23 : vector<1x128xf32> to vector<8x128xf32>
    %184 = arith.mulf %182, %183 : vector<8x128xf32>
    %c7_i32_63 = arith.constant 7 : i32
    %185 = tpu.dynamic_rotate %177 by %c7_i32_63 dim 1 : vector<8x128xf32>, i32 -> vector<8x128xf32>
    %186 = vector.broadcast %24 : vector<1x128xf32> to vector<8x128xf32>
    %187 = arith.mulf %185, %186 : vector<8x128xf32>
    %c1_i32_64 = arith.constant 1 : i32
    %188 = tpu.dynamic_rotate %177 by %c1_i32_64 dim 1 : vector<8x128xf32>, i32 -> vector<8x128xf32>
    %189 = vector.broadcast %25 : vector<1x128xf32> to vector<8x128xf32>
    %190 = arith.mulf %188, %189 : vector<8x128xf32>
    %c127_i32_65 = arith.constant 127 : i32
    %191 = tpu.dynamic_rotate %177 by %c127_i32_65 dim 1 : vector<8x128xf32>, i32 -> vector<8x128xf32>
    %192 = vector.broadcast %26 : vector<1x128xf32> to vector<8x128xf32>
    %193 = arith.mulf %191, %192 : vector<8x128xf32>
    %c121_i32_66 = arith.constant 121 : i32
    %194 = tpu.dynamic_rotate %177 by %c121_i32_66 dim 1 : vector<8x128xf32>, i32 -> vector<8x128xf32>
    %195 = vector.broadcast %27 : vector<1x128xf32> to vector<8x128xf32>
    %196 = arith.mulf %194, %195 : vector<8x128xf32>
    %c120_i32_67 = arith.constant 120 : i32
    %197 = tpu.dynamic_rotate %177 by %c120_i32_67 dim 1 : vector<8x128xf32>, i32 -> vector<8x128xf32>
    %198 = vector.broadcast %28 : vector<1x128xf32> to vector<8x128xf32>
    %199 = arith.mulf %197, %198 : vector<8x128xf32>
    %c119_i32_68 = arith.constant 119 : i32
    %200 = tpu.dynamic_rotate %177 by %c119_i32_68 dim 1 : vector<8x128xf32>, i32 -> vector<8x128xf32>
    %201 = vector.broadcast %29 : vector<1x128xf32> to vector<8x128xf32>
    %202 = arith.mulf %200, %201 : vector<8x128xf32>
    %203 = tpu.concatenate %181, %184, %187, %190, %177, %193, %196, %199, %202 in 0 : vector<8x128xf32>, vector<8x128xf32>, vector<8x128xf32>, vector<8x128xf32>, vector<8x128xf32>, vector<8x128xf32>, vector<8x128xf32>, vector<8x128xf32>, vector<8x128xf32> -> vector<72x128xf32>
    %c0_69 = arith.constant 0 : index
    %c256 = arith.constant 256 : index
    %204 = vector.load %arg8[%c0_69, %c256] : memref<32x1024xf32, #tpu.memory_space<vmem>>, vector<32x128xf32>
    %205 = arith.truncf %203 : vector<72x128xf32> to vector<72x128xbf16>
    %cst_70 = arith.constant dense<0.000000e+00> : vector<32x128xf32>
    %206 = tpu.matmul %66, %205, %cst_70 {dimension_numbers = #tpu.dot_dimension_numbers<[1], [0], [0], [1], [0, 0, 1, 1], [], []>} : vector<32x72xbf16>, vector<72x128xbf16>, vector<32x128xf32> -> vector<32x128xf32>
    %207 = arith.addf %204, %206 : vector<32x128xf32>
    %208 = vector.extract_strided_slice %207 {offsets = [0, 0], sizes = [8, 128], strides = [1, 1]} : vector<32x128xf32> to vector<8x128xf32>
    %209 = arith.negf %208 : vector<8x128xf32>
    %210 = math.exp %209 : vector<8x128xf32>
    %cst_71 = arith.constant 1.000000e+00 : f32
    %211 = vector.broadcast %cst_71 : f32 to vector<8x128xf32>
    %212 = arith.addf %211, %210 : vector<8x128xf32>
    %213 = arith.divf %211, %212 : vector<8x128xf32>
    %214 = vector.extract_strided_slice %207 {offsets = [8, 0], sizes = [8, 128], strides = [1, 1]} : vector<32x128xf32> to vector<8x128xf32>
    %215 = arith.negf %214 : vector<8x128xf32>
    %216 = math.exp %215 : vector<8x128xf32>
    %cst_72 = arith.constant 1.000000e+00 : f32
    %217 = vector.broadcast %cst_72 : f32 to vector<8x128xf32>
    %218 = arith.addf %217, %216 : vector<8x128xf32>
    %219 = arith.divf %217, %218 : vector<8x128xf32>
    %220 = vector.extract_strided_slice %207 {offsets = [16, 0], sizes = [8, 128], strides = [1, 1]} : vector<32x128xf32> to vector<8x128xf32>
    %221 = math.tanh %220 : vector<8x128xf32>
    %222 = vector.extract_strided_slice %207 {offsets = [24, 0], sizes = [8, 128], strides = [1, 1]} : vector<32x128xf32> to vector<8x128xf32>
    %223 = arith.negf %222 : vector<8x128xf32>
    %224 = math.exp %223 : vector<8x128xf32>
    %cst_73 = arith.constant 1.000000e+00 : f32
    %225 = vector.broadcast %cst_73 : f32 to vector<8x128xf32>
    %226 = arith.addf %225, %224 : vector<8x128xf32>
    %227 = arith.divf %225, %226 : vector<8x128xf32>
    %228 = arith.mulf %219, %175 : vector<8x128xf32>
    %229 = arith.mulf %213, %221 : vector<8x128xf32>
    %230 = arith.addf %228, %229 : vector<8x128xf32>
    %231 = math.tanh %230 : vector<8x128xf32>
    %232 = arith.mulf %227, %231 : vector<8x128xf32>
    %c0_74 = arith.constant 0 : index
    %c256_75 = arith.constant 256 : index
    %233 = vector.load %arg6[%c0_74, %c256_75] : memref<8x1024xf32, #tpu.memory_space<vmem>>, vector<8x128xf32>
    tpu.vector_store %arg6[%c0_74, %c256_75], %232 {strides = array<i32>} : memref<8x1024xf32, #tpu.memory_space<vmem>>, vector<8x128xf32>,
    %c9_i32_76 = arith.constant 9 : i32
    %234 = tpu.dynamic_rotate %232 by %c9_i32_76 dim 1 : vector<8x128xf32>, i32 -> vector<8x128xf32>
    %235 = vector.broadcast %22 : vector<1x128xf32> to vector<8x128xf32>
    %236 = arith.mulf %234, %235 : vector<8x128xf32>
    %c8_i32_77 = arith.constant 8 : i32
    %237 = tpu.dynamic_rotate %232 by %c8_i32_77 dim 1 : vector<8x128xf32>, i32 -> vector<8x128xf32>
    %238 = vector.broadcast %23 : vector<1x128xf32> to vector<8x128xf32>
    %239 = arith.mulf %237, %238 : vector<8x128xf32>
    %c7_i32_78 = arith.constant 7 : i32
    %240 = tpu.dynamic_rotate %232 by %c7_i32_78 dim 1 : vector<8x128xf32>, i32 -> vector<8x128xf32>
    %241 = vector.broadcast %24 : vector<1x128xf32> to vector<8x128xf32>
    %242 = arith.mulf %240, %241 : vector<8x128xf32>
    %c1_i32_79 = arith.constant 1 : i32
    %243 = tpu.dynamic_rotate %232 by %c1_i32_79 dim 1 : vector<8x128xf32>, i32 -> vector<8x128xf32>
    %244 = vector.broadcast %25 : vector<1x128xf32> to vector<8x128xf32>
    %245 = arith.mulf %243, %244 : vector<8x128xf32>
    %c127_i32_80 = arith.constant 127 : i32
    %246 = tpu.dynamic_rotate %232 by %c127_i32_80 dim 1 : vector<8x128xf32>, i32 -> vector<8x128xf32>
    %247 = vector.broadcast %26 : vector<1x128xf32> to vector<8x128xf32>
    %248 = arith.mulf %246, %247 : vector<8x128xf32>
    %c121_i32_81 = arith.constant 121 : i32
    %249 = tpu.dynamic_rotate %232 by %c121_i32_81 dim 1 : vector<8x128xf32>, i32 -> vector<8x128xf32>
    %250 = vector.broadcast %27 : vector<1x128xf32> to vector<8x128xf32>
    %251 = arith.mulf %249, %250 : vector<8x128xf32>
    %c120_i32_82 = arith.constant 120 : i32
    %252 = tpu.dynamic_rotate %232 by %c120_i32_82 dim 1 : vector<8x128xf32>, i32 -> vector<8x128xf32>
    %253 = vector.broadcast %28 : vector<1x128xf32> to vector<8x128xf32>
    %254 = arith.mulf %252, %253 : vector<8x128xf32>
    %c119_i32_83 = arith.constant 119 : i32
    %255 = tpu.dynamic_rotate %232 by %c119_i32_83 dim 1 : vector<8x128xf32>, i32 -> vector<8x128xf32>
    %256 = vector.broadcast %29 : vector<1x128xf32> to vector<8x128xf32>
    %257 = arith.mulf %255, %256 : vector<8x128xf32>
    %258 = tpu.concatenate %236, %239, %242, %245, %232, %248, %251, %254, %257 in 0 : vector<8x128xf32>, vector<8x128xf32>, vector<8x128xf32>, vector<8x128xf32>, vector<8x128xf32>, vector<8x128xf32>, vector<8x128xf32>, vector<8x128xf32>, vector<8x128xf32> -> vector<72x128xf32>
    %c0_84 = arith.constant 0 : index
    %c384 = arith.constant 384 : index
    %259 = vector.load %arg8[%c0_84, %c384] : memref<32x1024xf32, #tpu.memory_space<vmem>>, vector<32x128xf32>
    %260 = arith.truncf %258 : vector<72x128xf32> to vector<72x128xbf16>
    %cst_85 = arith.constant dense<0.000000e+00> : vector<32x128xf32>
    %261 = tpu.matmul %66, %260, %cst_85 {dimension_numbers = #tpu.dot_dimension_numbers<[1], [0], [0], [1], [0, 0, 1, 1], [], []>} : vector<32x72xbf16>, vector<72x128xbf16>, vector<32x128xf32> -> vector<32x128xf32>
    %262 = arith.addf %259, %261 : vector<32x128xf32>
    %263 = vector.extract_strided_slice %262 {offsets = [0, 0], sizes = [8, 128], strides = [1, 1]} : vector<32x128xf32> to vector<8x128xf32>
    %264 = arith.negf %263 : vector<8x128xf32>
    %265 = math.exp %264 : vector<8x128xf32>
    %cst_86 = arith.constant 1.000000e+00 : f32
    %266 = vector.broadcast %cst_86 : f32 to vector<8x128xf32>
    %267 = arith.addf %266, %265 : vector<8x128xf32>
    %268 = arith.divf %266, %267 : vector<8x128xf32>
    %269 = vector.extract_strided_slice %262 {offsets = [8, 0], sizes = [8, 128], strides = [1, 1]} : vector<32x128xf32> to vector<8x128xf32>
    %270 = arith.negf %269 : vector<8x128xf32>
    %271 = math.exp %270 : vector<8x128xf32>
    %cst_87 = arith.constant 1.000000e+00 : f32
    %272 = vector.broadcast %cst_87 : f32 to vector<8x128xf32>
    %273 = arith.addf %272, %271 : vector<8x128xf32>
    %274 = arith.divf %272, %273 : vector<8x128xf32>
    %275 = vector.extract_strided_slice %262 {offsets = [16, 0], sizes = [8, 128], strides = [1, 1]} : vector<32x128xf32> to vector<8x128xf32>
    %276 = math.tanh %275 : vector<8x128xf32>
    %277 = vector.extract_strided_slice %262 {offsets = [24, 0], sizes = [8, 128], strides = [1, 1]} : vector<32x128xf32> to vector<8x128xf32>
    %278 = arith.negf %277 : vector<8x128xf32>
    %279 = math.exp %278 : vector<8x128xf32>
    %cst_88 = arith.constant 1.000000e+00 : f32
    %280 = vector.broadcast %cst_88 : f32 to vector<8x128xf32>
    %281 = arith.addf %280, %279 : vector<8x128xf32>
    %282 = arith.divf %280, %281 : vector<8x128xf32>
    %283 = arith.mulf %274, %230 : vector<8x128xf32>
    %284 = arith.mulf %268, %276 : vector<8x128xf32>
    %285 = arith.addf %283, %284 : vector<8x128xf32>
    %286 = math.tanh %285 : vector<8x128xf32>
    %287 = arith.mulf %282, %286 : vector<8x128xf32>
    %c0_89 = arith.constant 0 : index
    %c384_90 = arith.constant 384 : index
    %288 = vector.load %arg6[%c0_89, %c384_90] : memref<8x1024xf32, #tpu.memory_space<vmem>>, vector<8x128xf32>
    tpu.vector_store %arg6[%c0_89, %c384_90], %287 {strides = array<i32>} : memref<8x1024xf32, #tpu.memory_space<vmem>>, vector<8x128xf32>,
    %c9_i32_91 = arith.constant 9 : i32
    %289 = tpu.dynamic_rotate %287 by %c9_i32_91 dim 1 : vector<8x128xf32>, i32 -> vector<8x128xf32>
    %290 = vector.broadcast %22 : vector<1x128xf32> to vector<8x128xf32>
    %291 = arith.mulf %289, %290 : vector<8x128xf32>
    %c8_i32_92 = arith.constant 8 : i32
    %292 = tpu.dynamic_rotate %287 by %c8_i32_92 dim 1 : vector<8x128xf32>, i32 -> vector<8x128xf32>
    %293 = vector.broadcast %23 : vector<1x128xf32> to vector<8x128xf32>
    %294 = arith.mulf %292, %293 : vector<8x128xf32>
    %c7_i32_93 = arith.constant 7 : i32
    %295 = tpu.dynamic_rotate %287 by %c7_i32_93 dim 1 : vector<8x128xf32>, i32 -> vector<8x128xf32>
    %296 = vector.broadcast %24 : vector<1x128xf32> to vector<8x128xf32>
    %297 = arith.mulf %295, %296 : vector<8x128xf32>
    %c1_i32_94 = arith.constant 1 : i32
    %298 = tpu.dynamic_rotate %287 by %c1_i32_94 dim 1 : vector<8x128xf32>, i32 -> vector<8x128xf32>
    %299 = vector.broadcast %25 : vector<1x128xf32> to vector<8x128xf32>
    %300 = arith.mulf %298, %299 : vector<8x128xf32>
    %c127_i32_95 = arith.constant 127 : i32
    %301 = tpu.dynamic_rotate %287 by %c127_i32_95 dim 1 : vector<8x128xf32>, i32 -> vector<8x128xf32>
    %302 = vector.broadcast %26 : vector<1x128xf32> to vector<8x128xf32>
    %303 = arith.mulf %301, %302 : vector<8x128xf32>
    %c121_i32_96 = arith.constant 121 : i32
    %304 = tpu.dynamic_rotate %287 by %c121_i32_96 dim 1 : vector<8x128xf32>, i32 -> vector<8x128xf32>
    %305 = vector.broadcast %27 : vector<1x128xf32> to vector<8x128xf32>
    %306 = arith.mulf %304, %305 : vector<8x128xf32>
    %c120_i32_97 = arith.constant 120 : i32
    %307 = tpu.dynamic_rotate %287 by %c120_i32_97 dim 1 : vector<8x128xf32>, i32 -> vector<8x128xf32>
    %308 = vector.broadcast %28 : vector<1x128xf32> to vector<8x128xf32>
    %309 = arith.mulf %307, %308 : vector<8x128xf32>
    %c119_i32_98 = arith.constant 119 : i32
    %310 = tpu.dynamic_rotate %287 by %c119_i32_98 dim 1 : vector<8x128xf32>, i32 -> vector<8x128xf32>
    %311 = vector.broadcast %29 : vector<1x128xf32> to vector<8x128xf32>
    %312 = arith.mulf %310, %311 : vector<8x128xf32>
    %313 = tpu.concatenate %291, %294, %297, %300, %287, %303, %306, %309, %312 in 0 : vector<8x128xf32>, vector<8x128xf32>, vector<8x128xf32>, vector<8x128xf32>, vector<8x128xf32>, vector<8x128xf32>, vector<8x128xf32>, vector<8x128xf32>, vector<8x128xf32> -> vector<72x128xf32>
    %c0_99 = arith.constant 0 : index
    %c512 = arith.constant 512 : index
    %314 = vector.load %arg8[%c0_99, %c512] : memref<32x1024xf32, #tpu.memory_space<vmem>>, vector<32x128xf32>
    %315 = arith.truncf %313 : vector<72x128xf32> to vector<72x128xbf16>
    %cst_100 = arith.constant dense<0.000000e+00> : vector<32x128xf32>
    %316 = tpu.matmul %66, %315, %cst_100 {dimension_numbers = #tpu.dot_dimension_numbers<[1], [0], [0], [1], [0, 0, 1, 1], [], []>} : vector<32x72xbf16>, vector<72x128xbf16>, vector<32x128xf32> -> vector<32x128xf32>
    %317 = arith.addf %314, %316 : vector<32x128xf32>
    %318 = vector.extract_strided_slice %317 {offsets = [0, 0], sizes = [8, 128], strides = [1, 1]} : vector<32x128xf32> to vector<8x128xf32>
    %319 = arith.negf %318 : vector<8x128xf32>
    %320 = math.exp %319 : vector<8x128xf32>
    %cst_101 = arith.constant 1.000000e+00 : f32
    %321 = vector.broadcast %cst_101 : f32 to vector<8x128xf32>
    %322 = arith.addf %321, %320 : vector<8x128xf32>
    %323 = arith.divf %321, %322 : vector<8x128xf32>
    %324 = vector.extract_strided_slice %317 {offsets = [8, 0], sizes = [8, 128], strides = [1, 1]} : vector<32x128xf32> to vector<8x128xf32>
    %325 = arith.negf %324 : vector<8x128xf32>
    %326 = math.exp %325 : vector<8x128xf32>
    %cst_102 = arith.constant 1.000000e+00 : f32
    %327 = vector.broadcast %cst_102 : f32 to vector<8x128xf32>
    %328 = arith.addf %327, %326 : vector<8x128xf32>
    %329 = arith.divf %327, %328 : vector<8x128xf32>
    %330 = vector.extract_strided_slice %317 {offsets = [16, 0], sizes = [8, 128], strides = [1, 1]} : vector<32x128xf32> to vector<8x128xf32>
    %331 = math.tanh %330 : vector<8x128xf32>
    %332 = vector.extract_strided_slice %317 {offsets = [24, 0], sizes = [8, 128], strides = [1, 1]} : vector<32x128xf32> to vector<8x128xf32>
    %333 = arith.negf %332 : vector<8x128xf32>
    %334 = math.exp %333 : vector<8x128xf32>
    %cst_103 = arith.constant 1.000000e+00 : f32
    %335 = vector.broadcast %cst_103 : f32 to vector<8x128xf32>
    %336 = arith.addf %335, %334 : vector<8x128xf32>
    %337 = arith.divf %335, %336 : vector<8x128xf32>
    %338 = arith.mulf %329, %285 : vector<8x128xf32>
    %339 = arith.mulf %323, %331 : vector<8x128xf32>
    %340 = arith.addf %338, %339 : vector<8x128xf32>
    %341 = math.tanh %340 : vector<8x128xf32>
    %342 = arith.mulf %337, %341 : vector<8x128xf32>
    %c0_104 = arith.constant 0 : index
    %c512_105 = arith.constant 512 : index
    %343 = vector.load %arg6[%c0_104, %c512_105] : memref<8x1024xf32, #tpu.memory_space<vmem>>, vector<8x128xf32>
    tpu.vector_store %arg6[%c0_104, %c512_105], %342 {strides = array<i32>} : memref<8x1024xf32, #tpu.memory_space<vmem>>, vector<8x128xf32>,
    %c9_i32_106 = arith.constant 9 : i32
    %344 = tpu.dynamic_rotate %342 by %c9_i32_106 dim 1 : vector<8x128xf32>, i32 -> vector<8x128xf32>
    %345 = vector.broadcast %22 : vector<1x128xf32> to vector<8x128xf32>
    %346 = arith.mulf %344, %345 : vector<8x128xf32>
    %c8_i32_107 = arith.constant 8 : i32
    %347 = tpu.dynamic_rotate %342 by %c8_i32_107 dim 1 : vector<8x128xf32>, i32 -> vector<8x128xf32>
    %348 = vector.broadcast %23 : vector<1x128xf32> to vector<8x128xf32>
    %349 = arith.mulf %347, %348 : vector<8x128xf32>
    %c7_i32_108 = arith.constant 7 : i32
    %350 = tpu.dynamic_rotate %342 by %c7_i32_108 dim 1 : vector<8x128xf32>, i32 -> vector<8x128xf32>
    %351 = vector.broadcast %24 : vector<1x128xf32> to vector<8x128xf32>
    %352 = arith.mulf %350, %351 : vector<8x128xf32>
    %c1_i32_109 = arith.constant 1 : i32
    %353 = tpu.dynamic_rotate %342 by %c1_i32_109 dim 1 : vector<8x128xf32>, i32 -> vector<8x128xf32>
    %354 = vector.broadcast %25 : vector<1x128xf32> to vector<8x128xf32>
    %355 = arith.mulf %353, %354 : vector<8x128xf32>
    %c127_i32_110 = arith.constant 127 : i32
    %356 = tpu.dynamic_rotate %342 by %c127_i32_110 dim 1 : vector<8x128xf32>, i32 -> vector<8x128xf32>
    %357 = vector.broadcast %26 : vector<1x128xf32> to vector<8x128xf32>
    %358 = arith.mulf %356, %357 : vector<8x128xf32>
    %c121_i32_111 = arith.constant 121 : i32
    %359 = tpu.dynamic_rotate %342 by %c121_i32_111 dim 1 : vector<8x128xf32>, i32 -> vector<8x128xf32>
    %360 = vector.broadcast %27 : vector<1x128xf32> to vector<8x128xf32>
    %361 = arith.mulf %359, %360 : vector<8x128xf32>
    %c120_i32_112 = arith.constant 120 : i32
    %362 = tpu.dynamic_rotate %342 by %c120_i32_112 dim 1 : vector<8x128xf32>, i32 -> vector<8x128xf32>
    %363 = vector.broadcast %28 : vector<1x128xf32> to vector<8x128xf32>
    %364 = arith.mulf %362, %363 : vector<8x128xf32>
    %c119_i32_113 = arith.constant 119 : i32
    %365 = tpu.dynamic_rotate %342 by %c119_i32_113 dim 1 : vector<8x128xf32>, i32 -> vector<8x128xf32>
    %366 = vector.broadcast %29 : vector<1x128xf32> to vector<8x128xf32>
    %367 = arith.mulf %365, %366 : vector<8x128xf32>
    %368 = tpu.concatenate %346, %349, %352, %355, %342, %358, %361, %364, %367 in 0 : vector<8x128xf32>, vector<8x128xf32>, vector<8x128xf32>, vector<8x128xf32>, vector<8x128xf32>, vector<8x128xf32>, vector<8x128xf32>, vector<8x128xf32>, vector<8x128xf32> -> vector<72x128xf32>
    %c0_114 = arith.constant 0 : index
    %c640 = arith.constant 640 : index
    %369 = vector.load %arg8[%c0_114, %c640] : memref<32x1024xf32, #tpu.memory_space<vmem>>, vector<32x128xf32>
    %370 = arith.truncf %368 : vector<72x128xf32> to vector<72x128xbf16>
    %cst_115 = arith.constant dense<0.000000e+00> : vector<32x128xf32>
    %371 = tpu.matmul %66, %370, %cst_115 {dimension_numbers = #tpu.dot_dimension_numbers<[1], [0], [0], [1], [0, 0, 1, 1], [], []>} : vector<32x72xbf16>, vector<72x128xbf16>, vector<32x128xf32> -> vector<32x128xf32>
    %372 = arith.addf %369, %371 : vector<32x128xf32>
    %373 = vector.extract_strided_slice %372 {offsets = [0, 0], sizes = [8, 128], strides = [1, 1]} : vector<32x128xf32> to vector<8x128xf32>
    %374 = arith.negf %373 : vector<8x128xf32>
    %375 = math.exp %374 : vector<8x128xf32>
    %cst_116 = arith.constant 1.000000e+00 : f32
    %376 = vector.broadcast %cst_116 : f32 to vector<8x128xf32>
    %377 = arith.addf %376, %375 : vector<8x128xf32>
    %378 = arith.divf %376, %377 : vector<8x128xf32>
    %379 = vector.extract_strided_slice %372 {offsets = [8, 0], sizes = [8, 128], strides = [1, 1]} : vector<32x128xf32> to vector<8x128xf32>
    %380 = arith.negf %379 : vector<8x128xf32>
    %381 = math.exp %380 : vector<8x128xf32>
    %cst_117 = arith.constant 1.000000e+00 : f32
    %382 = vector.broadcast %cst_117 : f32 to vector<8x128xf32>
    %383 = arith.addf %382, %381 : vector<8x128xf32>
    %384 = arith.divf %382, %383 : vector<8x128xf32>
    %385 = vector.extract_strided_slice %372 {offsets = [16, 0], sizes = [8, 128], strides = [1, 1]} : vector<32x128xf32> to vector<8x128xf32>
    %386 = math.tanh %385 : vector<8x128xf32>
    %387 = vector.extract_strided_slice %372 {offsets = [24, 0], sizes = [8, 128], strides = [1, 1]} : vector<32x128xf32> to vector<8x128xf32>
    %388 = arith.negf %387 : vector<8x128xf32>
    %389 = math.exp %388 : vector<8x128xf32>
    %cst_118 = arith.constant 1.000000e+00 : f32
    %390 = vector.broadcast %cst_118 : f32 to vector<8x128xf32>
    %391 = arith.addf %390, %389 : vector<8x128xf32>
    %392 = arith.divf %390, %391 : vector<8x128xf32>
    %393 = arith.mulf %384, %340 : vector<8x128xf32>
    %394 = arith.mulf %378, %386 : vector<8x128xf32>
    %395 = arith.addf %393, %394 : vector<8x128xf32>
    %396 = math.tanh %395 : vector<8x128xf32>
    %397 = arith.mulf %392, %396 : vector<8x128xf32>
    %c0_119 = arith.constant 0 : index
    %c640_120 = arith.constant 640 : index
    %398 = vector.load %arg6[%c0_119, %c640_120] : memref<8x1024xf32, #tpu.memory_space<vmem>>, vector<8x128xf32>
    tpu.vector_store %arg6[%c0_119, %c640_120], %397 {strides = array<i32>} : memref<8x1024xf32, #tpu.memory_space<vmem>>, vector<8x128xf32>,
    %c9_i32_121 = arith.constant 9 : i32
    %399 = tpu.dynamic_rotate %397 by %c9_i32_121 dim 1 : vector<8x128xf32>, i32 -> vector<8x128xf32>
    %400 = vector.broadcast %22 : vector<1x128xf32> to vector<8x128xf32>
    %401 = arith.mulf %399, %400 : vector<8x128xf32>
    %c8_i32_122 = arith.constant 8 : i32
    %402 = tpu.dynamic_rotate %397 by %c8_i32_122 dim 1 : vector<8x128xf32>, i32 -> vector<8x128xf32>
    %403 = vector.broadcast %23 : vector<1x128xf32> to vector<8x128xf32>
    %404 = arith.mulf %402, %403 : vector<8x128xf32>
    %c7_i32_123 = arith.constant 7 : i32
    %405 = tpu.dynamic_rotate %397 by %c7_i32_123 dim 1 : vector<8x128xf32>, i32 -> vector<8x128xf32>
    %406 = vector.broadcast %24 : vector<1x128xf32> to vector<8x128xf32>
    %407 = arith.mulf %405, %406 : vector<8x128xf32>
    %c1_i32_124 = arith.constant 1 : i32
    %408 = tpu.dynamic_rotate %397 by %c1_i32_124 dim 1 : vector<8x128xf32>, i32 -> vector<8x128xf32>
    %409 = vector.broadcast %25 : vector<1x128xf32> to vector<8x128xf32>
    %410 = arith.mulf %408, %409 : vector<8x128xf32>
    %c127_i32_125 = arith.constant 127 : i32
    %411 = tpu.dynamic_rotate %397 by %c127_i32_125 dim 1 : vector<8x128xf32>, i32 -> vector<8x128xf32>
    %412 = vector.broadcast %26 : vector<1x128xf32> to vector<8x128xf32>
    %413 = arith.mulf %411, %412 : vector<8x128xf32>
    %c121_i32_126 = arith.constant 121 : i32
    %414 = tpu.dynamic_rotate %397 by %c121_i32_126 dim 1 : vector<8x128xf32>, i32 -> vector<8x128xf32>
    %415 = vector.broadcast %27 : vector<1x128xf32> to vector<8x128xf32>
    %416 = arith.mulf %414, %415 : vector<8x128xf32>
    %c120_i32_127 = arith.constant 120 : i32
    %417 = tpu.dynamic_rotate %397 by %c120_i32_127 dim 1 : vector<8x128xf32>, i32 -> vector<8x128xf32>
    %418 = vector.broadcast %28 : vector<1x128xf32> to vector<8x128xf32>
    %419 = arith.mulf %417, %418 : vector<8x128xf32>
    %c119_i32_128 = arith.constant 119 : i32
    %420 = tpu.dynamic_rotate %397 by %c119_i32_128 dim 1 : vector<8x128xf32>, i32 -> vector<8x128xf32>
    %421 = vector.broadcast %29 : vector<1x128xf32> to vector<8x128xf32>
    %422 = arith.mulf %420, %421 : vector<8x128xf32>
    %423 = tpu.concatenate %401, %404, %407, %410, %397, %413, %416, %419, %422 in 0 : vector<8x128xf32>, vector<8x128xf32>, vector<8x128xf32>, vector<8x128xf32>, vector<8x128xf32>, vector<8x128xf32>, vector<8x128xf32>, vector<8x128xf32>, vector<8x128xf32> -> vector<72x128xf32>
    %c0_129 = arith.constant 0 : index
    %c768 = arith.constant 768 : index
    %424 = vector.load %arg8[%c0_129, %c768] : memref<32x1024xf32, #tpu.memory_space<vmem>>, vector<32x128xf32>
    %425 = arith.truncf %423 : vector<72x128xf32> to vector<72x128xbf16>
    %cst_130 = arith.constant dense<0.000000e+00> : vector<32x128xf32>
    %426 = tpu.matmul %66, %425, %cst_130 {dimension_numbers = #tpu.dot_dimension_numbers<[1], [0], [0], [1], [0, 0, 1, 1], [], []>} : vector<32x72xbf16>, vector<72x128xbf16>, vector<32x128xf32> -> vector<32x128xf32>
    %427 = arith.addf %424, %426 : vector<32x128xf32>
    %428 = vector.extract_strided_slice %427 {offsets = [0, 0], sizes = [8, 128], strides = [1, 1]} : vector<32x128xf32> to vector<8x128xf32>
    %429 = arith.negf %428 : vector<8x128xf32>
    %430 = math.exp %429 : vector<8x128xf32>
    %cst_131 = arith.constant 1.000000e+00 : f32
    %431 = vector.broadcast %cst_131 : f32 to vector<8x128xf32>
    %432 = arith.addf %431, %430 : vector<8x128xf32>
    %433 = arith.divf %431, %432 : vector<8x128xf32>
    %434 = vector.extract_strided_slice %427 {offsets = [8, 0], sizes = [8, 128], strides = [1, 1]} : vector<32x128xf32> to vector<8x128xf32>
    %435 = arith.negf %434 : vector<8x128xf32>
    %436 = math.exp %435 : vector<8x128xf32>
    %cst_132 = arith.constant 1.000000e+00 : f32
    %437 = vector.broadcast %cst_132 : f32 to vector<8x128xf32>
    %438 = arith.addf %437, %436 : vector<8x128xf32>
    %439 = arith.divf %437, %438 : vector<8x128xf32>
    %440 = vector.extract_strided_slice %427 {offsets = [16, 0], sizes = [8, 128], strides = [1, 1]} : vector<32x128xf32> to vector<8x128xf32>
    %441 = math.tanh %440 : vector<8x128xf32>
    %442 = vector.extract_strided_slice %427 {offsets = [24, 0], sizes = [8, 128], strides = [1, 1]} : vector<32x128xf32> to vector<8x128xf32>
    %443 = arith.negf %442 : vector<8x128xf32>
    %444 = math.exp %443 : vector<8x128xf32>
    %cst_133 = arith.constant 1.000000e+00 : f32
    %445 = vector.broadcast %cst_133 : f32 to vector<8x128xf32>
    %446 = arith.addf %445, %444 : vector<8x128xf32>
    %447 = arith.divf %445, %446 : vector<8x128xf32>
    %448 = arith.mulf %439, %395 : vector<8x128xf32>
    %449 = arith.mulf %433, %441 : vector<8x128xf32>
    %450 = arith.addf %448, %449 : vector<8x128xf32>
    %451 = math.tanh %450 : vector<8x128xf32>
    %452 = arith.mulf %447, %451 : vector<8x128xf32>
    %c0_134 = arith.constant 0 : index
    %c768_135 = arith.constant 768 : index
    %453 = vector.load %arg6[%c0_134, %c768_135] : memref<8x1024xf32, #tpu.memory_space<vmem>>, vector<8x128xf32>
    tpu.vector_store %arg6[%c0_134, %c768_135], %452 {strides = array<i32>} : memref<8x1024xf32, #tpu.memory_space<vmem>>, vector<8x128xf32>,
    %c9_i32_136 = arith.constant 9 : i32
    %454 = tpu.dynamic_rotate %452 by %c9_i32_136 dim 1 : vector<8x128xf32>, i32 -> vector<8x128xf32>
    %455 = vector.broadcast %22 : vector<1x128xf32> to vector<8x128xf32>
    %456 = arith.mulf %454, %455 : vector<8x128xf32>
    %c8_i32_137 = arith.constant 8 : i32
    %457 = tpu.dynamic_rotate %452 by %c8_i32_137 dim 1 : vector<8x128xf32>, i32 -> vector<8x128xf32>
    %458 = vector.broadcast %23 : vector<1x128xf32> to vector<8x128xf32>
    %459 = arith.mulf %457, %458 : vector<8x128xf32>
    %c7_i32_138 = arith.constant 7 : i32
    %460 = tpu.dynamic_rotate %452 by %c7_i32_138 dim 1 : vector<8x128xf32>, i32 -> vector<8x128xf32>
    %461 = vector.broadcast %24 : vector<1x128xf32> to vector<8x128xf32>
    %462 = arith.mulf %460, %461 : vector<8x128xf32>
    %c1_i32_139 = arith.constant 1 : i32
    %463 = tpu.dynamic_rotate %452 by %c1_i32_139 dim 1 : vector<8x128xf32>, i32 -> vector<8x128xf32>
    %464 = vector.broadcast %25 : vector<1x128xf32> to vector<8x128xf32>
    %465 = arith.mulf %463, %464 : vector<8x128xf32>
    %c127_i32_140 = arith.constant 127 : i32
    %466 = tpu.dynamic_rotate %452 by %c127_i32_140 dim 1 : vector<8x128xf32>, i32 -> vector<8x128xf32>
    %467 = vector.broadcast %26 : vector<1x128xf32> to vector<8x128xf32>
    %468 = arith.mulf %466, %467 : vector<8x128xf32>
    %c121_i32_141 = arith.constant 121 : i32
    %469 = tpu.dynamic_rotate %452 by %c121_i32_141 dim 1 : vector<8x128xf32>, i32 -> vector<8x128xf32>
    %470 = vector.broadcast %27 : vector<1x128xf32> to vector<8x128xf32>
    %471 = arith.mulf %469, %470 : vector<8x128xf32>
    %c120_i32_142 = arith.constant 120 : i32
    %472 = tpu.dynamic_rotate %452 by %c120_i32_142 dim 1 : vector<8x128xf32>, i32 -> vector<8x128xf32>
    %473 = vector.broadcast %28 : vector<1x128xf32> to vector<8x128xf32>
    %474 = arith.mulf %472, %473 : vector<8x128xf32>
    %c119_i32_143 = arith.constant 119 : i32
    %475 = tpu.dynamic_rotate %452 by %c119_i32_143 dim 1 : vector<8x128xf32>, i32 -> vector<8x128xf32>
    %476 = vector.broadcast %29 : vector<1x128xf32> to vector<8x128xf32>
    %477 = arith.mulf %475, %476 : vector<8x128xf32>
    %478 = tpu.concatenate %456, %459, %462, %465, %452, %468, %471, %474, %477 in 0 : vector<8x128xf32>, vector<8x128xf32>, vector<8x128xf32>, vector<8x128xf32>, vector<8x128xf32>, vector<8x128xf32>, vector<8x128xf32>, vector<8x128xf32>, vector<8x128xf32> -> vector<72x128xf32>
    %c0_144 = arith.constant 0 : index
    %c896 = arith.constant 896 : index
    %479 = vector.load %arg8[%c0_144, %c896] : memref<32x1024xf32, #tpu.memory_space<vmem>>, vector<32x128xf32>
    %480 = arith.truncf %478 : vector<72x128xf32> to vector<72x128xbf16>
    %cst_145 = arith.constant dense<0.000000e+00> : vector<32x128xf32>
    %481 = tpu.matmul %66, %480, %cst_145 {dimension_numbers = #tpu.dot_dimension_numbers<[1], [0], [0], [1], [0, 0, 1, 1], [], []>} : vector<32x72xbf16>, vector<72x128xbf16>, vector<32x128xf32> -> vector<32x128xf32>
    %482 = arith.addf %479, %481 : vector<32x128xf32>
    %483 = vector.extract_strided_slice %482 {offsets = [0, 0], sizes = [8, 128], strides = [1, 1]} : vector<32x128xf32> to vector<8x128xf32>
    %484 = arith.negf %483 : vector<8x128xf32>
    %485 = math.exp %484 : vector<8x128xf32>
    %cst_146 = arith.constant 1.000000e+00 : f32
    %486 = vector.broadcast %cst_146 : f32 to vector<8x128xf32>
    %487 = arith.addf %486, %485 : vector<8x128xf32>
    %488 = arith.divf %486, %487 : vector<8x128xf32>
    %489 = vector.extract_strided_slice %482 {offsets = [8, 0], sizes = [8, 128], strides = [1, 1]} : vector<32x128xf32> to vector<8x128xf32>
    %490 = arith.negf %489 : vector<8x128xf32>
    %491 = math.exp %490 : vector<8x128xf32>
    %cst_147 = arith.constant 1.000000e+00 : f32
    %492 = vector.broadcast %cst_147 : f32 to vector<8x128xf32>
    %493 = arith.addf %492, %491 : vector<8x128xf32>
    %494 = arith.divf %492, %493 : vector<8x128xf32>
    %495 = vector.extract_strided_slice %482 {offsets = [16, 0], sizes = [8, 128], strides = [1, 1]} : vector<32x128xf32> to vector<8x128xf32>
    %496 = math.tanh %495 : vector<8x128xf32>
    %497 = vector.extract_strided_slice %482 {offsets = [24, 0], sizes = [8, 128], strides = [1, 1]} : vector<32x128xf32> to vector<8x128xf32>
    %498 = arith.negf %497 : vector<8x128xf32>
    %499 = math.exp %498 : vector<8x128xf32>
    %cst_148 = arith.constant 1.000000e+00 : f32
    %500 = vector.broadcast %cst_148 : f32 to vector<8x128xf32>
    %501 = arith.addf %500, %499 : vector<8x128xf32>
    %502 = arith.divf %500, %501 : vector<8x128xf32>
    %503 = arith.mulf %494, %450 : vector<8x128xf32>
    %504 = arith.mulf %488, %496 : vector<8x128xf32>
    %505 = arith.addf %503, %504 : vector<8x128xf32>
    %506 = math.tanh %505 : vector<8x128xf32>
    %507 = arith.mulf %502, %506 : vector<8x128xf32>
    %c0_149 = arith.constant 0 : index
    %c896_150 = arith.constant 896 : index
    %508 = vector.load %arg6[%c0_149, %c896_150] : memref<8x1024xf32, #tpu.memory_space<vmem>>, vector<8x128xf32>
    tpu.vector_store %arg6[%c0_149, %c896_150], %507 {strides = array<i32>} : memref<8x1024xf32, #tpu.memory_space<vmem>>, vector<8x128xf32>,
    return
  }
  func.func @transform_0(%arg0: i32) -> (i32, i32) {
    %c0_i32 = arith.constant 0 : i32
    %c0_i32_0 = arith.constant 0 : i32
    %c0_i32_1 = arith.constant 0 : i32
    return %c0_i32, %c0_i32_0 : i32, i32
  }
  func.func @transform_1(%arg0: i32) -> (i32, i32, i32) {
    %c0_i32 = arith.constant 0 : i32
    %c0_i32_0 = arith.constant 0 : i32
    %c0_i32_1 = arith.constant 0 : i32
    return %arg0, %c0_i32, %c0_i32_0 : i32, i32, i32
  }
  func.func @transform_2(%arg0: i32) -> (i32, i32, i32) {
    %c0_i32 = arith.constant 0 : i32
    %c0_i32_0 = arith.constant 0 : i32
    %c0_i32_1 = arith.constant 0 : i32
    return %arg0, %c0_i32, %c0_i32_0 : i32, i32, i32
  }
  func.func @transform_3(%arg0: i32) -> (i32, i32, i32) {
    %c0_i32 = arith.constant 0 : i32
    %c0_i32_0 = arith.constant 0 : i32
    %c0_i32_1 = arith.constant 0 : i32
    return %arg0, %c0_i32, %c0_i32_0 : i32, i32, i32
  }
  func.func @transform_4(%arg0: i32) -> (i32, i32, i32) {
    %c0_i32 = arith.constant 0 : i32
    %c0_i32_0 = arith.constant 0 : i32
    %c0_i32_1 = arith.constant 0 : i32
    %c0_i32_2 = arith.constant 0 : i32
    return %c0_i32, %c0_i32_0, %c0_i32_1 : i32, i32, i32
  }
  func.func @transform_5(%arg0: i32) -> (i32, i32) {
    %c0_i32 = arith.constant 0 : i32
    %c0_i32_0 = arith.constant 0 : i32
    %c0_i32_1 = arith.constant 0 : i32
    return %c0_i32, %c0_i32_0 : i32, i32
  }
}

</mosaic_0001>

<llo_original>
// kernel: tpu_custom_call.1
$region0: #{tpu_custom_call.1}
  #allocation0 [shape = 'u32[]', space=smem, size = 0x4, offset = 0x4, fixed_abs, tag = 'smem constant byte address 0x4 - core index']
  #allocation1 [shape = 'u32[144,128]{1,0:T(1,128)}', space=vmem, size = 0x12000, scoped, tag = 'internal scratch']
  #allocation2 [shape = 'f32[8,1024]{1,0:T(8,128)}', space=vmem, size = 0x8000, scoped, tag = 'scratch operand']
  #allocation3 [shape = 'f32[32,1024]{1,0:T(8,128)}', space=vmem, size = 0x20000, scoped, tag = 'scratch operand']
  %s0 = inlined_call_operand.hbm [shape: f32[8,1024], index: 0, kind: input, shape index: {}]
  %s1 = inlined_call_operand.hbm [shape: bf16[2,32,72], index: 1, kind: input, shape index: {}]
  %s2 = inlined_call_operand.hbm [shape: bf16[2,32,72], index: 2, kind: input, shape index: {}]
  %s3 = inlined_call_operand.vmem [shape: f32[2,32,1], index: 3, kind: input, shape index: {}]
  %s4 = inlined_call_operand.vmem [shape: f32[9,1,1024], index: 4, kind: input, shape index: {}]
  %s5 = inlined_call_operand.hbm [shape: f32[8,1024], index: 5, kind: output, shape index: {}]
  %s6 = sld [smem:[#allocation0]]
  $region73: #{tpu_custom_call.1} parent=0
    _
  %s8 = ssub.s32 1, %s6
  %s9 = scalar_select 0, %s8, %s6
  $region1: #{tpu_custom_call.1} parent=0
    #allocation4 [shape = 'u8[32768]{0}', space=vmem, size = 0x8000, scoped, tag = 'input window, operand 0, single buffered']
    #allocation5 [shape = 's32[2]{0}', space=sflag, size = 0x8, scoped, tag = 'scoped memory for tpu_custom_call.1']
    #allocation6 [shape = 's32[2]{0}', space=sflag, size = 0x8, scoped, tag = 'scoped memory for tpu_custom_call.1']
    #allocation7 [shape = 'u8[16384]{0}', space=vmem, size = 0x4000, scoped, tag = 'input window, operand 1']
    #allocation8 [shape = 's32[2]{0}', space=sflag, size = 0x8, scoped, tag = 'scoped memory for tpu_custom_call.1']
    #allocation9 [shape = 'u8[16384]{0}', space=vmem, size = 0x4000, scoped, tag = 'input window, operand 2']
    #allocation10 [shape = 'u8[32768]{0}', space=vmem, size = 0x8000, scoped, tag = 'output window, operand 0, single buffered']
    %10 = vsyncpa [#allocation5], 0
    %11 = vsyncpa [#allocation8], 0
    %s12 = scalar_lea.sflag [#allocation8], 1
    %13 = vsyncpa %s12, 0
    %14 = vsyncpa [#allocation6], 0
    loop: start=0, step=1, limit=4
    $region2: #{tpu_custom_call.1} parent=1 // loop_pre_header
      _
    $region3: #{tpu_custom_call.1} parent=1 // loop_header
      %s16 = sphi 0, %s20
      %p17 = scmp.ge.s32.totalorder %s16, 4
      %s24 = sphi 0, %s24
      %s26 = sphi 0, %s24
      %s27 = sphi 0, %s26
      %s41 = sphi 0, %s27
      %s47 = sphi 0, %s49
      %s50 = sphi 0, %s47
      %s51 = sphi 0, %s50
      %s67 = sphi 0, %s51
      %s73 = sphi 0, %s75
      %s76 = sphi 0, %s73
      %s77 = sphi 0, %s76
      %s93 = sphi 0, %s77
      %s99 = sphi 0, %s101
      %s102 = sphi 0, %s99
      %s103 = sphi 0, %s102
      %s119 = sphi 0, %s103
      %s123 = sphi 0, %s123
      %s125 = sphi 0, %s123
      %s126 = sphi 0, %s125
      %s140 = sphi 0, %s126
      %s144 = sphi 0, %s144
      %s146 = sphi 0, %s144
      %s147 = sphi 0, %s146
      %s161 = sphi 0, %s147
    $region4: #{tpu_custom_call.1} parent=1 // loop_header_branch
      %19 = sbr.rel (%p17) target = $region8
    $region5: #{tpu_custom_call.1} parent=1 // loop_body
      %s21 = ssub.s32 %s16, 1
      %s22 = ssub.s32 %s16, 2
      %s23 = sadd.s32 %s16, 1
      %s25 = sadd.s32 %s24, 1
      %p28 = scmp.eq.s32.totalorder %s16, 1
      %p29 = scmp.ne.s32.totalorder %s24, %s26
      %p30 = scmp.eq.s32.totalorder %s16, 0
      %p31 = por %p29, %p30
      %p32 = scmp.ne.s32.totalorder %s24, %s26
      %p33 = scmp.eq.s32.totalorder %s21, 1
      %p34 = por %p32, %p33
      %p35 = scmp.ne.s32.totalorder %s26, %s27
      %p36 = scmp.eq.s32.totalorder %s21, 0
      %p37 = por %p35, %p36
      %p38 = scmp.ne.s32.totalorder %s26, %s27
      %p39 = scmp.eq.s32.totalorder %s22, 1
      %p40 = por %p38, %p39
      %p42 = scmp.ne.s32.totalorder %s27, %s41
      %p43 = scmp.eq.s32.totalorder %s22, 0
      %p44 = por %p42, %p43
      %s45 = ssub.s32 %s16, %s23
      %p46 = scmp.eq.s32.totalorder %s45, 0
      %s48 = sadd.s32 %s47, 1
      %s49 = scalar_select %p46, %s47, %s48
      %p52 = pneg %p46
      %p53 = scmp.eq.s32.totalorder %s16, 1
      %p54 = por %p52, %p53
      %p55 = scmp.ne.s32.totalorder %s47, %s50
      %p56 = scmp.eq.s32.totalorder %s16, 0
      %p57 = por %p55, %p56
      %p58 = scmp.ne.s32.totalorder %s47, %s50
      %p59 = scmp.eq.s32.totalorder %s21, 1
      %p60 = por %p58, %p59
      %p61 = scmp.ne.s32.totalorder %s50, %s51
      %p62 = scmp.eq.s32.totalorder %s21, 0
      %p63 = por %p61, %p62
      %p64 = scmp.ne.s32.totalorder %s50, %s51
      %p65 = scmp.eq.s32.totalorder %s22, 1
      %p66 = por %p64, %p65
      %p68 = scmp.ne.s32.totalorder %s51, %s67
      %p69 = scmp.eq.s32.totalorder %s22, 0
      %p70 = por %p68, %p69
      %s71 = ssub.s32 %s16, %s23
      %p72 = scmp.eq.s32.totalorder %s71, 0
      %s74 = sadd.s32 %s73, 1
      %s75 = scalar_select %p72, %s73, %s74
      %p78 = pneg %p72
      %p79 = scmp.eq.s32.totalorder %s16, 1
      %p80 = por %p78, %p79
      %p81 = scmp.ne.s32.totalorder %s73, %s76
      %p82 = scmp.eq.s32.totalorder %s16, 0
      %p83 = por %p81, %p82
      %p84 = scmp.ne.s32.totalorder %s73, %s76
      %p85 = scmp.eq.s32.totalorder %s21, 1
      %p86 = por %p84, %p85
      %p87 = scmp.ne.s32.totalorder %s76, %s77
      %p88 = scmp.eq.s32.totalorder %s21, 0
      %p89 = por %p87, %p88
      %p90 = scmp.ne.s32.totalorder %s76, %s77
      %p91 = scmp.eq.s32.totalorder %s22, 1
      %p92 = por %p90, %p91
      %p94 = scmp.ne.s32.totalorder %s77, %s93
      %p95 = scmp.eq.s32.totalorder %s22, 0
      %p96 = por %p94, %p95
      %s97 = ssub.s32 %s16, %s23
      %p98 = scmp.eq.s32.totalorder %s97, 0
      %s100 = sadd.s32 %s99, 1
      %s101 = scalar_select %p98, %s99, %s100
      %p104 = pneg %p98
      %p105 = scmp.eq.s32.totalorder %s16, 1
      %p106 = por %p104, %p105
      %p107 = scmp.ne.s32.totalorder %s99, %s102
      %p108 = scmp.eq.s32.totalorder %s16, 0
      %p109 = por %p107, %p108
      %p110 = scmp.ne.s32.totalorder %s99, %s102
      %p111 = scmp.eq.s32.totalorder %s21, 1
      %p112 = por %p110, %p111
      %p113 = scmp.ne.s32.totalorder %s102, %s103
      %p114 = scmp.eq.s32.totalorder %s21, 0
      %p115 = por %p113, %p114
      %p116 = scmp.ne.s32.totalorder %s102, %s103
      %p117 = scmp.eq.s32.totalorder %s22, 1
      %p118 = por %p116, %p117
      %p120 = scmp.ne.s32.totalorder %s103, %s119
      %p121 = scmp.eq.s32.totalorder %s22, 0
      %p122 = por %p120, %p121
      %s124 = sadd.s32 %s123, 1
      %p127 = scmp.eq.s32.totalorder %s16, 1
      %p128 = scmp.ne.s32.totalorder %s123, %s125
      %p129 = scmp.eq.s32.totalorder %s16, 0
      %p130 = por %p128, %p129
      %p131 = scmp.ne.s32.totalorder %s123, %s125
      %p132 = scmp.eq.s32.totalorder %s21, 1
      %p133 = por %p131, %p132
      %p134 = scmp.ne.s32.totalorder %s125, %s126
      %p135 = scmp.eq.s32.totalorder %s21, 0
      %p136 = por %p134, %p135
      %p137 = scmp.ne.s32.totalorder %s125, %s126
      %p138 = scmp.eq.s32.totalorder %s22, 1
      %p139 = por %p137, %p138
      %p141 = scmp.ne.s32.totalorder %s126, %s140
      %p142 = scmp.eq.s32.totalorder %s22, 0
      %p143 = por %p141, %p142
      %s145 = sadd.s32 %s144, 1
      %p148 = scmp.eq.s32.totalorder %s16, 1
      %p149 = scmp.ne.s32.totalorder %s144, %s146
      %p150 = scmp.eq.s32.totalorder %s16, 0
      %p151 = por %p149, %p150
      %p152 = scmp.ne.s32.totalorder %s144, %s146
      %p153 = scmp.eq.s32.totalorder %s21, 1
      %p154 = por %p152, %p153
      %p155 = scmp.ne.s32.totalorder %s146, %s147
      %p156 = scmp.eq.s32.totalorder %s21, 0
      %p157 = por %p155, %p156
      %p158 = scmp.ne.s32.totalorder %s146, %s147
      %p159 = scmp.eq.s32.totalorder %s22, 1
      %p160 = por %p158, %p159
      %p162 = scmp.ne.s32.totalorder %s147, %s161
      %p163 = scmp.eq.s32.totalorder %s22, 0
      %p164 = por %p162, %p163
      %p165 = scmp.le.s32.totalorder 1, %s16
      %p166 = scmp.lt.s32.totalorder %s16, 3
      %p167 = pnand %p165, %p166
      %p168 = pneg %p167
      // Predicated region
      $region9: #{tpu_custom_call.1} parent=5 // pred_check
        _
      $region10: #{tpu_custom_call.1} parent=5 // pred_check_branch
        %170 = sbr.rel (%p167) target = $region12
      $region11: #{tpu_custom_call.1} parent=5 // pred_region
        %s171 = ssub.s32 %s16, 1
        // Predicated region
        $region13: #{tpu_custom_call.1} parent=11 // pred_check
          %p172 = pneg %p37
        $region14: #{tpu_custom_call.1} parent=11 // pred_check_branch
          %174 = sbr.rel (%p172) target = $region16
        $region15: #{tpu_custom_call.1} parent=11 // pred_region
          %s176 = ssub.s32 1024, 1024
          %177 = vsyncadd [#allocation5], %s176
          %s179 = sshll.u32 [#allocation4], 4
          %s180 = int_to_ptr.vmem [resolvable:$true] %s179
          %182 = dma.hbm_to_vmem [thread:$0]  %s0, 1024, %s180, [#allocation5]
        $region16: #{tpu_custom_call.1} parent=11 // pred_fallthru
          _
        // Predicated region
        $region17: #{tpu_custom_call.1} parent=11 // pred_check
          %p183 = pneg %p136
        $region18: #{tpu_custom_call.1} parent=11 // pred_check_branch
          %185 = sbr.rel (%p183) target = $region20
        $region19: #{tpu_custom_call.1} parent=11 // pred_region
          _
        $region20: #{tpu_custom_call.1} parent=11 // pred_fallthru
          _
      $region12: #{tpu_custom_call.1} parent=5 // pred_fallthru
        _
      %p186 = scmp.lt.s32.totalorder %s16, 2
      // Predicated region
      $region21: #{tpu_custom_call.1} parent=5 // pred_check
        %p187 = pneg %p186
      $region22: #{tpu_custom_call.1} parent=5 // pred_check_branch
        %189 = sbr.rel (%p187) target = $region24
      $region23: #{tpu_custom_call.1} parent=5 // pred_region
        // Predicated region
        $region25: #{tpu_custom_call.1} parent=23 // pred_check
          %p190 = pneg %p57
        $region26: #{tpu_custom_call.1} parent=23 // pred_check_branch
          %192 = sbr.rel (%p190) target = $region28
        $region27: #{tpu_custom_call.1} parent=23 // pred_region
          %s193 = sand.u32 %s16, 1
          %s194 = scalar_lea.sflag [#allocation8], %s193
          %s195 = sand.u32 %s47, 1
          %s196 = smul.addr %s195, 16
          %s197 = scalar_lea.vmem [#allocation7], %s196
          %s199 = ssub.s32 256, 256
          %200 = vsyncadd %s194, %s199
          %s201 = smul.addr %s16, 4
          %s202 = smul.addr %s201, 64
          %s203 = scalar_lea.hbm %s1, %s202
          %s204 = sshll.u32 %s197, 4
          %s205 = int_to_ptr.vmem [resolvable:$true] %s204
          %210 = dma.hbm_to_vmem [thread:$0]  %s203, 256, %s205, %s194, 64, 64, 4
        $region28: #{tpu_custom_call.1} parent=23 // pred_fallthru
          _
        // Predicated region
        $region29: #{tpu_custom_call.1} parent=23 // pred_check
          %p211 = pneg %p83
        $region30: #{tpu_custom_call.1} parent=23 // pred_check_branch
          %213 = sbr.rel (%p211) target = $region32
        $region31: #{tpu_custom_call.1} parent=23 // pred_region
          %s214 = sand.u32 %s16, 1
          %s215 = scalar_lea.sflag [#allocation8], %s214
          %s216 = sand.u32 %s73, 1
          %s217 = smul.addr %s216, 16
          %s218 = scalar_lea.vmem [#allocation9], %s217
          %s220 = ssub.s32 256, 256
          %221 = vsyncadd %s215, %s220
          %s222 = smul.addr %s16, 4
          %s223 = smul.addr %s222, 64
          %s224 = scalar_lea.hbm %s2, %s223
          %s225 = sshll.u32 %s218, 4
          %s226 = int_to_ptr.vmem [resolvable:$true] %s225
          %231 = dma.hbm_to_vmem [thread:$0]  %s224, 256, %s226, %s215, 64, 64, 4
        $region32: #{tpu_custom_call.1} parent=23 // pred_fallthru
          _
        // Predicated region
        $region33: #{tpu_custom_call.1} parent=23 // pred_check
          %p232 = pneg %p109
        $region34: #{tpu_custom_call.1} parent=23 // pred_check_branch
          %234 = sbr.rel (%p232) target = $region36
        $region35: #{tpu_custom_call.1} parent=23 // pred_region
          %p235 = scmp.lt.s32.totalorder %s16, 1
          %s236 = scalar_select %p235, %s16, 1
          %s237 = smul.addr %s236, 4
          %s238 = smul.addr %s237, 8
          %s239 = scalar_lea.vmem %s3, %s238
        $region36: #{tpu_custom_call.1} parent=23 // pred_fallthru
          _
      $region24: #{tpu_custom_call.1} parent=5 // pred_fallthru
        _
      %p240 = scmp.le.s32.totalorder 1, %s16
      %p241 = scmp.lt.s32.totalorder %s16, 3
      %p242 = pnand %p240, %p241
      %p243 = pneg %p242
      // Predicated region
      $region37: #{tpu_custom_call.1} parent=5 // pred_check
        _
      $region38: #{tpu_custom_call.1} parent=5 // pred_check_branch
        %245 = sbr.rel (%p242) target = $region40
      $region39: #{tpu_custom_call.1} parent=5 // pred_region
        %s246 = ssub.s32 %s16, 1
        // Predicated region
        $region41: #{tpu_custom_call.1} parent=39 // pred_check
          %p247 = pneg %p37
        $region42: #{tpu_custom_call.1} parent=39 // pred_check_branch
          %249 = sbr.rel (%p247) target = $region44
        $region43: #{tpu_custom_call.1} parent=39 // pred_region
          %250 = dma.done [#allocation5], 1024
        $region44: #{tpu_custom_call.1} parent=39 // pred_fallthru
          _
        %s251 = sand.u32 %s21, 1
        %s252 = scalar_lea.sflag [#allocation8], %s251
        %s253 = sand.u32 %s50, 1
        %s254 = smul.addr %s253, 16
        %s255 = scalar_lea.vmem [#allocation7], %s254
        // Predicated region
        $region45: #{tpu_custom_call.1} parent=39 // pred_check
          %p256 = pneg %p63
        $region46: #{tpu_custom_call.1} parent=39 // pred_check_branch
          %258 = sbr.rel (%p256) target = $region48
        $region47: #{tpu_custom_call.1} parent=39 // pred_region
          %259 = dma.done %s252, 256
        $region48: #{tpu_custom_call.1} parent=39 // pred_fallthru
          _
        %s260 = sand.u32 %s21, 1
        %s261 = scalar_lea.sflag [#allocation8], %s260
        %s262 = sand.u32 %s76, 1
        %s263 = smul.addr %s262, 16
        %s264 = scalar_lea.vmem [#allocation9], %s263
        // Predicated region
        $region49: #{tpu_custom_call.1} parent=39 // pred_check
          %p265 = pneg %p89
        $region50: #{tpu_custom_call.1} parent=39 // pred_check_branch
          %267 = sbr.rel (%p265) target = $region52
        $region51: #{tpu_custom_call.1} parent=39 // pred_region
          %268 = dma.done %s261, 256
        $region52: #{tpu_custom_call.1} parent=39 // pred_fallthru
          _
        %p269 = pneg %p37
        %p270 = pneg %p34
        %s271 = sand.u32 %s21, 1
        %s272 = scalar_lea.sflag [#allocation8], %s271
        %s273 = sand.u32 %s50, 1
        %s274 = smul.addr %s273, 16
        %s275 = scalar_lea.vmem [#allocation7], %s274
        %p276 = pneg %p63
        %p277 = pneg %p60
        %s278 = sand.u32 %s21, 1
        %s279 = scalar_lea.sflag [#allocation8], %s278
        %s280 = sand.u32 %s76, 1
        %s281 = smul.addr %s280, 16
        %s282 = scalar_lea.vmem [#allocation9], %s281
        %p283 = pneg %p89
        %p284 = pneg %p86
        %p285 = scmp.lt.s32.totalorder %s21, 1
        %s286 = scalar_select %p285, %s21, 1
        %s287 = smul.addr %s286, 4
        %s288 = smul.addr %s287, 8
        %s289 = scalar_lea.vmem %s3, %s288
        %p290 = pneg %p115
        %p291 = pneg %p112
        %p292 = pneg %p136
        %p293 = pneg %p133
        %p294 = pneg %p157
        %p295 = pneg %p154
        %p296 = scmp.lt.s32.totalorder %s21, 1
        %s297 = scalar_select %p296, %s21, 1
        %s298 = smul.addr %s297, 4
        %s299 = smul.addr %s298, 8
        %s300 = scalar_lea.vmem %s3, %s299
        %p302 = scmp.eq.s32.totalorder %s21, 0
        // Predicated region
        $region53: #{tpu_custom_call.1} parent=39 // pred_check
          %p303 = pneg %p302
        $region54: #{tpu_custom_call.1} parent=39 // pred_check_branch
          %305 = sbr.rel (%p303) target = $region56
        $region55: #{tpu_custom_call.1} parent=39 // pred_region
          %v306 = vld [vmem:[#allocation4] sm:$0xff]
          %v307 = vld [vmem:[#allocation4 + $0x8] sm:$0xff]
          %v308 = vld [vmem:[#allocation4 + $0x10] sm:$0xff]
          %v309 = vld [vmem:[#allocation4 + $0x18] sm:$0xff]
          %v310 = vld [vmem:[#allocation4 + $0x20] sm:$0xff]
          %v311 = vld [vmem:[#allocation4 + $0x28] sm:$0xff]
          %v312 = vld [vmem:[#allocation4 + $0x30] sm:$0xff]
          %v313 = vld [vmem:[#allocation4 + $0x38] sm:$0xff]
          %314 = vst [vmem:[#allocation2] sm:$0xff] %v306
          %315 = vst [vmem:[#allocation2 + $0x8] sm:$0xff] %v307
          %316 = vst [vmem:[#allocation2 + $0x10] sm:$0xff] %v308
          %317 = vst [vmem:[#allocation2 + $0x18] sm:$0xff] %v309
          %318 = vst [vmem:[#allocation2 + $0x20] sm:$0xff] %v310
          %319 = vst [vmem:[#allocation2 + $0x28] sm:$0xff] %v311
          %320 = vst [vmem:[#allocation2 + $0x30] sm:$0xff] %v312
          %321 = vst [vmem:[#allocation2 + $0x38] sm:$0xff] %v313
        $region56: #{tpu_custom_call.1} parent=39 // pred_fallthru
          _
        %p322 = scmp.ne.s32.totalorder %s21, 0
        // Predicated region
        $region57: #{tpu_custom_call.1} parent=39 // pred_check
          %p323 = pneg %p322
        $region58: #{tpu_custom_call.1} parent=39 // pred_check_branch
          %325 = sbr.rel (%p323) target = $region60
        $region59: #{tpu_custom_call.1} parent=39 // pred_region
          %v326 = vld [vmem:[#allocation10] sm:$0xff]
          %v327 = vld [vmem:[#allocation10 + $0x8] sm:$0xff]
          %v328 = vld [vmem:[#allocation10 + $0x10] sm:$0xff]
          %v329 = vld [vmem:[#allocation10 + $0x18] sm:$0xff]
          %v330 = vld [vmem:[#allocation10 + $0x20] sm:$0xff]
          %v331 = vld [vmem:[#allocation10 + $0x28] sm:$0xff]
          %v332 = vld [vmem:[#allocation10 + $0x30] sm:$0xff]
          %v333 = vld [vmem:[#allocation10 + $0x38] sm:$0xff]
          %334 = vst [vmem:[#allocation2] sm:$0xff] %v326
          %335 = vst [vmem:[#allocation2 + $0x8] sm:$0xff] %v327
          %336 = vst [vmem:[#allocation2 + $0x10] sm:$0xff] %v328
          %337 = vst [vmem:[#allocation2 + $0x18] sm:$0xff] %v329
          %338 = vst [vmem:[#allocation2 + $0x20] sm:$0xff] %v330
          %339 = vst [vmem:[#allocation2 + $0x28] sm:$0xff] %v331
          %340 = vst [vmem:[#allocation2 + $0x30] sm:$0xff] %v332
          %341 = vst [vmem:[#allocation2 + $0x38] sm:$0xff] %v333
        $region60: #{tpu_custom_call.1} parent=39 // pred_fallthru
          _
        %v342 = vld [vmem:[%s4] sm:$0xff]
        %s343 = scalar_lea.vmem %s4, 8
        %v344 = vld [vmem:[%s343] sm:$0xff]
        %s345 = scalar_lea.vmem %s4, 16
        %v346 = vld [vmem:[%s345] sm:$0xff]
        %s347 = scalar_lea.vmem %s4, 24
        %v348 = vld [vmem:[%s347] sm:$0xff]
        %s349 = scalar_lea.vmem %s4, 40
        %v350 = vld [vmem:[%s349] sm:$0xff]
        %s351 = scalar_lea.vmem %s4, 48
        %v352 = vld [vmem:[%s351] sm:$0xff]
        %s353 = scalar_lea.vmem %s4, 56
        %v354 = vld [vmem:[%s353] sm:$0xff]
        %s355 = scalar_lea.vmem %s4, 64
        %v356 = vld [vmem:[%s355] sm:$0xff]
        %v357 = vld [vmem:[#allocation2] sm:$0xff]
        %v358 = vld [vmem:[#allocation2 + $0x8] sm:$0xff]
        %v359 = vld [vmem:[#allocation2 + $0x10] sm:$0xff]
        %v360 = vld [vmem:[#allocation2 + $0x18] sm:$0xff]
        %v361 = vld [vmem:[#allocation2 + $0x20] sm:$0xff]
        %v362 = vld [vmem:[#allocation2 + $0x28] sm:$0xff]
        %v363 = vld [vmem:[#allocation2 + $0x30] sm:$0xff]
        %v364 = vld [vmem:[#allocation2 + $0x38] sm:$0xff]
        %365 = vrot.lane.b32.xlu0 %v357, 9
        %v366 = vpop.permute.xlu0 %365
        %367 = vrot.lane.b32.xlu0 %v358, 9
        %v368 = vpop.permute.xlu0 %367
        %369 = vrot.lane.b32.xlu0 %v359, 9
        %v370 = vpop.permute.xlu0 %369
        %371 = vrot.lane.b32.xlu0 %v360, 9
        %v372 = vpop.permute.xlu0 %371
        %373 = vrot.lane.b32.xlu0 %v361, 9
        %v374 = vpop.permute.xlu0 %373
        %375 = vrot.lane.b32.xlu0 %v362, 9
        %v376 = vpop.permute.xlu0 %375
        %377 = vrot.lane.b32.xlu0 %v363, 9
        %v378 = vpop.permute.xlu0 %377
        %379 = vrot.lane.b32.xlu0 %v364, 9
        %v380 = vpop.permute.xlu0 %379
        %v381 = vlaneseq
        %v382 = vand.u32 %v381, 127
        %vm383 = vcmp.lt.s32.totalorder %v382, 9
        %v384 = vsel %vm383, %v378, %v380
        %v385 = vsel %vm383, %v376, %v378
        %v386 = vsel %vm383, %v374, %v376
        %v387 = vsel %vm383, %v372, %v374
        %v388 = vsel %vm383, %v370, %v372
        %v389 = vsel %vm383, %v368, %v370
        %v390 = vsel %vm383, %v366, %v368
        %v391 = vsel %vm383, %v380, %v366
        %v393 = vlaneseq
        %v394 = vshrl.u32 %v393, 7
        %v395 = vsub.s32 0, %v394
        %v396 = vrot.slane %v342, %v395
        %v397 = vlaneseq
        %v398 = vshrl.u32 %v397, 7
        %v399 = vsub.s32 1, %v398
        %v400 = vrot.slane %v342, %v399
        %v401 = vlaneseq
        %v402 = vshrl.u32 %v401, 7
        %v403 = vsub.s32 2, %v402
        %v404 = vrot.slane %v342, %v403
        %v405 = vlaneseq
        %v406 = vshrl.u32 %v405, 7
        %v407 = vsub.s32 3, %v406
        %v408 = vrot.slane %v342, %v407
        %v409 = vlaneseq
        %v410 = vshrl.u32 %v409, 7
        %v411 = vsub.s32 4, %v410
        %v412 = vrot.slane %v342, %v411
        %v413 = vlaneseq
        %v414 = vshrl.u32 %v413, 7
        %v415 = vsub.s32 5, %v414
        %v416 = vrot.slane %v342, %v415
        %v417 = vlaneseq
        %v418 = vshrl.u32 %v417, 7
        %v419 = vsub.s32 6, %v418
        %v420 = vrot.slane %v342, %v419
        %v421 = vlaneseq
        %v422 = vshrl.u32 %v421, 7
        %v423 = vsub.s32 7, %v422
        %v424 = vrot.slane %v342, %v423
        %v433 = vmul.f32 %v391, %v396
        %v434 = vmul.f32 %v390, %v400
        %v435 = vmul.f32 %v389, %v404
        %v436 = vmul.f32 %v388, %v408
        %v437 = vmul.f32 %v387, %v412
        %v438 = vmul.f32 %v386, %v416
        %v439 = vmul.f32 %v385, %v420
        %v440 = vmul.f32 %v384, %v424
        %441 = vrot.lane.b32.xlu0 %v357, 8
        %v442 = vpop.permute.xlu0 %441
        %443 = vrot.lane.b32.xlu0 %v358, 8
        %v444 = vpop.permute.xlu0 %443
        %445 = vrot.lane.b32.xlu0 %v359, 8
        %v446 = vpop.permute.xlu0 %445
        %447 = vrot.lane.b32.xlu0 %v360, 8
        %v448 = vpop.permute.xlu0 %447
        %449 = vrot.lane.b32.xlu0 %v361, 8
        %v450 = vpop.permute.xlu0 %449
        %451 = vrot.lane.b32.xlu0 %v362, 8
        %v452 = vpop.permute.xlu0 %451
        %453 = vrot.lane.b32.xlu0 %v363, 8
        %v454 = vpop.permute.xlu0 %453
        %455 = vrot.lane.b32.xlu0 %v364, 8
        %v456 = vpop.permute.xlu0 %455
        %vm457 = vcmp.lt.s32.totalorder %v382, 8
        %v458 = vsel %vm457, %v454, %v456
        %v459 = vsel %vm457, %v452, %v454
        %v460 = vsel %vm457, %v450, %v452
        %v461 = vsel %vm457, %v448, %v450
        %v462 = vsel %vm457, %v446, %v448
        %v463 = vsel %vm457, %v444, %v446
        %v464 = vsel %vm457, %v442, %v444
        %v465 = vsel %vm457, %v456, %v442
        %v467 = vlaneseq
        %v468 = vshrl.u32 %v467, 7
        %v469 = vsub.s32 0, %v468
        %v470 = vrot.slane %v344, %v469
        %v471 = vlaneseq
        %v472 = vshrl.u32 %v471, 7
        %v473 = vsub.s32 1, %v472
        %v474 = vrot.slane %v344, %v473
        %v475 = vlaneseq
        %v476 = vshrl.u32 %v475, 7
        %v477 = vsub.s32 2, %v476
        %v478 = vrot.slane %v344, %v477
        %v479 = vlaneseq
        %v480 = vshrl.u32 %v479, 7
        %v481 = vsub.s32 3, %v480
        %v482 = vrot.slane %v344, %v481
        %v483 = vlaneseq
        %v484 = vshrl.u32 %v483, 7
        %v485 = vsub.s32 4, %v484
        %v486 = vrot.slane %v344, %v485
        %v487 = vlaneseq
        %v488 = vshrl.u32 %v487, 7
        %v489 = vsub.s32 5, %v488
        %v490 = vrot.slane %v344, %v489
        %v491 = vlaneseq
        %v492 = vshrl.u32 %v491, 7
        %v493 = vsub.s32 6, %v492
        %v494 = vrot.slane %v344, %v493
        %v495 = vlaneseq
        %v496 = vshrl.u32 %v495, 7
        %v497 = vsub.s32 7, %v496
        %v498 = vrot.slane %v344, %v497
        %v507 = vmul.f32 %v465, %v470
        %v508 = vmul.f32 %v464, %v474
        %v509 = vmul.f32 %v463, %v478
        %v510 = vmul.f32 %v462, %v482
        %v511 = vmul.f32 %v461, %v486
        %v512 = vmul.f32 %v460, %v490
        %v513 = vmul.f32 %v459, %v494
        %v514 = vmul.f32 %v458, %v498
        %515 = vrot.lane.b32.xlu0 %v357, 7
        %v516 = vpop.permute.xlu0 %515
        %517 = vrot.lane.b32.xlu0 %v358, 7
        %v518 = vpop.permute.xlu0 %517
        %519 = vrot.lane.b32.xlu0 %v359, 7
        %v520 = vpop.permute.xlu0 %519
        %521 = vrot.lane.b32.xlu0 %v360, 7
        %v522 = vpop.permute.xlu0 %521
        %523 = vrot.lane.b32.xlu0 %v361, 7
        %v524 = vpop.permute.xlu0 %523
        %525 = vrot.lane.b32.xlu0 %v362, 7
        %v526 = vpop.permute.xlu0 %525
        %527 = vrot.lane.b32.xlu0 %v363, 7
        %v528 = vpop.permute.xlu0 %527
        %529 = vrot.lane.b32.xlu0 %v364, 7
        %v530 = vpop.permute.xlu0 %529
        %vm531 = vcmp.lt.s32.totalorder %v382, 7
        %v532 = vsel %vm531, %v528, %v530
        %v533 = vsel %vm531, %v526, %v528
        %v534 = vsel %vm531, %v524, %v526
        %v535 = vsel %vm531, %v522, %v524
        %v536 = vsel %vm531, %v520, %v522
        %v537 = vsel %vm531, %v518, %v520
        %v538 = vsel %vm531, %v516, %v518
        %v539 = vsel %vm531, %v530, %v516
        %v541 = vlaneseq
        %v542 = vshrl.u32 %v541, 7
        %v543 = vsub.s32 0, %v542
        %v544 = vrot.slane %v346, %v543
        %v545 = vlaneseq
        %v546 = vshrl.u32 %v545, 7
        %v547 = vsub.s32 1, %v546
        %v548 = vrot.slane %v346, %v547
        %v549 = vlaneseq
        %v550 = vshrl.u32 %v549, 7
        %v551 = vsub.s32 2, %v550
        %v552 = vrot.slane %v346, %v551
        %v553 = vlaneseq
        %v554 = vshrl.u32 %v553, 7
        %v555 = vsub.s32 3, %v554
        %v556 = vrot.slane %v346, %v555
        %v557 = vlaneseq
        %v558 = vshrl.u32 %v557, 7
        %v559 = vsub.s32 4, %v558
        %v560 = vrot.slane %v346, %v559
        %v561 = vlaneseq
        %v562 = vshrl.u32 %v561, 7
        %v563 = vsub.s32 5, %v562
        %v564 = vrot.slane %v346, %v563
        %v565 = vlaneseq
        %v566 = vshrl.u32 %v565, 7
        %v567 = vsub.s32 6, %v566
        %v568 = vrot.slane %v346, %v567
        %v569 = vlaneseq
        %v570 = vshrl.u32 %v569, 7
        %v571 = vsub.s32 7, %v570
        %v572 = vrot.slane %v346, %v571
        %v581 = vmul.f32 %v539, %v544
        %v582 = vmul.f32 %v538, %v548
        %v583 = vmul.f32 %v537, %v552
        %v584 = vmul.f32 %v536, %v556
        %v585 = vmul.f32 %v535, %v560
        %v586 = vmul.f32 %v534, %v564
        %v587 = vmul.f32 %v533, %v568
        %v588 = vmul.f32 %v532, %v572
        %589 = vrot.lane.b32.xlu0 %v357, 1
        %v590 = vpop.permute.xlu0 %589
        %591 = vrot.lane.b32.xlu0 %v358, 1
        %v592 = vpop.permute.xlu0 %591
        %593 = vrot.lane.b32.xlu0 %v359, 1
        %v594 = vpop.permute.xlu0 %593
        %595 = vrot.lane.b32.xlu0 %v360, 1
        %v596 = vpop.permute.xlu0 %595
        %597 = vrot.lane.b32.xlu0 %v361, 1
        %v598 = vpop.permute.xlu0 %597
        %599 = vrot.lane.b32.xlu0 %v362, 1
        %v600 = vpop.permute.xlu0 %599
        %601 = vrot.lane.b32.xlu0 %v363, 1
        %v602 = vpop.permute.xlu0 %601
        %603 = vrot.lane.b32.xlu0 %v364, 1
        %v604 = vpop.permute.xlu0 %603
        %vm605 = vcmp.lt.s32.totalorder %v382, 1
        %v606 = vsel %vm605, %v602, %v604
        %v607 = vsel %vm605, %v600, %v602
        %v608 = vsel %vm605, %v598, %v600
        %v609 = vsel %vm605, %v596, %v598
        %v610 = vsel %vm605, %v594, %v596
        %v611 = vsel %vm605, %v592, %v594
        %v612 = vsel %vm605, %v590, %v592
        %v613 = vsel %vm605, %v604, %v590
        %v615 = vlaneseq
        %v616 = vshrl.u32 %v615, 7
        %v617 = vsub.s32 0, %v616
        %v618 = vrot.slane %v348, %v617
        %v619 = vlaneseq
        %v620 = vshrl.u32 %v619, 7
        %v621 = vsub.s32 1, %v620
        %v622 = vrot.slane %v348, %v621
        %v623 = vlaneseq
        %v624 = vshrl.u32 %v623, 7
        %v625 = vsub.s32 2, %v624
        %v626 = vrot.slane %v348, %v625
        %v627 = vlaneseq
        %v628 = vshrl.u32 %v627, 7
        %v629 = vsub.s32 3, %v628
        %v630 = vrot.slane %v348, %v629
        %v631 = vlaneseq
        %v632 = vshrl.u32 %v631, 7
        %v633 = vsub.s32 4, %v632
        %v634 = vrot.slane %v348, %v633
        %v635 = vlaneseq
        %v636 = vshrl.u32 %v635, 7
        %v637 = vsub.s32 5, %v636
        %v638 = vrot.slane %v348, %v637
        %v639 = vlaneseq
        %v640 = vshrl.u32 %v639, 7
        %v641 = vsub.s32 6, %v640
        %v642 = vrot.slane %v348, %v641
        %v643 = vlaneseq
        %v644 = vshrl.u32 %v643, 7
        %v645 = vsub.s32 7, %v644
        %v646 = vrot.slane %v348, %v645
        %v655 = vmul.f32 %v613, %v618
        %v656 = vmul.f32 %v612, %v622
        %v657 = vmul.f32 %v611, %v626
        %v658 = vmul.f32 %v610, %v630
        %v659 = vmul.f32 %v609, %v634
        %v660 = vmul.f32 %v608, %v638
        %v661 = vmul.f32 %v607, %v642
        %v662 = vmul.f32 %v606, %v646
        %663 = vrot.lane.b32.xlu0 %v357, 127
        %v664 = vpop.permute.xlu0 %663
        %665 = vrot.lane.b32.xlu0 %v358, 127
        %v666 = vpop.permute.xlu0 %665
        %667 = vrot.lane.b32.xlu0 %v359, 127
        %v668 = vpop.permute.xlu0 %667
        %669 = vrot.lane.b32.xlu0 %v360, 127
        %v670 = vpop.permute.xlu0 %669
        %671 = vrot.lane.b32.xlu0 %v361, 127
        %v672 = vpop.permute.xlu0 %671
        %673 = vrot.lane.b32.xlu0 %v362, 127
        %v674 = vpop.permute.xlu0 %673
        %675 = vrot.lane.b32.xlu0 %v363, 127
        %v676 = vpop.permute.xlu0 %675
        %677 = vrot.lane.b32.xlu0 %v364, 127
        %v678 = vpop.permute.xlu0 %677
        %vm679 = vcmp.lt.s32.totalorder %v382, 127
        %v680 = vsel %vm679, %v676, %v678
        %v681 = vsel %vm679, %v674, %v676
        %v682 = vsel %vm679, %v672, %v674
        %v683 = vsel %vm679, %v670, %v672
        %v684 = vsel %vm679, %v668, %v670
        %v685 = vsel %vm679, %v666, %v668
        %v686 = vsel %vm679, %v664, %v666
        %v687 = vsel %vm679, %v678, %v664
        %v689 = vlaneseq
        %v690 = vshrl.u32 %v689, 7
        %v691 = vsub.s32 0, %v690
        %v692 = vrot.slane %v350, %v691
        %v693 = vlaneseq
        %v694 = vshrl.u32 %v693, 7
        %v695 = vsub.s32 1, %v694
        %v696 = vrot.slane %v350, %v695
        %v697 = vlaneseq
        %v698 = vshrl.u32 %v697, 7
        %v699 = vsub.s32 2, %v698
        %v700 = vrot.slane %v350, %v699
        %v701 = vlaneseq
        %v702 = vshrl.u32 %v701, 7
        %v703 = vsub.s32 3, %v702
        %v704 = vrot.slane %v350, %v703
        %v705 = vlaneseq
        %v706 = vshrl.u32 %v705, 7
        %v707 = vsub.s32 4, %v706
        %v708 = vrot.slane %v350, %v707
        %v709 = vlaneseq
        %v710 = vshrl.u32 %v709, 7
        %v711 = vsub.s32 5, %v710
        %v712 = vrot.slane %v350, %v711
        %v713 = vlaneseq
        %v714 = vshrl.u32 %v713, 7
        %v715 = vsub.s32 6, %v714
        %v716 = vrot.slane %v350, %v715
        %v717 = vlaneseq
        %v718 = vshrl.u32 %v717, 7
        %v719 = vsub.s32 7, %v718
        %v720 = vrot.slane %v350, %v719
        %v729 = vmul.f32 %v686, %v692
        %v730 = vmul.f32 %v685, %v696
        %v731 = vmul.f32 %v684, %v700
        %v732 = vmul.f32 %v683, %v704
        %v733 = vmul.f32 %v682, %v708
        %v734 = vmul.f32 %v681, %v712
        %v735 = vmul.f32 %v680, %v716
        %v736 = vmul.f32 %v687, %v720
        %737 = vrot.lane.b32.xlu0 %v357, 121
        %v738 = vpop.permute.xlu0 %737
        %739 = vrot.lane.b32.xlu0 %v358, 121
        %v740 = vpop.permute.xlu0 %739
        %741 = vrot.lane.b32.xlu0 %v359, 121
        %v742 = vpop.permute.xlu0 %741
        %743 = vrot.lane.b32.xlu0 %v360, 121
        %v744 = vpop.permute.xlu0 %743
        %745 = vrot.lane.b32.xlu0 %v361, 121
        %v746 = vpop.permute.xlu0 %745
        %747 = vrot.lane.b32.xlu0 %v362, 121
        %v748 = vpop.permute.xlu0 %747
        %749 = vrot.lane.b32.xlu0 %v363, 121
        %v750 = vpop.permute.xlu0 %749
        %751 = vrot.lane.b32.xlu0 %v364, 121
        %v752 = vpop.permute.xlu0 %751
        %vm753 = vcmp.lt.s32.totalorder %v382, 121
        %v754 = vsel %vm753, %v750, %v752
        %v755 = vsel %vm753, %v748, %v750
        %v756 = vsel %vm753, %v746, %v748
        %v757 = vsel %vm753, %v744, %v746
        %v758 = vsel %vm753, %v742, %v744
        %v759 = vsel %vm753, %v740, %v742
        %v760 = vsel %vm753, %v738, %v740
        %v761 = vsel %vm753, %v752, %v738
        %v763 = vlaneseq
        %v764 = vshrl.u32 %v763, 7
        %v765 = vsub.s32 0, %v764
        %v766 = vrot.slane %v352, %v765
        %v767 = vlaneseq
        %v768 = vshrl.u32 %v767, 7
        %v769 = vsub.s32 1, %v768
        %v770 = vrot.slane %v352, %v769
        %v771 = vlaneseq
        %v772 = vshrl.u32 %v771, 7
        %v773 = vsub.s32 2, %v772
        %v774 = vrot.slane %v352, %v773
        %v775 = vlaneseq
        %v776 = vshrl.u32 %v775, 7
        %v777 = vsub.s32 3, %v776
        %v778 = vrot.slane %v352, %v777
        %v779 = vlaneseq
        %v780 = vshrl.u32 %v779, 7
        %v781 = vsub.s32 4, %v780
        %v782 = vrot.slane %v352, %v781
        %v783 = vlaneseq
        %v784 = vshrl.u32 %v783, 7
        %v785 = vsub.s32 5, %v784
        %v786 = vrot.slane %v352, %v785
        %v787 = vlaneseq
        %v788 = vshrl.u32 %v787, 7
        %v789 = vsub.s32 6, %v788
        %v790 = vrot.slane %v352, %v789
        %v791 = vlaneseq
        %v792 = vshrl.u32 %v791, 7
        %v793 = vsub.s32 7, %v792
        %v794 = vrot.slane %v352, %v793
        %v803 = vmul.f32 %v760, %v766
        %v804 = vmul.f32 %v759, %v770
        %v805 = vmul.f32 %v758, %v774
        %v806 = vmul.f32 %v757, %v778
        %v807 = vmul.f32 %v756, %v782
        %v808 = vmul.f32 %v755, %v786
        %v809 = vmul.f32 %v754, %v790
        %v810 = vmul.f32 %v761, %v794
        %811 = vrot.lane.b32.xlu0 %v357, 120
        %v812 = vpop.permute.xlu0 %811
        %813 = vrot.lane.b32.xlu0 %v358, 120
        %v814 = vpop.permute.xlu0 %813
        %815 = vrot.lane.b32.xlu0 %v359, 120
        %v816 = vpop.permute.xlu0 %815
        %817 = vrot.lane.b32.xlu0 %v360, 120
        %v818 = vpop.permute.xlu0 %817
        %819 = vrot.lane.b32.xlu0 %v361, 120
        %v820 = vpop.permute.xlu0 %819
        %821 = vrot.lane.b32.xlu0 %v362, 120
        %v822 = vpop.permute.xlu0 %821
        %823 = vrot.lane.b32.xlu0 %v363, 120
        %v824 = vpop.permute.xlu0 %823
        %825 = vrot.lane.b32.xlu0 %v364, 120
        %v826 = vpop.permute.xlu0 %825
        %vm827 = vcmp.lt.s32.totalorder %v382, 120
        %v828 = vsel %vm827, %v824, %v826
        %v829 = vsel %vm827, %v822, %v824
        %v830 = vsel %vm827, %v820, %v822
        %v831 = vsel %vm827, %v818, %v820
        %v832 = vsel %vm827, %v816, %v818
        %v833 = vsel %vm827, %v814, %v816
        %v834 = vsel %vm827, %v812, %v814
        %v835 = vsel %vm827, %v826, %v812
        %v837 = vlaneseq
        %v838 = vshrl.u32 %v837, 7
        %v839 = vsub.s32 0, %v838
        %v840 = vrot.slane %v354, %v839
        %v841 = vlaneseq
        %v842 = vshrl.u32 %v841, 7
        %v843 = vsub.s32 1, %v842
        %v844 = vrot.slane %v354, %v843
        %v845 = vlaneseq
        %v846 = vshrl.u32 %v845, 7
        %v847 = vsub.s32 2, %v846
        %v848 = vrot.slane %v354, %v847
        %v849 = vlaneseq
        %v850 = vshrl.u32 %v849, 7
        %v851 = vsub.s32 3, %v850
        %v852 = vrot.slane %v354, %v851
        %v853 = vlaneseq
        %v854 = vshrl.u32 %v853, 7
        %v855 = vsub.s32 4, %v854
        %v856 = vrot.slane %v354, %v855
        %v857 = vlaneseq
        %v858 = vshrl.u32 %v857, 7
        %v859 = vsub.s32 5, %v858
        %v860 = vrot.slane %v354, %v859
        %v861 = vlaneseq
        %v862 = vshrl.u32 %v861, 7
        %v863 = vsub.s32 6, %v862
        %v864 = vrot.slane %v354, %v863
        %v865 = vlaneseq
        %v866 = vshrl.u32 %v865, 7
        %v867 = vsub.s32 7, %v866
        %v868 = vrot.slane %v354, %v867
        %v877 = vmul.f32 %v834, %v840
        %v878 = vmul.f32 %v833, %v844
        %v879 = vmul.f32 %v832, %v848
        %v880 = vmul.f32 %v831, %v852
        %v881 = vmul.f32 %v830, %v856
        %v882 = vmul.f32 %v829, %v860
        %v883 = vmul.f32 %v828, %v864
        %v884 = vmul.f32 %v835, %v868
        %885 = vrot.lane.b32.xlu0 %v357, 119
        %v886 = vpop.permute.xlu0 %885
        %887 = vrot.lane.b32.xlu0 %v358, 119
        %v888 = vpop.permute.xlu0 %887
        %889 = vrot.lane.b32.xlu0 %v359, 119
        %v890 = vpop.permute.xlu0 %889
        %891 = vrot.lane.b32.xlu0 %v360, 119
        %v892 = vpop.permute.xlu0 %891
        %893 = vrot.lane.b32.xlu0 %v361, 119
        %v894 = vpop.permute.xlu0 %893
        %895 = vrot.lane.b32.xlu0 %v362, 119
        %v896 = vpop.permute.xlu0 %895
        %897 = vrot.lane.b32.xlu0 %v363, 119
        %v898 = vpop.permute.xlu0 %897
        %899 = vrot.lane.b32.xlu0 %v364, 119
        %v900 = vpop.permute.xlu0 %899
        %vm901 = vcmp.lt.s32.totalorder %v382, 119
        %v902 = vsel %vm901, %v898, %v900
        %v903 = vsel %vm901, %v896, %v898
        %v904 = vsel %vm901, %v894, %v896
        %v905 = vsel %vm901, %v892, %v894
        %v906 = vsel %vm901, %v890, %v892
        %v907 = vsel %vm901, %v888, %v890
        %v908 = vsel %vm901, %v886, %v888
        %v909 = vsel %vm901, %v900, %v886
        %v911 = vlaneseq
        %v912 = vshrl.u32 %v911, 7
        %v913 = vsub.s32 0, %v912
        %v914 = vrot.slane %v356, %v913
        %v915 = vlaneseq
        %v916 = vshrl.u32 %v915, 7
        %v917 = vsub.s32 1, %v916
        %v918 = vrot.slane %v356, %v917
        %v919 = vlaneseq
        %v920 = vshrl.u32 %v919, 7
        %v921 = vsub.s32 2, %v920
        %v922 = vrot.slane %v356, %v921
        %v923 = vlaneseq
        %v924 = vshrl.u32 %v923, 7
        %v925 = vsub.s32 3, %v924
        %v926 = vrot.slane %v356, %v925
        %v927 = vlaneseq
        %v928 = vshrl.u32 %v927, 7
        %v929 = vsub.s32 4, %v928
        %v930 = vrot.slane %v356, %v929
        %v931 = vlaneseq
        %v932 = vshrl.u32 %v931, 7
        %v933 = vsub.s32 5, %v932
        %v934 = vrot.slane %v356, %v933
        %v935 = vlaneseq
        %v936 = vshrl.u32 %v935, 7
        %v937 = vsub.s32 6, %v936
        %v938 = vrot.slane %v356, %v937
        %v939 = vlaneseq
        %v940 = vshrl.u32 %v939, 7
        %v941 = vsub.s32 7, %v940
        %v942 = vrot.slane %v356, %v941
        %v951 = vmul.f32 %v908, %v914
        %v952 = vmul.f32 %v907, %v918
        %v953 = vmul.f32 %v906, %v922
        %v954 = vmul.f32 %v905, %v926
        %v955 = vmul.f32 %v904, %v930
        %v956 = vmul.f32 %v903, %v934
        %v957 = vmul.f32 %v902, %v938
        %v958 = vmul.f32 %v909, %v942
        %v959 = vld [vmem:[%s255] sm:$0xf]
        %v960 = vld [vmem:[%s255 + $0x4] sm:$0xf]
        %v961 = vld [vmem:[%s255 + $0x8] sm:$0xf]
        %v962 = vld [vmem:[%s255 + $0xc] sm:$0xf]
        %v963 = vpack.c.bf16 %v507, %v433
        %v964 = vpack.c.bf16 %v508, %v434
        %v965 = vpack.c.bf16 %v509, %v435
        %v966 = vpack.c.bf16 %v510, %v436
        %v967 = vpack.c.bf16 %v511, %v437
        %v968 = vpack.c.bf16 %v512, %v438
        %v969 = vpack.c.bf16 %v513, %v439
        %v970 = vpack.c.bf16 %v514, %v440
        %v971 = vpack.c.bf16 %v655, %v581
        %v972 = vpack.c.bf16 %v656, %v582
        %v973 = vpack.c.bf16 %v657, %v583
        %v974 = vpack.c.bf16 %v658, %v584
        %v975 = vpack.c.bf16 %v659, %v585
        %v976 = vpack.c.bf16 %v660, %v586
        %v977 = vpack.c.bf16 %v661, %v587
        %v978 = vpack.c.bf16 %v662, %v588
        %v979 = vpack.c.bf16 %v729, %v357
        %v980 = vpack.c.bf16 %v730, %v358
        %v981 = vpack.c.bf16 %v731, %v359
        %v982 = vpack.c.bf16 %v732, %v360
        %v983 = vpack.c.bf16 %v733, %v361
        %v984 = vpack.c.bf16 %v734, %v362
        %v985 = vpack.c.bf16 %v735, %v363
        %v986 = vpack.c.bf16 %v736, %v364
        %v987 = vpack.c.bf16 %v877, %v803
        %v988 = vpack.c.bf16 %v878, %v804
        %v989 = vpack.c.bf16 %v879, %v805
        %v990 = vpack.c.bf16 %v880, %v806
        %v991 = vpack.c.bf16 %v881, %v807
        %v992 = vpack.c.bf16 %v882, %v808
        %v993 = vpack.c.bf16 %v883, %v809
        %v994 = vpack.c.bf16 %v884, %v810
        %v995 = vpack.c.bf16 %v951, %v951
        %v996 = vpack.c.bf16 %v952, %v952
        %v997 = vpack.c.bf16 %v953, %v953
        %v998 = vpack.c.bf16 %v954, %v954
        %v999 = vpack.c.bf16 %v955, %v955
        %v1000 = vpack.c.bf16 %v956, %v956
        %v1001 = vpack.c.bf16 %v957, %v957
        %v1002 = vpack.c.bf16 %v958, %v958
        %v1003 = vld [vmem:[%s300] sm:$0xff]
        %v1004 = vld [vmem:[%s300 + $0x8] sm:$0xff]
        %v1005 = vld [vmem:[%s300 + $0x10] sm:$0xff]
        %v1006 = vld [vmem:[%s300 + $0x18] sm:$0xff]
        %1008 = vset.pattern.permute.xlu0 0
        %1009 = vperm.xlu0 %1008, %v1003
        %v1010 = vpop.permute.xlu0 %1009
        %1013 = vset.pattern.permute.xlu0 0
        %1014 = vperm.xlu0 %1013, %v1004
        %v1015 = vpop.permute.xlu0 %1014
        %1018 = vset.pattern.permute.xlu0 0
        %1019 = vperm.xlu0 %1018, %v1005
        %v1020 = vpop.permute.xlu0 %1019
        %1023 = vset.pattern.permute.xlu0 0
        %1024 = vperm.xlu0 %1023, %v1006
        %v1025 = vpop.permute.xlu0 %1024
        %v1031 = vunpack.c.l.b16 %v959
        %v1032 = vunpack.c.l.b16 %v960
        %v1033 = vunpack.c.l.b16 %v961
        %v1034 = vunpack.c.l.b16 %v962
        %v1035 = vpack.c.b16 %v1032, %v1031
        %v1036 = vpack.c.b16 %v1034, %v1033
        %vm1037 = vcmask 588800
        %v1039 = vsel %vm1037, %v1035, 0
        %v1042 = vsel %vm1037, %v1036, 0
        %vm1044 = vcmask 1043456
        %v1046 = vsel %vm1044, %v995, 0
        %v1049 = vsel %vm1044, %v996, 0
        %v1052 = vsel %vm1044, %v997, 0
        %v1055 = vsel %vm1044, %v998, 0
        %v1058 = vsel %vm1044, %v999, 0
        %v1061 = vsel %vm1044, %v1000, 0
        %v1064 = vsel %vm1044, %v1001, 0
        %v1067 = vsel %vm1044, %v1002, 0
        %1069 = vmatprep.subr.bf16.mxu0 %v964
        %1070 = vmatpush1.bf16.msra.mxu0 %v963
        %1071 = vmatprep.subr.bf16.mxu0 %v972
        %1072 = vmatpush1.bf16.msra.mxu0 %v971
        %1073 = vmatprep.subr.bf16.mxu0 %v980
        %1074 = vmatpush1.bf16.msra.mxu0 %v979
        %1075 = vmatprep.subr.bf16.mxu0 %v988
        %1076 = vmatpush1.bf16.msra.mxu0 %v987
        %1077 = vmatprep.subr.bf16.mxu0 %v1049
        %1078 = vmatpush1.bf16.msra.mxu0 %v1046
        %1079 = vmatprep.subr.bf16.mxu0 0
        %1080 = vmatpush1.bf16.msra.mxu0 0
        %1081 = vmatprep.subr.bf16.mxu0 0
        %1082 = vmatpush1.bf16.msra.mxu0 0
        %1083 = vmatprep.subr.bf16.mxu0 0
        %1084 = vmatpush1.bf16.msra.mxu0 0
        %1085 = vmatprep.subr.bf16.mxu0 0
        %1086 = vmatpush1.bf16.msra.mxu0 0
        %1087 = vmatprep.subr.bf16.mxu0 0
        %1088 = vmatpush1.bf16.msra.mxu0 0
        %1089 = vmatprep.subr.bf16.mxu0 0
        %1090 = vmatpush1.bf16.msra.mxu0 0
        %1091 = vmatprep.subr.bf16.mxu0 0
        %1092 = vmatpush1.bf16.msra.mxu0 0
        %1093 = vmatprep.subr.bf16.mxu0 0
        %1094 = vmatpush1.bf16.msra.mxu0 0
        %1095 = vmatprep.subr.bf16.mxu0 0
        %1096 = vmatpush1.bf16.msra.mxu0 0
        %1097 = vmatprep.subr.bf16.mxu0 0
        %1098 = vmatpush1.bf16.msra.mxu0 0
        %1099 = vmatprep.subr.bf16.mxu0 0
        %1100 = vmatpush1.bf16.msra.mxu0 0
        %1101 = vmatprep.mubr.bf16.mxu0 0
        %1102 = vmatmul.mubr.bf16.gmra.mrb[0].mxu0 %v1039
        %v1103 = vpop.f32.mrb[0].mxu0
        %v1104 = vadd.f32 %v1010, %v1103
        %v1105 = vpop.f32.mrb[0].mxu0
        %v1106 = vadd.f32 %v1010, %v1105
        %v1107 = vpop.f32.mrb[0].mxu0
        %v1108 = vadd.f32 %v1015, %v1107
        %v1109 = vpop.f32.mrb[0].mxu0
        %v1110 = vadd.f32 %v1015, %v1109
        %1111 = vmatprep.mubr.bf16.mxu0 0
        %1112 = vmatmul.mubr.bf16.gmra.mrb[0].mxu0 %v1042
        %v1113 = vpop.f32.mrb[0].mxu0
        %v1114 = vadd.f32 %v1020, %v1113
        %v1115 = vpop.f32.mrb[0].mxu0
        %v1116 = vadd.f32 %v1020, %v1115
        %v1117 = vpop.f32.mrb[0].mxu0
        %v1118 = vadd.f32 %v1025, %v1117
        %v1119 = vpop.f32.mrb[0].mxu0
        %v1120 = vadd.f32 %v1025, %v1119
        %1121 = vdwg.mxu0
        %1122 = vmatprep.subr.bf16.mxu0 %v966
        %1123 = vmatpush1.bf16.msra.mxu0 %v965
        %1124 = vmatprep.subr.bf16.mxu0 %v974
        %1125 = vmatpush1.bf16.msra.mxu0 %v973
        %1126 = vmatprep.subr.bf16.mxu0 %v982
        %1127 = vmatpush1.bf16.msra.mxu0 %v981
        %1128 = vmatprep.subr.bf16.mxu0 %v990
        %1129 = vmatpush1.bf16.msra.mxu0 %v989
        %1130 = vmatprep.subr.bf16.mxu0 %v1055
        %1131 = vmatpush1.bf16.msra.mxu0 %v1052
        %1132 = vmatprep.subr.bf16.mxu0 0
        %1133 = vmatpush1.bf16.msra.mxu0 0
        %1134 = vmatprep.subr.bf16.mxu0 0
        %1135 = vmatpush1.bf16.msra.mxu0 0
        %1136 = vmatprep.subr.bf16.mxu0 0
        %1137 = vmatpush1.bf16.msra.mxu0 0
        %1138 = vmatprep.subr.bf16.mxu0 0
        %1139 = vmatpush1.bf16.msra.mxu0 0
        %1140 = vmatprep.subr.bf16.mxu0 0
        %1141 = vmatpush1.bf16.msra.mxu0 0
        %1142 = vmatprep.subr.bf16.mxu0 0
        %1143 = vmatpush1.bf16.msra.mxu0 0
        %1144 = vmatprep.subr.bf16.mxu0 0
        %1145 = vmatpush1.bf16.msra.mxu0 0
        %1146 = vmatprep.subr.bf16.mxu0 0
        %1147 = vmatpush1.bf16.msra.mxu0 0
        %1148 = vmatprep.subr.bf16.mxu0 0
        %1149 = vmatpush1.bf16.msra.mxu0 0
        %1150 = vmatprep.subr.bf16.mxu0 0
        %1151 = vmatpush1.bf16.msra.mxu0 0
        %1152 = vmatprep.subr.bf16.mxu0 0
        %1153 = vmatpush1.bf16.msra.mxu0 0
        %1154 = vmatprep.mubr.bf16.mxu0 0
        %1155 = vmatmul.mubr.bf16.gmra.mrb[0].mxu0 %v1039
        %v1156 = vpop.f32.mrb[0].mxu0
        %v1157 = vadd.f32 %v1010, %v1156
        %v1158 = vpop.f32.mrb[0].mxu0
        %v1159 = vadd.f32 %v1010, %v1158
        %v1160 = vpop.f32.mrb[0].mxu0
        %v1161 = vadd.f32 %v1015, %v1160
        %v1162 = vpop.f32.mrb[0].mxu0
        %v1163 = vadd.f32 %v1015, %v1162
        %1164 = vmatprep.mubr.bf16.mxu0 0
        %1165 = vmatmul.mubr.bf16.gmra.mrb[0].mxu0 %v1042
        %v1166 = vpop.f32.mrb[0].mxu0
        %v1167 = vadd.f32 %v1020, %v1166
        %v1168 = vpop.f32.mrb[0].mxu0
        %v1169 = vadd.f32 %v1020, %v1168
        %v1170 = vpop.f32.mrb[0].mxu0
        %v1171 = vadd.f32 %v1025, %v1170
        %v1172 = vpop.f32.mrb[0].mxu0
        %v1173 = vadd.f32 %v1025, %v1172
        %1174 = vdwg.mxu0
        %1175 = vmatprep.subr.bf16.mxu0 %v968
        %1176 = vmatpush1.bf16.msra.mxu0 %v967
        %1177 = vmatprep.subr.bf16.mxu0 %v976
        %1178 = vmatpush1.bf16.msra.mxu0 %v975
        %1179 = vmatprep.subr.bf16.mxu0 %v984
        %1180 = vmatpush1.bf16.msra.mxu0 %v983
        %1181 = vmatprep.subr.bf16.mxu0 %v992
        %1182 = vmatpush1.bf16.msra.mxu0 %v991
        %1183 = vmatprep.subr.bf16.mxu0 %v1061
        %1184 = vmatpush1.bf16.msra.mxu0 %v1058
        %1185 = vmatprep.subr.bf16.mxu0 0
        %1186 = vmatpush1.bf16.msra.mxu0 0
        %1187 = vmatprep.subr.bf16.mxu0 0
        %1188 = vmatpush1.bf16.msra.mxu0 0
        %1189 = vmatprep.subr.bf16.mxu0 0
        %1190 = vmatpush1.bf16.msra.mxu0 0
        %1191 = vmatprep.subr.bf16.mxu0 0
        %1192 = vmatpush1.bf16.msra.mxu0 0
        %1193 = vmatprep.subr.bf16.mxu0 0
        %1194 = vmatpush1.bf16.msra.mxu0 0
        %1195 = vmatprep.subr.bf16.mxu0 0
        %1196 = vmatpush1.bf16.msra.mxu0 0
        %1197 = vmatprep.subr.bf16.mxu0 0
        %1198 = vmatpush1.bf16.msra.mxu0 0
        %1199 = vmatprep.subr.bf16.mxu0 0
        %1200 = vmatpush1.bf16.msra.mxu0 0
        %1201 = vmatprep.subr.bf16.mxu0 0
        %1202 = vmatpush1.bf16.msra.mxu0 0
        %1203 = vmatprep.subr.bf16.mxu0 0
        %1204 = vmatpush1.bf16.msra.mxu0 0
        %1205 = vmatprep.subr.bf16.mxu0 0
        %1206 = vmatpush1.bf16.msra.mxu0 0
        %1207 = vmatprep.mubr.bf16.mxu0 0
        %1208 = vmatmul.mubr.bf16.gmra.mrb[0].mxu0 %v1039
        %v1209 = vpop.f32.mrb[0].mxu0
        %v1210 = vadd.f32 %v1010, %v1209
        %v1211 = vpop.f32.mrb[0].mxu0
        %v1212 = vadd.f32 %v1010, %v1211
        %v1213 = vpop.f32.mrb[0].mxu0
        %v1214 = vadd.f32 %v1015, %v1213
        %v1215 = vpop.f32.mrb[0].mxu0
        %v1216 = vadd.f32 %v1015, %v1215
        %1217 = vmatprep.mubr.bf16.mxu0 0
        %1218 = vmatmul.mubr.bf16.gmra.mrb[0].mxu0 %v1042
        %v1219 = vpop.f32.mrb[0].mxu0
        %v1220 = vadd.f32 %v1020, %v1219
        %v1221 = vpop.f32.mrb[0].mxu0
        %v1222 = vadd.f32 %v1020, %v1221
        %v1223 = vpop.f32.mrb[0].mxu0
        %v1224 = vadd.f32 %v1025, %v1223
        %v1225 = vpop.f32.mrb[0].mxu0
        %v1226 = vadd.f32 %v1025, %v1225
        %1227 = vdwg.mxu0
        %1228 = vmatprep.subr.bf16.mxu0 %v970
        %1229 = vmatpush1.bf16.msra.mxu0 %v969
        %1230 = vmatprep.subr.bf16.mxu0 %v978
        %1231 = vmatpush1.bf16.msra.mxu0 %v977
        %1232 = vmatprep.subr.bf16.mxu0 %v986
        %1233 = vmatpush1.bf16.msra.mxu0 %v985
        %1234 = vmatprep.subr.bf16.mxu0 %v994
        %1235 = vmatpush1.bf16.msra.mxu0 %v993
        %1236 = vmatprep.subr.bf16.mxu0 %v1067
        %1237 = vmatpush1.bf16.msra.mxu0 %v1064
        %1238 = vmatprep.subr.bf16.mxu0 0
        %1239 = vmatpush1.bf16.msra.mxu0 0
        %1240 = vmatprep.subr.bf16.mxu0 0
        %1241 = vmatpush1.bf16.msra.mxu0 0
        %1242 = vmatprep.subr.bf16.mxu0 0
        %1243 = vmatpush1.bf16.msra.mxu0 0
        %1244 = vmatprep.subr.bf16.mxu0 0
        %1245 = vmatpush1.bf16.msra.mxu0 0
        %1246 = vmatprep.subr.bf16.mxu0 0
        %1247 = vmatpush1.bf16.msra.mxu0 0
        %1248 = vmatprep.subr.bf16.mxu0 0
        %1249 = vmatpush1.bf16.msra.mxu0 0
        %1250 = vmatprep.subr.bf16.mxu0 0
        %1251 = vmatpush1.bf16.msra.mxu0 0
        %1252 = vmatprep.subr.bf16.mxu0 0
        %1253 = vmatpush1.bf16.msra.mxu0 0
        %1254 = vmatprep.subr.bf16.mxu0 0
        %1255 = vmatpush1.bf16.msra.mxu0 0
        %1256 = vmatprep.subr.bf16.mxu0 0
        %1257 = vmatpush1.bf16.msra.mxu0 0
        %1258 = vmatprep.subr.bf16.mxu0 0
        %1259 = vmatpush1.bf16.msra.mxu0 0
        %1260 = vmatprep.mubr.bf16.mxu0 0
        %1261 = vmatmul.mubr.bf16.gmra.mrb[0].mxu0 %v1039
        %v1262 = vpop.f32.mrb[0].mxu0
        %v1263 = vadd.f32 %v1010, %v1262
        %v1264 = vpop.f32.mrb[0].mxu0
        %v1265 = vadd.f32 %v1010, %v1264
        %v1266 = vpop.f32.mrb[0].mxu0
        %v1267 = vadd.f32 %v1015, %v1266
        %v1268 = vpop.f32.mrb[0].mxu0
        %v1269 = vadd.f32 %v1015, %v1268
        %1270 = vmatprep.mubr.bf16.mxu0 0
        %1271 = vmatmul.mubr.bf16.gmra.mrb[0].mxu0 %v1042
        %v1272 = vpop.f32.mrb[0].mxu0
        %v1273 = vadd.f32 %v1020, %v1272
        %v1274 = vpop.f32.mrb[0].mxu0
        %v1275 = vadd.f32 %v1020, %v1274
        %v1276 = vpop.f32.mrb[0].mxu0
        %v1277 = vadd.f32 %v1025, %v1276
        %v1278 = vpop.f32.mrb[0].mxu0
        %v1279 = vadd.f32 %v1025, %v1278
        %1280 = vdwg.mxu0
        %1281 = vst [vmem:[#allocation3] sm:$0xff] %v1104
        %1282 = vst [vmem:[#allocation3 + $0x8] sm:$0xff] %v1106
        %1283 = vst [vmem:[#allocation3 + $0x10] sm:$0xff] %v1157
        %1284 = vst [vmem:[#allocation3 + $0x18] sm:$0xff] %v1159
        %1285 = vst [vmem:[#allocation3 + $0x20] sm:$0xff] %v1210
        %1286 = vst [vmem:[#allocation3 + $0x28] sm:$0xff] %v1212
        %1287 = vst [vmem:[#allocation3 + $0x30] sm:$0xff] %v1263
        %1288 = vst [vmem:[#allocation3 + $0x38] sm:$0xff] %v1265
        %1289 = vst [vmem:[#allocation3 + $0x40] sm:$0xff] %v1108
        %1290 = vst [vmem:[#allocation3 + $0x48] sm:$0xff] %v1110
        %1291 = vst [vmem:[#allocation3 + $0x50] sm:$0xff] %v1161
        %1292 = vst [vmem:[#allocation3 + $0x58] sm:$0xff] %v1163
        %1293 = vst [vmem:[#allocation3 + $0x60] sm:$0xff] %v1214
        %1294 = vst [vmem:[#allocation3 + $0x68] sm:$0xff] %v1216
        %1295 = vst [vmem:[#allocation3 + $0x70] sm:$0xff] %v1267
        %1296 = vst [vmem:[#allocation3 + $0x78] sm:$0xff] %v1269
        %1297 = vst [vmem:[#allocation3 + $0x80] sm:$0xff] %v1114
        %1298 = vst [vmem:[#allocation3 + $0x88] sm:$0xff] %v1116
        %1299 = vst [vmem:[#allocation3 + $0x90] sm:$0xff] %v1167
        %1300 = vst [vmem:[#allocation3 + $0x98] sm:$0xff] %v1169
        %1301 = vst [vmem:[#allocation3 + $0xa0] sm:$0xff] %v1220
        %1302 = vst [vmem:[#allocation3 + $0xa8] sm:$0xff] %v1222
        %1303 = vst [vmem:[#allocation3 + $0xb0] sm:$0xff] %v1273
        %1304 = vst [vmem:[#allocation3 + $0xb8] sm:$0xff] %v1275
        %1305 = vst [vmem:[#allocation3 + $0xc0] sm:$0xff] %v1118
        %1306 = vst [vmem:[#allocation3 + $0xc8] sm:$0xff] %v1120
        %1307 = vst [vmem:[#allocation3 + $0xd0] sm:$0xff] %v1171
        %1308 = vst [vmem:[#allocation3 + $0xd8] sm:$0xff] %v1173
        %1309 = vst [vmem:[#allocation3 + $0xe0] sm:$0xff] %v1224
        %1310 = vst [vmem:[#allocation3 + $0xe8] sm:$0xff] %v1226
        %1311 = vst [vmem:[#allocation3 + $0xf0] sm:$0xff] %v1277
        %1312 = vst [vmem:[#allocation3 + $0xf8] sm:$0xff] %v1279
        %v1313 = vld [vmem:[%s264] sm:$0xf]
        %v1314 = vld [vmem:[%s264 + $0x4] sm:$0xf]
        %v1315 = vld [vmem:[%s264 + $0x8] sm:$0xf]
        %v1316 = vld [vmem:[%s264 + $0xc] sm:$0xf]
        %1317 = vrot.lane.b32.xlu0 0.0, 9
        %v1318 = vpop.permute.xlu0 %1317
        %v1319 = vmul.f32 %v1318, %v396
        %1320 = vrot.lane.b32.xlu0 0.0, 8
        %v1321 = vpop.permute.xlu0 %1320
        %v1322 = vmul.f32 %v1321, %v470
        %1323 = vrot.lane.b32.xlu0 0.0, 7
        %v1324 = vpop.permute.xlu0 %1323
        %v1325 = vmul.f32 %v1324, %v544
        %1326 = vrot.lane.b32.xlu0 0.0, 1
        %v1327 = vpop.permute.xlu0 %1326
        %v1328 = vmul.f32 %v1327, %v618
        %1329 = vrot.lane.b32.xlu0 0.0, 127
        %v1330 = vpop.permute.xlu0 %1329
        %v1331 = vmul.f32 %v1330, %v692
        %1332 = vrot.lane.b32.xlu0 0.0, 121
        %v1333 = vpop.permute.xlu0 %1332
        %v1334 = vmul.f32 %v1333, %v766
        %1335 = vrot.lane.b32.xlu0 0.0, 120
        %v1336 = vpop.permute.xlu0 %1335
        %v1337 = vmul.f32 %v1336, %v840
        %1338 = vrot.lane.b32.xlu0 0.0, 119
        %v1339 = vpop.permute.xlu0 %1338
        %v1340 = vmul.f32 %v1339, %v914
        %v1341 = vld [vmem:[#allocation3] sm:$0xff]
        %v1342 = vld [vmem:[#allocation3 + $0x40] sm:$0xff]
        %v1343 = vld [vmem:[#allocation3 + $0x80] sm:$0xff]
        %v1344 = vld [vmem:[#allocation3 + $0xc0] sm:$0xff]
        %v1345 = vpack.c.bf16 %v1322, %v1319
        %v1346 = vpack.c.bf16 %v1328, %v1325
        %v1347 = vpack.c.bf16 %v1331, 0.0
        %v1348 = vpack.c.bf16 %v1337, %v1334
        %v1349 = vpack.c.bf16 %v1340, %v1340
        %v1354 = vunpack.c.l.b16 %v1313
        %v1355 = vunpack.c.l.b16 %v1314
        %v1356 = vunpack.c.l.b16 %v1315
        %v1357 = vunpack.c.l.b16 %v1316
        %v1358 = vpack.c.b16 %v1355, %v1354
        %v1359 = vpack.c.b16 %v1357, %v1356
        %v1361 = vsel %vm1037, %v1358, 0
        %v1364 = vsel %vm1037, %v1359, 0
        %v1367 = vsel %vm1044, %v1349, 0
        %1369 = vmatprep.subr.bf16.mxu0 0
        %1370 = vmatpush1.bf16.msra.mxu0 %v1345
        %1371 = vmatprep.subr.bf16.mxu0 0
        %1372 = vmatpush1.bf16.msra.mxu0 %v1346
        %1373 = vmatprep.subr.bf16.mxu0 0
        %1374 = vmatpush1.bf16.msra.mxu0 %v1347
        %1375 = vmatprep.subr.bf16.mxu0 0
        %1376 = vmatpush1.bf16.msra.mxu0 %v1348
        %1377 = vmatprep.subr.bf16.mxu0 0
        %1378 = vmatpush1.bf16.msra.mxu0 %v1367
        %1379 = vmatprep.subr.bf16.mxu0 0
        %1380 = vmatpush1.bf16.msra.mxu0 0
        %1381 = vmatprep.subr.bf16.mxu0 0
        %1382 = vmatpush1.bf16.msra.mxu0 0
        %1383 = vmatprep.subr.bf16.mxu0 0
        %1384 = vmatpush1.bf16.msra.mxu0 0
        %1385 = vmatprep.subr.bf16.mxu0 0
        %1386 = vmatpush1.bf16.msra.mxu0 0
        %1387 = vmatprep.subr.bf16.mxu0 0
        %1388 = vmatpush1.bf16.msra.mxu0 0
        %1389 = vmatprep.subr.bf16.mxu0 0
        %1390 = vmatpush1.bf16.msra.mxu0 0
        %1391 = vmatprep.subr.bf16.mxu0 0
        %1392 = vmatpush1.bf16.msra.mxu0 0
        %1393 = vmatprep.subr.bf16.mxu0 0
        %1394 = vmatpush1.bf16.msra.mxu0 0
        %1395 = vmatprep.subr.bf16.mxu0 0
        %1396 = vmatpush1.bf16.msra.mxu0 0
        %1397 = vmatprep.subr.bf16.mxu0 0
        %1398 = vmatpush1.bf16.msra.mxu0 0
        %1399 = vmatprep.subr.bf16.mxu0 0
        %1400 = vmatpush1.bf16.msra.mxu0 0
        %1401 = vmatprep.mubr.bf16.mxu0 0
        %1402 = vmatmul.mubr.bf16.gmra.mrb[0].mxu0 %v1361
        %v1403 = vpop.f32.mrb[0].mxu0
        %v1404 = vadd.f32 0.0, %v1403
        %v1405 = vpop.f32.mrb[0].mxu0
        %v1406 = vpop.f32.mrb[0].mxu0
        %v1407 = vadd.f32 0.0, %v1406
        %v1408 = vpop.f32.mrb[0].mxu0
        %1409 = vmatprep.mubr.bf16.mxu0 0
        %1410 = vmatmul.mubr.bf16.gmra.mrb[0].mxu0 %v1364
        %v1411 = vpop.f32.mrb[0].mxu0
        %v1412 = vadd.f32 0.0, %v1411
        %v1413 = vpop.f32.mrb[0].mxu0
        %v1414 = vpop.f32.mrb[0].mxu0
        %v1415 = vadd.f32 0.0, %v1414
        %v1416 = vpop.f32.mrb[0].mxu0
        %1417 = vdwg.mxu0
        %v1418 = vadd.f32 %v1341, %v1404
        %v1419 = vadd.f32 %v1342, %v1407
        %v1420 = vadd.f32 %v1343, %v1412
        %v1421 = vadd.f32 %v1344, %v1415
        %v1422 = vxor.u32 %v1418, 2147483648
        %v1423 = vmul.f32 %v1422, 1.442695
        %v1424 = vpow.pop %v1423
        %v1425 = vadd.f32 %v1424, 1.0
        %v1426 = vrcp.pop %v1425
        %v1427 = vmul.f32 1.0, %v1426
        %v1428 = vxor.u32 %v1419, 2147483648
        %v1429 = vmul.f32 %v1428, 1.442695
        %v1430 = vpow.pop %v1429
        %v1431 = vadd.f32 %v1430, 1.0
        %v1432 = vrcp.pop %v1431
        %v1433 = vmul.f32 1.0, %v1432
        %v1434 = vtanh.pop %v1420
        %v1435 = vxor.u32 %v1421, 2147483648
        %v1436 = vmul.f32 %v1435, 1.442695
        %v1437 = vpow.pop %v1436
        %v1438 = vadd.f32 %v1437, 1.0
        %v1439 = vrcp.pop %v1438
        %v1440 = vmul.f32 1.0, %v1439
        %v1441 = vmul.f32 %v1433, 0.0
        %v1442 = vmul.f32 %v1427, %v1434
        %v1443 = vadd.f32 %v1441, %v1442
        %v1444 = vtanh.pop %v1443
        %v1445 = vmul.f32 %v1440, %v1444
        %1446 = vst [vmem:[#allocation10] sm:$0xff] %v1445
        %1447 = vrot.lane.b32.xlu0 %v1445, 9
        %v1448 = vpop.permute.xlu0 %1447
        %v1449 = vmul.f32 %v1448, %v396
        %1450 = vrot.lane.b32.xlu0 %v1445, 8
        %v1451 = vpop.permute.xlu0 %1450
        %v1452 = vmul.f32 %v1451, %v470
        %1453 = vrot.lane.b32.xlu0 %v1445, 7
        %v1454 = vpop.permute.xlu0 %1453
        %v1455 = vmul.f32 %v1454, %v544
        %1456 = vrot.lane.b32.xlu0 %v1445, 1
        %v1457 = vpop.permute.xlu0 %1456
        %v1458 = vmul.f32 %v1457, %v618
        %1459 = vrot.lane.b32.xlu0 %v1445, 127
        %v1460 = vpop.permute.xlu0 %1459
        %v1461 = vmul.f32 %v1460, %v692
        %1462 = vrot.lane.b32.xlu0 %v1445, 121
        %v1463 = vpop.permute.xlu0 %1462
        %v1464 = vmul.f32 %v1463, %v766
        %1465 = vrot.lane.b32.xlu0 %v1445, 120
        %v1466 = vpop.permute.xlu0 %1465
        %v1467 = vmul.f32 %v1466, %v840
        %1468 = vrot.lane.b32.xlu0 %v1445, 119
        %v1469 = vpop.permute.xlu0 %1468
        %v1470 = vmul.f32 %v1469, %v914
        %v1471 = vld [vmem:[#allocation3 + $0x8] sm:$0xff]
        %v1472 = vld [vmem:[#allocation3 + $0x48] sm:$0xff]
        %v1473 = vld [vmem:[#allocation3 + $0x88] sm:$0xff]
        %v1474 = vld [vmem:[#allocation3 + $0xc8] sm:$0xff]
        %v1475 = vpack.c.bf16 %v1452, %v1449
        %v1476 = vpack.c.bf16 %v1458, %v1455
        %v1477 = vpack.c.bf16 %v1461, %v1445
        %v1478 = vpack.c.bf16 %v1467, %v1464
        %v1479 = vpack.c.bf16 %v1470, %v1470
        %v1481 = vsel %vm1044, %v1479, 0
        %1483 = vmatprep.subr.bf16.mxu0 0
        %1484 = vmatpush1.bf16.msra.mxu0 %v1475
        %1485 = vmatprep.subr.bf16.mxu0 0
        %1486 = vmatpush1.bf16.msra.mxu0 %v1476
        %1487 = vmatprep.subr.bf16.mxu0 0
        %1488 = vmatpush1.bf16.msra.mxu0 %v1477
        %1489 = vmatprep.subr.bf16.mxu0 0
        %1490 = vmatpush1.bf16.msra.mxu0 %v1478
        %1491 = vmatprep.subr.bf16.mxu0 0
        %1492 = vmatpush1.bf16.msra.mxu0 %v1481
        %1493 = vmatprep.subr.bf16.mxu0 0
        %1494 = vmatpush1.bf16.msra.mxu0 0
        %1495 = vmatprep.subr.bf16.mxu0 0
        %1496 = vmatpush1.bf16.msra.mxu0 0
        %1497 = vmatprep.subr.bf16.mxu0 0
        %1498 = vmatpush1.bf16.msra.mxu0 0
        %1499 = vmatprep.subr.bf16.mxu0 0
        %1500 = vmatpush1.bf16.msra.mxu0 0
        %1501 = vmatprep.subr.bf16.mxu0 0
        %1502 = vmatpush1.bf16.msra.mxu0 0
        %1503 = vmatprep.subr.bf16.mxu0 0
        %1504 = vmatpush1.bf16.msra.mxu0 0
        %1505 = vmatprep.subr.bf16.mxu0 0
        %1506 = vmatpush1.bf16.msra.mxu0 0
        %1507 = vmatprep.subr.bf16.mxu0 0
        %1508 = vmatpush1.bf16.msra.mxu0 0
        %1509 = vmatprep.subr.bf16.mxu0 0
        %1510 = vmatpush1.bf16.msra.mxu0 0
        %1511 = vmatprep.subr.bf16.mxu0 0
        %1512 = vmatpush1.bf16.msra.mxu0 0
        %1513 = vmatprep.subr.bf16.mxu0 0
        %1514 = vmatpush1.bf16.msra.mxu0 0
        %1515 = vmatprep.mubr.bf16.mxu0 0
        %1516 = vmatmul.mubr.bf16.gmra.mrb[0].mxu0 %v1361
        %v1517 = vpop.f32.mrb[0].mxu0
        %v1518 = vadd.f32 0.0, %v1517
        %v1519 = vpop.f32.mrb[0].mxu0
        %v1520 = vpop.f32.mrb[0].mxu0
        %v1521 = vadd.f32 0.0, %v1520
        %v1522 = vpop.f32.mrb[0].mxu0
        %1523 = vmatprep.mubr.bf16.mxu0 0
        %1524 = vmatmul.mubr.bf16.gmra.mrb[0].mxu0 %v1364
        %v1525 = vpop.f32.mrb[0].mxu0
        %v1526 = vadd.f32 0.0, %v1525
        %v1527 = vpop.f32.mrb[0].mxu0
        %v1528 = vpop.f32.mrb[0].mxu0
        %v1529 = vadd.f32 0.0, %v1528
        %v1530 = vpop.f32.mrb[0].mxu0
        %1531 = vdwg.mxu0
        %v1532 = vadd.f32 %v1471, %v1518
        %v1533 = vadd.f32 %v1472, %v1521
        %v1534 = vadd.f32 %v1473, %v1526
        %v1535 = vadd.f32 %v1474, %v1529
        %v1536 = vxor.u32 %v1532, 2147483648
        %v1537 = vmul.f32 %v1536, 1.442695
        %v1538 = vpow.pop %v1537
        %v1539 = vadd.f32 %v1538, 1.0
        %v1540 = vrcp.pop %v1539
        %v1541 = vmul.f32 1.0, %v1540
        %v1542 = vxor.u32 %v1533, 2147483648
        %v1543 = vmul.f32 %v1542, 1.442695
        %v1544 = vpow.pop %v1543
        %v1545 = vadd.f32 %v1544, 1.0
        %v1546 = vrcp.pop %v1545
        %v1547 = vmul.f32 1.0, %v1546
        %v1548 = vtanh.pop %v1534
        %v1549 = vxor.u32 %v1535, 2147483648
        %v1550 = vmul.f32 %v1549, 1.442695
        %v1551 = vpow.pop %v1550
        %v1552 = vadd.f32 %v1551, 1.0
        %v1553 = vrcp.pop %v1552
        %v1554 = vmul.f32 1.0, %v1553
        %v1555 = vmul.f32 %v1547, %v1443
        %v1556 = vmul.f32 %v1541, %v1548
        %v1557 = vadd.f32 %v1555, %v1556
        %v1558 = vtanh.pop %v1557
        %v1559 = vmul.f32 %v1554, %v1558
        %1560 = vst [vmem:[#allocation10 + $0x8] sm:$0xff] %v1559
        %1561 = vrot.lane.b32.xlu0 %v1559, 9
        %v1562 = vpop.permute.xlu0 %1561
        %v1563 = vmul.f32 %v1562, %v396
        %1564 = vrot.lane.b32.xlu0 %v1559, 8
        %v1565 = vpop.permute.xlu0 %1564
        %v1566 = vmul.f32 %v1565, %v470
        %1567 = vrot.lane.b32.xlu0 %v1559, 7
        %v1568 = vpop.permute.xlu0 %1567
        %v1569 = vmul.f32 %v1568, %v544
        %1570 = vrot.lane.b32.xlu0 %v1559, 1
        %v1571 = vpop.permute.xlu0 %1570
        %v1572 = vmul.f32 %v1571, %v618
        %1573 = vrot.lane.b32.xlu0 %v1559, 127
        %v1574 = vpop.permute.xlu0 %1573
        %v1575 = vmul.f32 %v1574, %v692
        %1576 = vrot.lane.b32.xlu0 %v1559, 121
        %v1577 = vpop.permute.xlu0 %1576
        %v1578 = vmul.f32 %v1577, %v766
        %1579 = vrot.lane.b32.xlu0 %v1559, 120
        %v1580 = vpop.permute.xlu0 %1579
        %v1581 = vmul.f32 %v1580, %v840
        %1582 = vrot.lane.b32.xlu0 %v1559, 119
        %v1583 = vpop.permute.xlu0 %1582
        %v1584 = vmul.f32 %v1583, %v914
        %v1585 = vld [vmem:[#allocation3 + $0x10] sm:$0xff]
        %v1586 = vld [vmem:[#allocation3 + $0x50] sm:$0xff]
        %v1587 = vld [vmem:[#allocation3 + $0x90] sm:$0xff]
        %v1588 = vld [vmem:[#allocation3 + $0xd0] sm:$0xff]
        %v1589 = vpack.c.bf16 %v1566, %v1563
        %v1590 = vpack.c.bf16 %v1572, %v1569
        %v1591 = vpack.c.bf16 %v1575, %v1559
        %v1592 = vpack.c.bf16 %v1581, %v1578
        %v1593 = vpack.c.bf16 %v1584, %v1584
        %v1595 = vsel %vm1044, %v1593, 0
        %1597 = vmatprep.subr.bf16.mxu0 0
        %1598 = vmatpush1.bf16.msra.mxu0 %v1589
        %1599 = vmatprep.subr.bf16.mxu0 0
        %1600 = vmatpush1.bf16.msra.mxu0 %v1590
        %1601 = vmatprep.subr.bf16.mxu0 0
        %1602 = vmatpush1.bf16.msra.mxu0 %v1591
        %1603 = vmatprep.subr.bf16.mxu0 0
        %1604 = vmatpush1.bf16.msra.mxu0 %v1592
        %1605 = vmatprep.subr.bf16.mxu0 0
        %1606 = vmatpush1.bf16.msra.mxu0 %v1595
        %1607 = vmatprep.subr.bf16.mxu0 0
        %1608 = vmatpush1.bf16.msra.mxu0 0
        %1609 = vmatprep.subr.bf16.mxu0 0
        %1610 = vmatpush1.bf16.msra.mxu0 0
        %1611 = vmatprep.subr.bf16.mxu0 0
        %1612 = vmatpush1.bf16.msra.mxu0 0
        %1613 = vmatprep.subr.bf16.mxu0 0
        %1614 = vmatpush1.bf16.msra.mxu0 0
        %1615 = vmatprep.subr.bf16.mxu0 0
        %1616 = vmatpush1.bf16.msra.mxu0 0
        %1617 = vmatprep.subr.bf16.mxu0 0
        %1618 = vmatpush1.bf16.msra.mxu0 0
        %1619 = vmatprep.subr.bf16.mxu0 0
        %1620 = vmatpush1.bf16.msra.mxu0 0
        %1621 = vmatprep.subr.bf16.mxu0 0
        %1622 = vmatpush1.bf16.msra.mxu0 0
        %1623 = vmatprep.subr.bf16.mxu0 0
        %1624 = vmatpush1.bf16.msra.mxu0 0
        %1625 = vmatprep.subr.bf16.mxu0 0
        %1626 = vmatpush1.bf16.msra.mxu0 0
        %1627 = vmatprep.subr.bf16.mxu0 0
        %1628 = vmatpush1.bf16.msra.mxu0 0
        %1629 = vmatprep.mubr.bf16.mxu0 0
        %1630 = vmatmul.mubr.bf16.gmra.mrb[0].mxu0 %v1361
        %v1631 = vpop.f32.mrb[0].mxu0
        %v1632 = vadd.f32 0.0, %v1631
        %v1633 = vpop.f32.mrb[0].mxu0
        %v1634 = vpop.f32.mrb[0].mxu0
        %v1635 = vadd.f32 0.0, %v1634
        %v1636 = vpop.f32.mrb[0].mxu0
        %1637 = vmatprep.mubr.bf16.mxu0 0
        %1638 = vmatmul.mubr.bf16.gmra.mrb[0].mxu0 %v1364
        %v1639 = vpop.f32.mrb[0].mxu0
        %v1640 = vadd.f32 0.0, %v1639
        %v1641 = vpop.f32.mrb[0].mxu0
        %v1642 = vpop.f32.mrb[0].mxu0
        %v1643 = vadd.f32 0.0, %v1642
        %v1644 = vpop.f32.mrb[0].mxu0
        %1645 = vdwg.mxu0
        %v1646 = vadd.f32 %v1585, %v1632
        %v1647 = vadd.f32 %v1586, %v1635
        %v1648 = vadd.f32 %v1587, %v1640
        %v1649 = vadd.f32 %v1588, %v1643
        %v1650 = vxor.u32 %v1646, 2147483648
        %v1651 = vmul.f32 %v1650, 1.442695
        %v1652 = vpow.pop %v1651
        %v1653 = vadd.f32 %v1652, 1.0
        %v1654 = vrcp.pop %v1653
        %v1655 = vmul.f32 1.0, %v1654
        %v1656 = vxor.u32 %v1647, 2147483648
        %v1657 = vmul.f32 %v1656, 1.442695
        %v1658 = vpow.pop %v1657
        %v1659 = vadd.f32 %v1658, 1.0
        %v1660 = vrcp.pop %v1659
        %v1661 = vmul.f32 1.0, %v1660
        %v1662 = vtanh.pop %v1648
        %v1663 = vxor.u32 %v1649, 2147483648
        %v1664 = vmul.f32 %v1663, 1.442695
        %v1665 = vpow.pop %v1664
        %v1666 = vadd.f32 %v1665, 1.0
        %v1667 = vrcp.pop %v1666
        %v1668 = vmul.f32 1.0, %v1667
        %v1669 = vmul.f32 %v1661, %v1557
        %v1670 = vmul.f32 %v1655, %v1662
        %v1671 = vadd.f32 %v1669, %v1670
        %v1672 = vtanh.pop %v1671
        %v1673 = vmul.f32 %v1668, %v1672
        %1674 = vst [vmem:[#allocation10 + $0x10] sm:$0xff] %v1673
        %1675 = vrot.lane.b32.xlu0 %v1673, 9
        %v1676 = vpop.permute.xlu0 %1675
        %v1677 = vmul.f32 %v1676, %v396
        %1678 = vrot.lane.b32.xlu0 %v1673, 8
        %v1679 = vpop.permute.xlu0 %1678
        %v1680 = vmul.f32 %v1679, %v470
        %1681 = vrot.lane.b32.xlu0 %v1673, 7
        %v1682 = vpop.permute.xlu0 %1681
        %v1683 = vmul.f32 %v1682, %v544
        %1684 = vrot.lane.b32.xlu0 %v1673, 1
        %v1685 = vpop.permute.xlu0 %1684
        %v1686 = vmul.f32 %v1685, %v618
        %1687 = vrot.lane.b32.xlu0 %v1673, 127
        %v1688 = vpop.permute.xlu0 %1687
        %v1689 = vmul.f32 %v1688, %v692
        %1690 = vrot.lane.b32.xlu0 %v1673, 121
        %v1691 = vpop.permute.xlu0 %1690
        %v1692 = vmul.f32 %v1691, %v766
        %1693 = vrot.lane.b32.xlu0 %v1673, 120
        %v1694 = vpop.permute.xlu0 %1693
        %v1695 = vmul.f32 %v1694, %v840
        %1696 = vrot.lane.b32.xlu0 %v1673, 119
        %v1697 = vpop.permute.xlu0 %1696
        %v1698 = vmul.f32 %v1697, %v914
        %v1699 = vld [vmem:[#allocation3 + $0x18] sm:$0xff]
        %v1700 = vld [vmem:[#allocation3 + $0x58] sm:$0xff]
        %v1701 = vld [vmem:[#allocation3 + $0x98] sm:$0xff]
        %v1702 = vld [vmem:[#allocation3 + $0xd8] sm:$0xff]
        %v1703 = vpack.c.bf16 %v1680, %v1677
        %v1704 = vpack.c.bf16 %v1686, %v1683
        %v1705 = vpack.c.bf16 %v1689, %v1673
        %v1706 = vpack.c.bf16 %v1695, %v1692
        %v1707 = vpack.c.bf16 %v1698, %v1698
        %v1709 = vsel %vm1044, %v1707, 0
        %1711 = vmatprep.subr.bf16.mxu0 0
        %1712 = vmatpush1.bf16.msra.mxu0 %v1703
        %1713 = vmatprep.subr.bf16.mxu0 0
        %1714 = vmatpush1.bf16.msra.mxu0 %v1704
        %1715 = vmatprep.subr.bf16.mxu0 0
        %1716 = vmatpush1.bf16.msra.mxu0 %v1705
        %1717 = vmatprep.subr.bf16.mxu0 0
        %1718 = vmatpush1.bf16.msra.mxu0 %v1706
        %1719 = vmatprep.subr.bf16.mxu0 0
        %1720 = vmatpush1.bf16.msra.mxu0 %v1709
        %1721 = vmatprep.subr.bf16.mxu0 0
        %1722 = vmatpush1.bf16.msra.mxu0 0
        %1723 = vmatprep.subr.bf16.mxu0 0
        %1724 = vmatpush1.bf16.msra.mxu0 0
        %1725 = vmatprep.subr.bf16.mxu0 0
        %1726 = vmatpush1.bf16.msra.mxu0 0
        %1727 = vmatprep.subr.bf16.mxu0 0
        %1728 = vmatpush1.bf16.msra.mxu0 0
        %1729 = vmatprep.subr.bf16.mxu0 0
        %1730 = vmatpush1.bf16.msra.mxu0 0
        %1731 = vmatprep.subr.bf16.mxu0 0
        %1732 = vmatpush1.bf16.msra.mxu0 0
        %1733 = vmatprep.subr.bf16.mxu0 0
        %1734 = vmatpush1.bf16.msra.mxu0 0
        %1735 = vmatprep.subr.bf16.mxu0 0
        %1736 = vmatpush1.bf16.msra.mxu0 0
        %1737 = vmatprep.subr.bf16.mxu0 0
        %1738 = vmatpush1.bf16.msra.mxu0 0
        %1739 = vmatprep.subr.bf16.mxu0 0
        %1740 = vmatpush1.bf16.msra.mxu0 0
        %1741 = vmatprep.subr.bf16.mxu0 0
        %1742 = vmatpush1.bf16.msra.mxu0 0
        %1743 = vmatprep.mubr.bf16.mxu0 0
        %1744 = vmatmul.mubr.bf16.gmra.mrb[0].mxu0 %v1361
        %v1745 = vpop.f32.mrb[0].mxu0
        %v1746 = vadd.f32 0.0, %v1745
        %v1747 = vpop.f32.mrb[0].mxu0
        %v1748 = vpop.f32.mrb[0].mxu0
        %v1749 = vadd.f32 0.0, %v1748
        %v1750 = vpop.f32.mrb[0].mxu0
        %1751 = vmatprep.mubr.bf16.mxu0 0
        %1752 = vmatmul.mubr.bf16.gmra.mrb[0].mxu0 %v1364
        %v1753 = vpop.f32.mrb[0].mxu0
        %v1754 = vadd.f32 0.0, %v1753
        %v1755 = vpop.f32.mrb[0].mxu0
        %v1756 = vpop.f32.mrb[0].mxu0
        %v1757 = vadd.f32 0.0, %v1756
        %v1758 = vpop.f32.mrb[0].mxu0
        %1759 = vdwg.mxu0
        %v1760 = vadd.f32 %v1699, %v1746
        %v1761 = vadd.f32 %v1700, %v1749
        %v1762 = vadd.f32 %v1701, %v1754
        %v1763 = vadd.f32 %v1702, %v1757
        %v1764 = vxor.u32 %v1760, 2147483648
        %v1765 = vmul.f32 %v1764, 1.442695
        %v1766 = vpow.pop %v1765
        %v1767 = vadd.f32 %v1766, 1.0
        %v1768 = vrcp.pop %v1767
        %v1769 = vmul.f32 1.0, %v1768
        %v1770 = vxor.u32 %v1761, 2147483648
        %v1771 = vmul.f32 %v1770, 1.442695
        %v1772 = vpow.pop %v1771
        %v1773 = vadd.f32 %v1772, 1.0
        %v1774 = vrcp.pop %v1773
        %v1775 = vmul.f32 1.0, %v1774
        %v1776 = vtanh.pop %v1762
        %v1777 = vxor.u32 %v1763, 2147483648
        %v1778 = vmul.f32 %v1777, 1.442695
        %v1779 = vpow.pop %v1778
        %v1780 = vadd.f32 %v1779, 1.0
        %v1781 = vrcp.pop %v1780
        %v1782 = vmul.f32 1.0, %v1781
        %v1783 = vmul.f32 %v1775, %v1671
        %v1784 = vmul.f32 %v1769, %v1776
        %v1785 = vadd.f32 %v1783, %v1784
        %v1786 = vtanh.pop %v1785
        %v1787 = vmul.f32 %v1782, %v1786
        %1788 = vst [vmem:[#allocation10 + $0x18] sm:$0xff] %v1787
        %1789 = vrot.lane.b32.xlu0 %v1787, 9
        %v1790 = vpop.permute.xlu0 %1789
        %v1791 = vmul.f32 %v1790, %v396
        %1792 = vrot.lane.b32.xlu0 %v1787, 8
        %v1793 = vpop.permute.xlu0 %1792
        %v1794 = vmul.f32 %v1793, %v470
        %1795 = vrot.lane.b32.xlu0 %v1787, 7
        %v1796 = vpop.permute.xlu0 %1795
        %v1797 = vmul.f32 %v1796, %v544
        %1798 = vrot.lane.b32.xlu0 %v1787, 1
        %v1799 = vpop.permute.xlu0 %1798
        %v1800 = vmul.f32 %v1799, %v618
        %1801 = vrot.lane.b32.xlu0 %v1787, 127
        %v1802 = vpop.permute.xlu0 %1801
        %v1803 = vmul.f32 %v1802, %v692
        %1804 = vrot.lane.b32.xlu0 %v1787, 121
        %v1805 = vpop.permute.xlu0 %1804
        %v1806 = vmul.f32 %v1805, %v766
        %1807 = vrot.lane.b32.xlu0 %v1787, 120
        %v1808 = vpop.permute.xlu0 %1807
        %v1809 = vmul.f32 %v1808, %v840
        %1810 = vrot.lane.b32.xlu0 %v1787, 119
        %v1811 = vpop.permute.xlu0 %1810
        %v1812 = vmul.f32 %v1811, %v914
        %v1813 = vld [vmem:[#allocation3 + $0x20] sm:$0xff]
        %v1814 = vld [vmem:[#allocation3 + $0x60] sm:$0xff]
        %v1815 = vld [vmem:[#allocation3 + $0xa0] sm:$0xff]
        %v1816 = vld [vmem:[#allocation3 + $0xe0] sm:$0xff]
        %v1817 = vpack.c.bf16 %v1794, %v1791
        %v1818 = vpack.c.bf16 %v1800, %v1797
        %v1819 = vpack.c.bf16 %v1803, %v1787
        %v1820 = vpack.c.bf16 %v1809, %v1806
        %v1821 = vpack.c.bf16 %v1812, %v1812
        %v1823 = vsel %vm1044, %v1821, 0
        %1825 = vmatprep.subr.bf16.mxu0 0
        %1826 = vmatpush1.bf16.msra.mxu0 %v1817
        %1827 = vmatprep.subr.bf16.mxu0 0
        %1828 = vmatpush1.bf16.msra.mxu0 %v1818
        %1829 = vmatprep.subr.bf16.mxu0 0
        %1830 = vmatpush1.bf16.msra.mxu0 %v1819
        %1831 = vmatprep.subr.bf16.mxu0 0
        %1832 = vmatpush1.bf16.msra.mxu0 %v1820
        %1833 = vmatprep.subr.bf16.mxu0 0
        %1834 = vmatpush1.bf16.msra.mxu0 %v1823
        %1835 = vmatprep.subr.bf16.mxu0 0
        %1836 = vmatpush1.bf16.msra.mxu0 0
        %1837 = vmatprep.subr.bf16.mxu0 0
        %1838 = vmatpush1.bf16.msra.mxu0 0
        %1839 = vmatprep.subr.bf16.mxu0 0
        %1840 = vmatpush1.bf16.msra.mxu0 0
        %1841 = vmatprep.subr.bf16.mxu0 0
        %1842 = vmatpush1.bf16.msra.mxu0 0
        %1843 = vmatprep.subr.bf16.mxu0 0
        %1844 = vmatpush1.bf16.msra.mxu0 0
        %1845 = vmatprep.subr.bf16.mxu0 0
        %1846 = vmatpush1.bf16.msra.mxu0 0
        %1847 = vmatprep.subr.bf16.mxu0 0
        %1848 = vmatpush1.bf16.msra.mxu0 0
        %1849 = vmatprep.subr.bf16.mxu0 0
        %1850 = vmatpush1.bf16.msra.mxu0 0
        %1851 = vmatprep.subr.bf16.mxu0 0
        %1852 = vmatpush1.bf16.msra.mxu0 0
        %1853 = vmatprep.subr.bf16.mxu0 0
        %1854 = vmatpush1.bf16.msra.mxu0 0
        %1855 = vmatprep.subr.bf16.mxu0 0
        %1856 = vmatpush1.bf16.msra.mxu0 0
        %1857 = vmatprep.mubr.bf16.mxu0 0
        %1858 = vmatmul.mubr.bf16.gmra.mrb[0].mxu0 %v1361
        %v1859 = vpop.f32.mrb[0].mxu0
        %v1860 = vadd.f32 0.0, %v1859
        %v1861 = vpop.f32.mrb[0].mxu0
        %v1862 = vpop.f32.mrb[0].mxu0
        %v1863 = vadd.f32 0.0, %v1862
        %v1864 = vpop.f32.mrb[0].mxu0
        %1865 = vmatprep.mubr.bf16.mxu0 0
        %1866 = vmatmul.mubr.bf16.gmra.mrb[0].mxu0 %v1364
        %v1867 = vpop.f32.mrb[0].mxu0
        %v1868 = vadd.f32 0.0, %v1867
        %v1869 = vpop.f32.mrb[0].mxu0
        %v1870 = vpop.f32.mrb[0].mxu0
        %v1871 = vadd.f32 0.0, %v1870
        %v1872 = vpop.f32.mrb[0].mxu0
        %1873 = vdwg.mxu0
        %v1874 = vadd.f32 %v1813, %v1860
        %v1875 = vadd.f32 %v1814, %v1863
        %v1876 = vadd.f32 %v1815, %v1868
        %v1877 = vadd.f32 %v1816, %v1871
        %v1878 = vxor.u32 %v1874, 2147483648
        %v1879 = vmul.f32 %v1878, 1.442695
        %v1880 = vpow.pop %v1879
        %v1881 = vadd.f32 %v1880, 1.0
        %v1882 = vrcp.pop %v1881
        %v1883 = vmul.f32 1.0, %v1882
        %v1884 = vxor.u32 %v1875, 2147483648
        %v1885 = vmul.f32 %v1884, 1.442695
        %v1886 = vpow.pop %v1885
        %v1887 = vadd.f32 %v1886, 1.0
        %v1888 = vrcp.pop %v1887
        %v1889 = vmul.f32 1.0, %v1888
        %v1890 = vtanh.pop %v1876
        %v1891 = vxor.u32 %v1877, 2147483648
        %v1892 = vmul.f32 %v1891, 1.442695
        %v1893 = vpow.pop %v1892
        %v1894 = vadd.f32 %v1893, 1.0
        %v1895 = vrcp.pop %v1894
        %v1896 = vmul.f32 1.0, %v1895
        %v1897 = vmul.f32 %v1889, %v1785
        %v1898 = vmul.f32 %v1883, %v1890
        %v1899 = vadd.f32 %v1897, %v1898
        %v1900 = vtanh.pop %v1899
        %v1901 = vmul.f32 %v1896, %v1900
        %1902 = vst [vmem:[#allocation10 + $0x20] sm:$0xff] %v1901
        %1903 = vrot.lane.b32.xlu0 %v1901, 9
        %v1904 = vpop.permute.xlu0 %1903
        %v1905 = vmul.f32 %v1904, %v396
        %1906 = vrot.lane.b32.xlu0 %v1901, 8
        %v1907 = vpop.permute.xlu0 %1906
        %v1908 = vmul.f32 %v1907, %v470
        %1909 = vrot.lane.b32.xlu0 %v1901, 7
        %v1910 = vpop.permute.xlu0 %1909
        %v1911 = vmul.f32 %v1910, %v544
        %1912 = vrot.lane.b32.xlu0 %v1901, 1
        %v1913 = vpop.permute.xlu0 %1912
        %v1914 = vmul.f32 %v1913, %v618
        %1915 = vrot.lane.b32.xlu0 %v1901, 127
        %v1916 = vpop.permute.xlu0 %1915
        %v1917 = vmul.f32 %v1916, %v692
        %1918 = vrot.lane.b32.xlu0 %v1901, 121
        %v1919 = vpop.permute.xlu0 %1918
        %v1920 = vmul.f32 %v1919, %v766
        %1921 = vrot.lane.b32.xlu0 %v1901, 120
        %v1922 = vpop.permute.xlu0 %1921
        %v1923 = vmul.f32 %v1922, %v840
        %1924 = vrot.lane.b32.xlu0 %v1901, 119
        %v1925 = vpop.permute.xlu0 %1924
        %v1926 = vmul.f32 %v1925, %v914
        %v1927 = vld [vmem:[#allocation3 + $0x28] sm:$0xff]
        %v1928 = vld [vmem:[#allocation3 + $0x68] sm:$0xff]
        %v1929 = vld [vmem:[#allocation3 + $0xa8] sm:$0xff]
        %v1930 = vld [vmem:[#allocation3 + $0xe8] sm:$0xff]
        %v1931 = vpack.c.bf16 %v1908, %v1905
        %v1932 = vpack.c.bf16 %v1914, %v1911
        %v1933 = vpack.c.bf16 %v1917, %v1901
        %v1934 = vpack.c.bf16 %v1923, %v1920
        %v1935 = vpack.c.bf16 %v1926, %v1926
        %v1937 = vsel %vm1044, %v1935, 0
        %1939 = vmatprep.subr.bf16.mxu0 0
        %1940 = vmatpush1.bf16.msra.mxu0 %v1931
        %1941 = vmatprep.subr.bf16.mxu0 0
        %1942 = vmatpush1.bf16.msra.mxu0 %v1932
        %1943 = vmatprep.subr.bf16.mxu0 0
        %1944 = vmatpush1.bf16.msra.mxu0 %v1933
        %1945 = vmatprep.subr.bf16.mxu0 0
        %1946 = vmatpush1.bf16.msra.mxu0 %v1934
        %1947 = vmatprep.subr.bf16.mxu0 0
        %1948 = vmatpush1.bf16.msra.mxu0 %v1937
        %1949 = vmatprep.subr.bf16.mxu0 0
        %1950 = vmatpush1.bf16.msra.mxu0 0
        %1951 = vmatprep.subr.bf16.mxu0 0
        %1952 = vmatpush1.bf16.msra.mxu0 0
        %1953 = vmatprep.subr.bf16.mxu0 0
        %1954 = vmatpush1.bf16.msra.mxu0 0
        %1955 = vmatprep.subr.bf16.mxu0 0
        %1956 = vmatpush1.bf16.msra.mxu0 0
        %1957 = vmatprep.subr.bf16.mxu0 0
        %1958 = vmatpush1.bf16.msra.mxu0 0
        %1959 = vmatprep.subr.bf16.mxu0 0
        %1960 = vmatpush1.bf16.msra.mxu0 0
        %1961 = vmatprep.subr.bf16.mxu0 0
        %1962 = vmatpush1.bf16.msra.mxu0 0
        %1963 = vmatprep.subr.bf16.mxu0 0
        %1964 = vmatpush1.bf16.msra.mxu0 0
        %1965 = vmatprep.subr.bf16.mxu0 0
        %1966 = vmatpush1.bf16.msra.mxu0 0
        %1967 = vmatprep.subr.bf16.mxu0 0
        %1968 = vmatpush1.bf16.msra.mxu0 0
        %1969 = vmatprep.subr.bf16.mxu0 0
        %1970 = vmatpush1.bf16.msra.mxu0 0
        %1971 = vmatprep.mubr.bf16.mxu0 0
        %1972 = vmatmul.mubr.bf16.gmra.mrb[0].mxu0 %v1361
        %v1973 = vpop.f32.mrb[0].mxu0
        %v1974 = vadd.f32 0.0, %v1973
        %v1975 = vpop.f32.mrb[0].mxu0
        %v1976 = vpop.f32.mrb[0].mxu0
        %v1977 = vadd.f32 0.0, %v1976
        %v1978 = vpop.f32.mrb[0].mxu0
        %1979 = vmatprep.mubr.bf16.mxu0 0
        %1980 = vmatmul.mubr.bf16.gmra.mrb[0].mxu0 %v1364
        %v1981 = vpop.f32.mrb[0].mxu0
        %v1982 = vadd.f32 0.0, %v1981
        %v1983 = vpop.f32.mrb[0].mxu0
        %v1984 = vpop.f32.mrb[0].mxu0
        %v1985 = vadd.f32 0.0, %v1984
        %v1986 = vpop.f32.mrb[0].mxu0
        %1987 = vdwg.mxu0
        %v1988 = vadd.f32 %v1927, %v1974
        %v1989 = vadd.f32 %v1928, %v1977
        %v1990 = vadd.f32 %v1929, %v1982
        %v1991 = vadd.f32 %v1930, %v1985
        %v1992 = vxor.u32 %v1988, 2147483648
        %v1993 = vmul.f32 %v1992, 1.442695
        %v1994 = vpow.pop %v1993
        %v1995 = vadd.f32 %v1994, 1.0
        %v1996 = vrcp.pop %v1995
        %v1997 = vmul.f32 1.0, %v1996
        %v1998 = vxor.u32 %v1989, 2147483648
        %v1999 = vmul.f32 %v1998, 1.442695
        %v2000 = vpow.pop %v1999
        %v2001 = vadd.f32 %v2000, 1.0
        %v2002 = vrcp.pop %v2001
        %v2003 = vmul.f32 1.0, %v2002
        %v2004 = vtanh.pop %v1990
        %v2005 = vxor.u32 %v1991, 2147483648
        %v2006 = vmul.f32 %v2005, 1.442695
        %v2007 = vpow.pop %v2006
        %v2008 = vadd.f32 %v2007, 1.0
        %v2009 = vrcp.pop %v2008
        %v2010 = vmul.f32 1.0, %v2009
        %v2011 = vmul.f32 %v2003, %v1899
        %v2012 = vmul.f32 %v1997, %v2004
        %v2013 = vadd.f32 %v2011, %v2012
        %v2014 = vtanh.pop %v2013
        %v2015 = vmul.f32 %v2010, %v2014
        %2016 = vst [vmem:[#allocation10 + $0x28] sm:$0xff] %v2015
        %2017 = vrot.lane.b32.xlu0 %v2015, 9
        %v2018 = vpop.permute.xlu0 %2017
        %v2019 = vmul.f32 %v2018, %v396
        %2020 = vrot.lane.b32.xlu0 %v2015, 8
        %v2021 = vpop.permute.xlu0 %2020
        %v2022 = vmul.f32 %v2021, %v470
        %2023 = vrot.lane.b32.xlu0 %v2015, 7
        %v2024 = vpop.permute.xlu0 %2023
        %v2025 = vmul.f32 %v2024, %v544
        %2026 = vrot.lane.b32.xlu0 %v2015, 1
        %v2027 = vpop.permute.xlu0 %2026
        %v2028 = vmul.f32 %v2027, %v618
        %2029 = vrot.lane.b32.xlu0 %v2015, 127
        %v2030 = vpop.permute.xlu0 %2029
        %v2031 = vmul.f32 %v2030, %v692
        %2032 = vrot.lane.b32.xlu0 %v2015, 121
        %v2033 = vpop.permute.xlu0 %2032
        %v2034 = vmul.f32 %v2033, %v766
        %2035 = vrot.lane.b32.xlu0 %v2015, 120
        %v2036 = vpop.permute.xlu0 %2035
        %v2037 = vmul.f32 %v2036, %v840
        %2038 = vrot.lane.b32.xlu0 %v2015, 119
        %v2039 = vpop.permute.xlu0 %2038
        %v2040 = vmul.f32 %v2039, %v914
        %v2041 = vld [vmem:[#allocation3 + $0x30] sm:$0xff]
        %v2042 = vld [vmem:[#allocation3 + $0x70] sm:$0xff]
        %v2043 = vld [vmem:[#allocation3 + $0xb0] sm:$0xff]
        %v2044 = vld [vmem:[#allocation3 + $0xf0] sm:$0xff]
        %v2045 = vpack.c.bf16 %v2022, %v2019
        %v2046 = vpack.c.bf16 %v2028, %v2025
        %v2047 = vpack.c.bf16 %v2031, %v2015
        %v2048 = vpack.c.bf16 %v2037, %v2034
        %v2049 = vpack.c.bf16 %v2040, %v2040
        %v2051 = vsel %vm1044, %v2049, 0
        %2053 = vmatprep.subr.bf16.mxu0 0
        %2054 = vmatpush1.bf16.msra.mxu0 %v2045
        %2055 = vmatprep.subr.bf16.mxu0 0
        %2056 = vmatpush1.bf16.msra.mxu0 %v2046
        %2057 = vmatprep.subr.bf16.mxu0 0
        %2058 = vmatpush1.bf16.msra.mxu0 %v2047
        %2059 = vmatprep.subr.bf16.mxu0 0
        %2060 = vmatpush1.bf16.msra.mxu0 %v2048
        %2061 = vmatprep.subr.bf16.mxu0 0
        %2062 = vmatpush1.bf16.msra.mxu0 %v2051
        %2063 = vmatprep.subr.bf16.mxu0 0
        %2064 = vmatpush1.bf16.msra.mxu0 0
        %2065 = vmatprep.subr.bf16.mxu0 0
        %2066 = vmatpush1.bf16.msra.mxu0 0
        %2067 = vmatprep.subr.bf16.mxu0 0
        %2068 = vmatpush1.bf16.msra.mxu0 0
        %2069 = vmatprep.subr.bf16.mxu0 0
        %2070 = vmatpush1.bf16.msra.mxu0 0
        %2071 = vmatprep.subr.bf16.mxu0 0
        %2072 = vmatpush1.bf16.msra.mxu0 0
        %2073 = vmatprep.subr.bf16.mxu0 0
        %2074 = vmatpush1.bf16.msra.mxu0 0
        %2075 = vmatprep.subr.bf16.mxu0 0
        %2076 = vmatpush1.bf16.msra.mxu0 0
        %2077 = vmatprep.subr.bf16.mxu0 0
        %2078 = vmatpush1.bf16.msra.mxu0 0
        %2079 = vmatprep.subr.bf16.mxu0 0
        %2080 = vmatpush1.bf16.msra.mxu0 0
        %2081 = vmatprep.subr.bf16.mxu0 0
        %2082 = vmatpush1.bf16.msra.mxu0 0
        %2083 = vmatprep.subr.bf16.mxu0 0
        %2084 = vmatpush1.bf16.msra.mxu0 0
        %2085 = vmatprep.mubr.bf16.mxu0 0
        %2086 = vmatmul.mubr.bf16.gmra.mrb[0].mxu0 %v1361
        %v2087 = vpop.f32.mrb[0].mxu0
        %v2088 = vadd.f32 0.0, %v2087
        %v2089 = vpop.f32.mrb[0].mxu0
        %v2090 = vpop.f32.mrb[0].mxu0
        %v2091 = vadd.f32 0.0, %v2090
        %v2092 = vpop.f32.mrb[0].mxu0
        %2093 = vmatprep.mubr.bf16.mxu0 0
        %2094 = vmatmul.mubr.bf16.gmra.mrb[0].mxu0 %v1364
        %v2095 = vpop.f32.mrb[0].mxu0
        %v2096 = vadd.f32 0.0, %v2095
        %v2097 = vpop.f32.mrb[0].mxu0
        %v2098 = vpop.f32.mrb[0].mxu0
        %v2099 = vadd.f32 0.0, %v2098
        %v2100 = vpop.f32.mrb[0].mxu0
        %2101 = vdwg.mxu0
        %v2102 = vadd.f32 %v2041, %v2088
        %v2103 = vadd.f32 %v2042, %v2091
        %v2104 = vadd.f32 %v2043, %v2096
        %v2105 = vadd.f32 %v2044, %v2099
        %v2106 = vxor.u32 %v2102, 2147483648
        %v2107 = vmul.f32 %v2106, 1.442695
        %v2108 = vpow.pop %v2107
        %v2109 = vadd.f32 %v2108, 1.0
        %v2110 = vrcp.pop %v2109
        %v2111 = vmul.f32 1.0, %v2110
        %v2112 = vxor.u32 %v2103, 2147483648
        %v2113 = vmul.f32 %v2112, 1.442695
        %v2114 = vpow.pop %v2113
        %v2115 = vadd.f32 %v2114, 1.0
        %v2116 = vrcp.pop %v2115
        %v2117 = vmul.f32 1.0, %v2116
        %v2118 = vtanh.pop %v2104
        %v2119 = vxor.u32 %v2105, 2147483648
        %v2120 = vmul.f32 %v2119, 1.442695
        %v2121 = vpow.pop %v2120
        %v2122 = vadd.f32 %v2121, 1.0
        %v2123 = vrcp.pop %v2122
        %v2124 = vmul.f32 1.0, %v2123
        %v2125 = vmul.f32 %v2117, %v2013
        %v2126 = vmul.f32 %v2111, %v2118
        %v2127 = vadd.f32 %v2125, %v2126
        %v2128 = vtanh.pop %v2127
        %v2129 = vmul.f32 %v2124, %v2128
        %2130 = vst [vmem:[#allocation10 + $0x30] sm:$0xff] %v2129
        %2131 = vrot.lane.b32.xlu0 %v2129, 9
        %v2132 = vpop.permute.xlu0 %2131
        %v2133 = vmul.f32 %v2132, %v396
        %2134 = vrot.lane.b32.xlu0 %v2129, 8
        %v2135 = vpop.permute.xlu0 %2134
        %v2136 = vmul.f32 %v2135, %v470
        %2137 = vrot.lane.b32.xlu0 %v2129, 7
        %v2138 = vpop.permute.xlu0 %2137
        %v2139 = vmul.f32 %v2138, %v544
        %2140 = vrot.lane.b32.xlu0 %v2129, 1
        %v2141 = vpop.permute.xlu0 %2140
        %v2142 = vmul.f32 %v2141, %v618
        %2143 = vrot.lane.b32.xlu0 %v2129, 127
        %v2144 = vpop.permute.xlu0 %2143
        %v2145 = vmul.f32 %v2144, %v692
        %2146 = vrot.lane.b32.xlu0 %v2129, 121
        %v2147 = vpop.permute.xlu0 %2146
        %v2148 = vmul.f32 %v2147, %v766
        %2149 = vrot.lane.b32.xlu0 %v2129, 120
        %v2150 = vpop.permute.xlu0 %2149
        %v2151 = vmul.f32 %v2150, %v840
        %2152 = vrot.lane.b32.xlu0 %v2129, 119
        %v2153 = vpop.permute.xlu0 %2152
        %v2154 = vmul.f32 %v2153, %v914
        %v2155 = vld [vmem:[#allocation3 + $0x38] sm:$0xff]
        %v2156 = vld [vmem:[#allocation3 + $0x78] sm:$0xff]
        %v2157 = vld [vmem:[#allocation3 + $0xb8] sm:$0xff]
        %v2158 = vld [vmem:[#allocation3 + $0xf8] sm:$0xff]
        %v2159 = vpack.c.bf16 %v2136, %v2133
        %v2160 = vpack.c.bf16 %v2142, %v2139
        %v2161 = vpack.c.bf16 %v2145, %v2129
        %v2162 = vpack.c.bf16 %v2151, %v2148
        %v2163 = vpack.c.bf16 %v2154, %v2154
        %v2165 = vsel %vm1044, %v2163, 0
        %2167 = vmatprep.subr.bf16.mxu0 0
        %2168 = vmatpush1.bf16.msra.mxu0 %v2159
        %2169 = vmatprep.subr.bf16.mxu0 0
        %2170 = vmatpush1.bf16.msra.mxu0 %v2160
        %2171 = vmatprep.subr.bf16.mxu0 0
        %2172 = vmatpush1.bf16.msra.mxu0 %v2161
        %2173 = vmatprep.subr.bf16.mxu0 0
        %2174 = vmatpush1.bf16.msra.mxu0 %v2162
        %2175 = vmatprep.subr.bf16.mxu0 0
        %2176 = vmatpush1.bf16.msra.mxu0 %v2165
        %2177 = vmatprep.subr.bf16.mxu0 0
        %2178 = vmatpush1.bf16.msra.mxu0 0
        %2179 = vmatprep.subr.bf16.mxu0 0
        %2180 = vmatpush1.bf16.msra.mxu0 0
        %2181 = vmatprep.subr.bf16.mxu0 0
        %2182 = vmatpush1.bf16.msra.mxu0 0
        %2183 = vmatprep.subr.bf16.mxu0 0
        %2184 = vmatpush1.bf16.msra.mxu0 0
        %2185 = vmatprep.subr.bf16.mxu0 0
        %2186 = vmatpush1.bf16.msra.mxu0 0
        %2187 = vmatprep.subr.bf16.mxu0 0
        %2188 = vmatpush1.bf16.msra.mxu0 0
        %2189 = vmatprep.subr.bf16.mxu0 0
        %2190 = vmatpush1.bf16.msra.mxu0 0
        %2191 = vmatprep.subr.bf16.mxu0 0
        %2192 = vmatpush1.bf16.msra.mxu0 0
        %2193 = vmatprep.subr.bf16.mxu0 0
        %2194 = vmatpush1.bf16.msra.mxu0 0
        %2195 = vmatprep.subr.bf16.mxu0 0
        %2196 = vmatpush1.bf16.msra.mxu0 0
        %2197 = vmatprep.subr.bf16.mxu0 0
        %2198 = vmatpush1.bf16.msra.mxu0 0
        %2199 = vmatprep.mubr.bf16.mxu0 0
        %2200 = vmatmul.mubr.bf16.gmra.mrb[0].mxu0 %v1361
        %v2201 = vpop.f32.mrb[0].mxu0
        %v2202 = vadd.f32 0.0, %v2201
        %v2203 = vpop.f32.mrb[0].mxu0
        %v2204 = vpop.f32.mrb[0].mxu0
        %v2205 = vadd.f32 0.0, %v2204
        %v2206 = vpop.f32.mrb[0].mxu0
        %2207 = vmatprep.mubr.bf16.mxu0 0
        %2208 = vmatmul.mubr.bf16.gmra.mrb[0].mxu0 %v1364
        %v2209 = vpop.f32.mrb[0].mxu0
        %v2210 = vadd.f32 0.0, %v2209
        %v2211 = vpop.f32.mrb[0].mxu0
        %v2212 = vpop.f32.mrb[0].mxu0
        %v2213 = vadd.f32 0.0, %v2212
        %v2214 = vpop.f32.mrb[0].mxu0
        %2215 = vdwg.mxu0
        %v2216 = vadd.f32 %v2155, %v2202
        %v2217 = vadd.f32 %v2156, %v2205
        %v2218 = vadd.f32 %v2157, %v2210
        %v2219 = vadd.f32 %v2158, %v2213
        %v2220 = vxor.u32 %v2216, 2147483648
        %v2221 = vmul.f32 %v2220, 1.442695
        %v2222 = vpow.pop %v2221
        %v2223 = vadd.f32 %v2222, 1.0
        %v2224 = vrcp.pop %v2223
        %v2225 = vmul.f32 1.0, %v2224
        %v2226 = vxor.u32 %v2217, 2147483648
        %v2227 = vmul.f32 %v2226, 1.442695
        %v2228 = vpow.pop %v2227
        %v2229 = vadd.f32 %v2228, 1.0
        %v2230 = vrcp.pop %v2229
        %v2231 = vmul.f32 1.0, %v2230
        %v2232 = vtanh.pop %v2218
        %v2233 = vxor.u32 %v2219, 2147483648
        %v2234 = vmul.f32 %v2233, 1.442695
        %v2235 = vpow.pop %v2234
        %v2236 = vadd.f32 %v2235, 1.0
        %v2237 = vrcp.pop %v2236
        %v2238 = vmul.f32 1.0, %v2237
        %v2239 = vmul.f32 %v2231, %v2127
        %v2240 = vmul.f32 %v2225, %v2232
        %v2241 = vadd.f32 %v2239, %v2240
        %v2242 = vtanh.pop %v2241
        %v2243 = vmul.f32 %v2238, %v2242
        %2244 = vst [vmem:[#allocation10 + $0x38] sm:$0xff] %v2243
        // Predicated region
        $region61: #{tpu_custom_call.1} parent=39 // pred_check
          %p2245 = pneg %p154
        $region62: #{tpu_custom_call.1} parent=39 // pred_check_branch
          %2247 = sbr.rel (%p2245) target = $region64
        $region63: #{tpu_custom_call.1} parent=39 // pred_region
          %s2249 = ssub.s32 1024, 1024
          %2250 = vsyncadd [#allocation6], %s2249
          %s2252 = sshll.u32 [#allocation10], 4
          %s2253 = int_to_ptr.vmem [resolvable:$true] %s2252
          %2255 = dma.vmem_to_hbm [thread:$0]  %s2253, 1024, %s5, [#allocation6]
        $region64: #{tpu_custom_call.1} parent=39 // pred_fallthru
          _
        // Predicated region
        $region65: #{tpu_custom_call.1} parent=39 // pred_check
          %p2256 = pneg %p154
        $region66: #{tpu_custom_call.1} parent=39 // pred_check_branch
          %2258 = sbr.rel (%p2256) target = $region68
        $region67: #{tpu_custom_call.1} parent=39 // pred_region
          %2259 = dma.done [#allocation6], 1024
        $region68: #{tpu_custom_call.1} parent=39 // pred_fallthru
          _
      $region40: #{tpu_custom_call.1} parent=5 // pred_fallthru
        _
      %p2260 = scmp.le.s32.totalorder 2, %s16
      // Predicated region
      $region69: #{tpu_custom_call.1} parent=5 // pred_check
        %p2261 = pneg %p2260
      $region70: #{tpu_custom_call.1} parent=5 // pred_check_branch
        %2263 = sbr.rel (%p2261) target = $region72
      $region71: #{tpu_custom_call.1} parent=5 // pred_region
        %s2264 = ssub.s32 %s16, 2
      $region72: #{tpu_custom_call.1} parent=5 // pred_fallthru
        _
    $region6: #{tpu_custom_call.1} parent=1 // loop_footer
      %s20 = sadd.s32 1, %s16
    $region7: #{tpu_custom_call.1} parent=1 // loop_footer_branch
      %15 = sbr.rel target = $region3
    $region8: #{tpu_custom_call.1} parent=1 // loop_exit
      _
    %2265 = vsyncpa [#allocation5], 1
    %s2266 = scalar_lea.sflag [#allocation5], 1
    %2267 = vsyncpa %s2266, 1
    %2268 = vsyncpa [#allocation8], 1
    %s2269 = scalar_lea.sflag [#allocation8], 1
    %2270 = vsyncpa %s2269, 1
    %2271 = vsyncpa [#allocation6], 1
    %s2272 = scalar_lea.sflag [#allocation6], 1
    %2273 = vsyncpa %s2272, 1

</llo_original>
